<compile_context>
chip_gen: v6e
topology: v6e:2x2x1
jax: 0.10.0
libtpu: 0.0.40
codegen_flags: <defaults>
</compile_context>

<pallas_src>
import jax
import jax.numpy as jnp
from jax.experimental import pallas as pl
from jax.experimental.pallas import tpu as pltpu


# ----------------------------------------------------------------------------
# im2col glue (pure data movement, stays in XLA): (B,H,W,Cin) -> (B*HW, 9*Cin)
# tap order (dy, dx) row-major matches w.reshape(9*Cin, Cout).
# ----------------------------------------------------------------------------
def _im2col_3x3(x_nhwc, dtype=jnp.bfloat16):
    B, H, W, Cin = x_nhwc.shape
    xp = jnp.pad(x_nhwc, ((0, 0), (1, 1), (1, 1), (0, 0))).astype(dtype)
    taps = [xp[:, dy:dy + H, dx:dx + W, :] for dy in range(3) for dx in range(3)]
    return jnp.concatenate(taps, axis=-1).reshape(B * H * W, 9 * Cin)


def _row_tile(n, cap=512):
    return n if n <= cap else cap


# ----------------------------------------------------------------------------
# Fused input conv: two 3x3 convs (PAM-in and CAM-in) sharing one im2col slab.
# Single K=9*Cin matmul each, f32 accumulation, row-tiled grid.
# ----------------------------------------------------------------------------
def _conv3x3_dual_kernel(x_ref, w1_ref, b1_ref, w2_ref, b2_ref, o1_ref, o2_ref):
    xb = x_ref[...]                                               # (TR, 9*Cin) bf16
    o1_ref[...] = (jnp.dot(xb, w1_ref[...], preferred_element_type=jnp.float32)
                   + b1_ref[...]).astype(o1_ref.dtype)
    o2_ref[...] = (jnp.dot(xb, w2_ref[...], preferred_element_type=jnp.float32)
                   + b2_ref[...]).astype(o2_ref.dtype)


def conv3x3_dual(x_nhwc, w1, b1, w2, b2, tile_rows=512):
    B, H, W, Cin = x_nhwc.shape
    Cout = w1.shape[-1]
    N, K = B * H * W, 9 * Cin
    xcat = _im2col_3x3(x_nhwc)
    w1f = w1.reshape(K, Cout).astype(jnp.bfloat16)
    w2f = w2.reshape(K, Cout).astype(jnp.bfloat16)
    tr = _row_tile(N, tile_rows)
    out1, out2 = pl.pallas_call(
        _conv3x3_dual_kernel,
        out_shape=(jax.ShapeDtypeStruct((N, Cout), jnp.float32),
                   jax.ShapeDtypeStruct((N, Cout), jnp.float32)),
        grid=(pl.cdiv(N, tr),),
        in_specs=[
            pl.BlockSpec((tr, K), lambda i: (i, 0)),
            pl.BlockSpec((K, Cout), lambda i: (0, 0)),
            pl.BlockSpec((1, Cout), lambda i: (0, 0)),
            pl.BlockSpec((K, Cout), lambda i: (0, 0)),
            pl.BlockSpec((1, Cout), lambda i: (0, 0)),
        ],
        out_specs=(pl.BlockSpec((tr, Cout), lambda i: (i, 0)),
                   pl.BlockSpec((tr, Cout), lambda i: (i, 0))),
        compiler_params=pltpu.CompilerParams(dimension_semantics=("parallel",)),
    )(xcat, w1f, b1.reshape(1, Cout), w2f, b2.reshape(1, Cout))
    return out1.reshape(B, H * W, Cout), out2.reshape(B, H * W, Cout)


# ----------------------------------------------------------------------------
# Fused output conv: conv3x3(pam_att) + conv3x3(cam_att) + final add, one kernel.
# ----------------------------------------------------------------------------
def _conv3x3_sum_kernel(x1_ref, w1_ref, b1_ref, x2_ref, w2_ref, b2_ref, o_ref):
    acc = jnp.dot(x1_ref[...], w1_ref[...],
                  preferred_element_type=jnp.float32) + b1_ref[...]
    acc = acc + jnp.dot(x2_ref[...], w2_ref[...],
                        preferred_element_type=jnp.float32) + b2_ref[...]
    o_ref[...] = acc.astype(o_ref.dtype)


def conv3x3_pair_sum(x1_nhwc, w1, b1, x2_nhwc, w2, b2, tile_rows=512):
    B, H, W, C = x1_nhwc.shape
    Cout = w1.shape[-1]
    N, K = B * H * W, 9 * C
    x1cat = _im2col_3x3(x1_nhwc)
    x2cat = _im2col_3x3(x2_nhwc)
    w1f = w1.reshape(K, Cout).astype(jnp.bfloat16)
    w2f = w2.reshape(K, Cout).astype(jnp.bfloat16)
    tr = _row_tile(N, tile_rows)
    out = pl.pallas_call(
        _conv3x3_sum_kernel,
        out_shape=jax.ShapeDtypeStruct((N, Cout), jnp.float32),
        grid=(pl.cdiv(N, tr),),
        in_specs=[
            pl.BlockSpec((tr, K), lambda i: (i, 0)),
            pl.BlockSpec((K, Cout), lambda i: (0, 0)),
            pl.BlockSpec((1, Cout), lambda i: (0, 0)),
            pl.BlockSpec((tr, K), lambda i: (i, 0)),
            pl.BlockSpec((K, Cout), lambda i: (0, 0)),
            pl.BlockSpec((1, Cout), lambda i: (0, 0)),
        ],
        out_specs=pl.BlockSpec((tr, Cout), lambda i: (i, 0)),
        compiler_params=pltpu.CompilerParams(dimension_semantics=("parallel",)),
    )(x1cat, w1f, b1.reshape(1, Cout), x2cat, w2f, b2.reshape(1, Cout))
    return out.reshape(B, H * W, Cout)


# ----------------------------------------------------------------------------
# PAM: 1x1 projections + spatial attention + residual, fully fused per batch.
# Works entirely in (HW, C) layout; projection weights stay resident in VMEM.
# TODO(synk): for very large HW (HW*HW f32 > ~16 MiB) retile flash-style
#             (online softmax over kv tiles); at these sizes the full energy fits VMEM.
# ----------------------------------------------------------------------------
def _pam_kernel(x_ref, wb_ref, bb_ref, wc_ref, bc_ref, wd_ref, bd_ref,
                alpha_ref, o_ref):
    x = x_ref[0]                                       # (HW, C) f32
    xb = x.astype(jnp.bfloat16)
    fb = jnp.dot(xb, wb_ref[...], preferred_element_type=jnp.float32) + bb_ref[...]
    fc = jnp.dot(xb, wc_ref[...], preferred_element_type=jnp.float32) + bc_ref[...]
    fd = jnp.dot(xb, wd_ref[...], preferred_element_type=jnp.float32) + bd_ref[...]
    # energy[i, j] = fb[i] . fc[j]
    energy = jax.lax.dot_general(
        fb.astype(jnp.bfloat16), fc.astype(jnp.bfloat16),
        (((1,), (1,)), ((), ())), preferred_element_type=jnp.float32)   # (HW, HW)
    energy = energy - jnp.max(energy, axis=-1, keepdims=True)
    p = jnp.exp(energy)
    attn = p / jnp.sum(p, axis=-1, keepdims=True)
    # feat_e[i, c] = sum_j attn[i, j] * fd[j, c]
    feat_e = jnp.dot(attn.astype(jnp.bfloat16), fd.astype(jnp.bfloat16),
                     preferred_element_type=jnp.float32)                # (HW, C)
    o_ref[0] = (alpha_ref[0] * feat_e + x).astype(o_ref.dtype)


def pam_attention(x_flat, wb, bb, wc, bc, wd, bd, alpha):
    B, HW, C = x_flat.shape
    C8 = wb.shape[-1]
    return pl.pallas_call(
        _pam_kernel,
        out_shape=jax.ShapeDtypeStruct((B, HW, C), jnp.float32),
        grid=(B,),
        in_specs=[
            pl.BlockSpec((1, HW, C), lambda bi: (bi, 0, 0)),
            pl.BlockSpec((C, C8), lambda bi: (0, 0)),
            pl.BlockSpec((1, C8), lambda bi: (0, 0)),
            pl.BlockSpec((C, C8), lambda bi: (0, 0)),
            pl.BlockSpec((1, C8), lambda bi: (0, 0)),
            pl.BlockSpec((C, C), lambda bi: (0, 0)),
            pl.BlockSpec((1, C), lambda bi: (0, 0)),
            pl.BlockSpec(memory_space=pltpu.MemorySpace.SMEM),
        ],
        out_specs=pl.BlockSpec((1, HW, C), lambda bi: (bi, 0, 0)),
        compiler_params=pltpu.CompilerParams(dimension_semantics=("parallel",)),
    )(x_flat,
      wb.astype(jnp.bfloat16), bb.reshape(1, C8),
      wc.astype(jnp.bfloat16), bc.reshape(1, C8),
      wd.astype(jnp.bfloat16), bd.reshape(1, C),
      alpha)


# ----------------------------------------------------------------------------
# CAM: channel attention + residual, (HW, C) layout, per batch.
# ----------------------------------------------------------------------------
def _cam_kernel(x_ref, gamma_ref, o_ref):
    x = x_ref[0]                                       # (HW, C) f32
    xb = x.astype(jnp.bfloat16)
    # energy[c, d] = sum_i x[i, c] * x[i, d]
    energy = jax.lax.dot_general(
        xb, xb, (((0,), (0,)), ((), ())), preferred_element_type=jnp.float32)  # (C, C)
    energy_new = jnp.max(energy, axis=-1, keepdims=True) - energy
    energy_new = energy_new - jnp.max(energy_new, axis=-1, keepdims=True)
    p = jnp.exp(energy_new)
    attn = p / jnp.sum(p, axis=-1, keepdims=True)
    # out[i, c] = sum_d attn[c, d] * x[i, d]
    out = jax.lax.dot_general(
        xb, attn.astype(jnp.bfloat16), (((1,), (1,)), ((), ())),
        preferred_element_type=jnp.float32)                                   # (HW, C)
    o_ref[0] = (gamma_ref[0] * out + x).astype(o_ref.dtype)


def cam_attention(x_flat, gamma):
    B, HW, C = x_flat.shape
    return pl.pallas_call(
        _cam_kernel,
        out_shape=jax.ShapeDtypeStruct((B, HW, C), jnp.float32),
        grid=(B,),
        in_specs=[
            pl.BlockSpec((1, HW, C), lambda bi: (bi, 0, 0)),
            pl.BlockSpec(memory_space=pltpu.MemorySpace.SMEM),
        ],
        out_specs=pl.BlockSpec((1, HW, C), lambda bi: (bi, 0, 0)),
        compiler_params=pltpu.CompilerParams(dimension_semantics=("parallel",)),
    )(x_flat, gamma)


# ----------------------------------------------------------------------------
# Parameters (deterministic synthetic init; shapes follow DA.__init__).
# ----------------------------------------------------------------------------
def init_params(key, in_channels, channels):
    c8 = channels // 8
    ks = jax.random.split(key, 14)

    def w(k, shape, fan_in):
        return jax.random.normal(k, shape, jnp.float32) / jnp.sqrt(float(fan_in))

    def b(k, n):
        return 0.1 * jax.random.normal(k, (n,), jnp.float32)

    return {
        "pam_in_w": w(ks[0], (3, 3, in_channels, channels), 9 * in_channels),
        "pam_in_b": b(ks[1], channels),
        "pam_b_w": w(ks[2], (channels, c8), channels),
        "pam_b_b": b(ks[3], c8),
        "pam_c_w": w(ks[4], (channels, c8), channels),
        "pam_c_b": b(ks[5], c8),
        "pam_d_w": w(ks[6], (channels, channels), channels),
        "pam_d_b": b(ks[7], channels),
        "pam_out_w": w(ks[8], (3, 3, channels, channels), 9 * channels),
        "pam_out_b": b(ks[9], channels),
        "cam_in_w": w(ks[10], (3, 3, in_channels, channels), 9 * in_channels),
        "cam_in_b": b(ks[11], channels),
        "cam_out_w": w(ks[12], (3, 3, channels, channels), 9 * channels),
        "cam_out_b": b(ks[13], channels),
        # PyTorch initializes PAM.alpha and CAM.gamma (Scale(0)) to 0; we use a
        # nonzero value so the attention branches contribute numerically.
        "alpha": jnp.full((1,), 0.25, jnp.float32),
        "gamma": jnp.full((1,), 0.25, jnp.float32),
    }


# ----------------------------------------------------------------------------
# DA forward (NCHW in / NCHW out). Only 4 pallas_calls total.
# ----------------------------------------------------------------------------
def da_forward(x_nchw, p):
    B, _, H, W = x_nchw.shape
    C = p["pam_in_w"].shape[-1]
    x = jnp.transpose(x_nchw, (0, 2, 3, 1))                           # NHWC

    # fused input convs (shared im2col slab) -> (B, HW, C) each
    pam_in, cam_in = conv3x3_dual(x, p["pam_in_w"], p["pam_in_b"],
                                  p["cam_in_w"], p["cam_in_b"])

    # attention branches, fully fused, (HW, C) layout throughout
    pam_att = pam_attention(pam_in,
                            p["pam_b_w"], p["pam_b_b"],
                            p["pam_c_w"], p["pam_c_b"],
                            p["pam_d_w"], p["pam_d_b"], p["alpha"])   # (B, HW, C)
    cam_att = cam_attention(cam_in, p["gamma"])                        # (B, HW, C)

    # fused output convs + final add
    feat_sum = conv3x3_pair_sum(
        pam_att.reshape(B, H, W, C), p["pam_out_w"], p["pam_out_b"],
        cam_att.reshape(B, H, W, C), p["cam_out_w"], p["cam_out_b"])   # (B, HW, C)

    return jnp.transpose(feat_sum.reshape(B, H, W, C), (0, 3, 1, 2))  # NCHW


# ----------------------------------------------------------------------------
# Pure-JAX reference (mirrors the PyTorch forward) for a correctness check.
# ----------------------------------------------------------------------------
def da_reference(x_nchw, p):
    HI = jax.lax.Precision.HIGHEST
    B, _, H, W = x_nchw.shape
    C = p["pam_in_w"].shape[-1]
    HW = H * W
    x = jnp.transpose(x_nchw, (0, 2, 3, 1))

    def conv3(xx, w, b):
        return jax.lax.conv_general_dilated(
            xx, w, (1, 1), "SAME",
            dimension_numbers=("NHWC", "HWIO", "NHWC"), precision=HI) + b

    pam_in = conv3(x, p["pam_in_w"], p["pam_in_b"]).reshape(B, HW, C)
    fb = jnp.einsum("bnc,cd->bnd", pam_in, p["pam_b_w"], precision=HI) + p["pam_b_b"]
    fc = jnp.einsum("bnc,cd->bnd", pam_in, p["pam_c_w"], precision=HI) + p["pam_c_b"]
    fd = jnp.einsum("bnc,cd->bnd", pam_in, p["pam_d_w"], precision=HI) + p["pam_d_b"]
    attn = jax.nn.softmax(jnp.einsum("bik,bjk->bij", fb, fc, precision=HI), axis=-1)
    feat_e = jnp.einsum("bij,bjc->bic", attn, fd, precision=HI)
    pam_att = p["alpha"][0] * feat_e + pam_in
    pam_feat = conv3(pam_att.reshape(B, H, W, C), p["pam_out_w"], p["pam_out_b"])

    cam_in = conv3(x, p["cam_in_w"], p["cam_in_b"]).reshape(B, HW, C)
    energy = jnp.einsum("bic,bid->bcd", cam_in, cam_in, precision=HI)   # (B, C, C)
    energy_new = jnp.max(energy, axis=-1, keepdims=True) - energy
    attn_c = jax.nn.softmax(energy_new, axis=-1)
    out_c = jnp.einsum("bcd,bid->bic", attn_c, cam_in, precision=HI)    # (B, HW, C)
    cam_att = p["gamma"][0] * out_c + cam_in
    cam_feat = conv3(cam_att.reshape(B, H, W, C), p["cam_out_w"], p["cam_out_b"])

    return jnp.transpose(pam_feat + cam_feat, (0, 3, 1, 2))


if __name__ == "__main__":
    key = jax.random.PRNGKey(0)
    B, in_channels, channels, H, W = 2, 16, 64, 8, 8   # channels // 8 == 8
    kx, kp = jax.random.split(key)
    x = jax.random.normal(kx, (B, in_channels, H, W), jnp.float32)
    params = init_params(kp, in_channels, channels)

    out = jax.block_until_ready(jax.jit(da_forward)(x, params))
    assert out.shape == (B, channels, H, W), out.shape

    ref = jax.block_until_ready(da_reference(x, params))
    max_err = float(jnp.max(jnp.abs(out - ref)))
    # Kernels use bf16 MXU operands with f32 accumulation -> loose tolerance
    # (structural errors would be O(1); bf16 drift is O(1e-2)).
    if not bool(jnp.allclose(out, ref, atol=1e-1, rtol=1e-1)):
        raise SystemExit(f"mismatch: max abs err = {max_err}")

    print("KERNEL_OK")
</pallas_src>

<mosaic_0001>
module attributes {stable_mosaic.version = 11 : i64} {
  func.func @_cam_kernel(%arg0: i32, %arg1: memref<1x64x64xf32, #tpu.memory_space<vmem>>, %arg2: memref<1xf32, #tpu.memory_space<smem>>, %arg3: memref<1x64x64xf32, #tpu.memory_space<vmem>>) attributes {dimension_semantics = [#tpu.dimension_semantics<parallel>], iteration_bounds = array<i64: 2>, scalar_prefetch = 0 : i64, scratch_operands = 0 : i64, tpu.core_type = #tpu.core_type<tc>, window_params = [{transform_indices = @transform_0, window_bounds = array<i64: 1, 64, 64>}, {transform_indices = @transform_1, window_bounds = array<i64: 1>}, {transform_indices = @transform_2, window_bounds = array<i64: 1, 64, 64>}]} {
    %c0 = arith.constant 0 : index
    %c0_0 = arith.constant 0 : index
    %c0_1 = arith.constant 0 : index
    %0 = vector.load %arg1[%c0, %c0_0, %c0_1] : memref<1x64x64xf32, #tpu.memory_space<vmem>>, vector<1x64x64xf32>
    %1 = vector.shape_cast %0 : vector<1x64x64xf32> to vector<64x64xf32>
    %2 = arith.truncf %1 : vector<64x64xf32> to vector<64x64xbf16>
    %cst = arith.constant dense<0.000000e+00> : vector<64x64xf32>
    %3 = tpu.matmul %2, %2, %cst {dimension_numbers = #tpu.dot_dimension_numbers<[0], [0], [1], [1], [0, 1, 1, 1], [], []>} : vector<64x64xbf16>, vector<64x64xbf16>, vector<64x64xf32> -> vector<64x64xf32>
    %cst_2 = arith.constant dense<0xFF800000> : vector<64xf32>
    %4 = vector.multi_reduction <maximumf>, %3, %cst_2 [1] : vector<64x64xf32> to vector<64xf32>
    %5 = vector.shape_cast %4 : vector<64xf32> to vector<64x1xf32>
    %6 = vector.broadcast %5 : vector<64x1xf32> to vector<64x64xf32>
    %7 = arith.subf %6, %3 : vector<64x64xf32>
    %cst_3 = arith.constant dense<0xFF800000> : vector<64xf32>
    %8 = vector.multi_reduction <maximumf>, %7, %cst_3 [1] : vector<64x64xf32> to vector<64xf32>
    %9 = vector.shape_cast %8 : vector<64xf32> to vector<64x1xf32>
    %10 = vector.broadcast %9 : vector<64x1xf32> to vector<64x64xf32>
    %11 = arith.subf %7, %10 : vector<64x64xf32>
    %12 = math.exp %11 : vector<64x64xf32>
    %cst_4 = arith.constant dense<0.000000e+00> : vector<64xf32>
    %13 = vector.multi_reduction <add>, %12, %cst_4 [1] : vector<64x64xf32> to vector<64xf32>
    %14 = vector.shape_cast %13 : vector<64xf32> to vector<64x1xf32>
    %15 = vector.broadcast %14 : vector<64x1xf32> to vector<64x64xf32>
    %16 = arith.divf %12, %15 : vector<64x64xf32>
    %17 = arith.truncf %16 : vector<64x64xf32> to vector<64x64xbf16>
    %cst_5 = arith.constant dense<0.000000e+00> : vector<64x64xf32>
    %18 = tpu.matmul %2, %17, %cst_5 {dimension_numbers = #tpu.dot_dimension_numbers<[1], [1], [0], [0], [0, 0, 1, 0], [], []>} : vector<64x64xbf16>, vector<64x64xbf16>, vector<64x64xf32> -> vector<64x64xf32>
    %c0_6 = arith.constant 0 : index
    %19 = memref.load %arg2[%c0_6] : memref<1xf32, #tpu.memory_space<smem>>
    %20 = vector.broadcast %19 : f32 to vector<64x64xf32>
    %21 = arith.mulf %20, %18 : vector<64x64xf32>
    %22 = arith.addf %21, %1 : vector<64x64xf32>
    %c0_7 = arith.constant 0 : index
    %c0_8 = arith.constant 0 : index
    %c0_9 = arith.constant 0 : index
    %23 = vector.load %arg3[%c0_7, %c0_8, %c0_9] : memref<1x64x64xf32, #tpu.memory_space<vmem>>, vector<1x64x64xf32>
    %24 = vector.shape_cast %23 : vector<1x64x64xf32> to vector<64x64xf32>
    %25 = vector.shape_cast %22 : vector<64x64xf32> to vector<1x64x64xf32>
    tpu.vector_store %arg3[%c0_7, %c0_8, %c0_9], %25 {strides = array<i32>} : memref<1x64x64xf32, #tpu.memory_space<vmem>>, vector<1x64x64xf32>,
    return
  }
  func.func @transform_0(%arg0: i32) -> (i32, i32, i32) {
    %c0_i32 = arith.constant 0 : i32
    %c0_i32_0 = arith.constant 0 : i32
    %c0_i32_1 = arith.constant 0 : i32
    return %arg0, %c0_i32, %c0_i32_0 : i32, i32, i32
  }
  func.func @transform_1(%arg0: i32) -> i32 {
    %c0_i32 = arith.constant 0 : i32
    %c0_i32_0 = arith.constant 0 : i32
    return %c0_i32 : i32
  }
  func.func @transform_2(%arg0: i32) -> (i32, i32, i32) {
    %c0_i32 = arith.constant 0 : i32
    %c0_i32_0 = arith.constant 0 : i32
    %c0_i32_1 = arith.constant 0 : i32
    return %arg0, %c0_i32, %c0_i32_0 : i32, i32, i32
  }
}

module attributes {stable_mosaic.version = 11 : i64} {
  func.func @_conv3x3_dual_kernel(%arg0: i32, %arg1: memref<128x144xbf16, #tpu.memory_space<vmem>>, %arg2: memref<144x64xbf16, #tpu.memory_space<vmem>>, %arg3: memref<1x64xf32, #tpu.memory_space<vmem>>, %arg4: memref<144x64xbf16, #tpu.memory_space<vmem>>, %arg5: memref<1x64xf32, #tpu.memory_space<vmem>>, %arg6: memref<128x64xf32, #tpu.memory_space<vmem>>, %arg7: memref<128x64xf32, #tpu.memory_space<vmem>>) attributes {dimension_semantics = [#tpu.dimension_semantics<parallel>], iteration_bounds = array<i64: 1>, scalar_prefetch = 0 : i64, scratch_operands = 0 : i64, tpu.core_type = #tpu.core_type<tc>, window_params = [{transform_indices = @transform_0, window_bounds = array<i64: 128, 144>}, {pipeline_mode = #tpu.pipeline_mode<synchronous>, transform_indices = @transform_1, window_bounds = array<i64: 144, 64>}, {pipeline_mode = #tpu.pipeline_mode<synchronous>, transform_indices = @transform_2, window_bounds = array<i64: 1, 64>}, {pipeline_mode = #tpu.pipeline_mode<synchronous>, transform_indices = @transform_3, window_bounds = array<i64: 144, 64>}, {pipeline_mode = #tpu.pipeline_mode<synchronous>, transform_indices = @transform_4, window_bounds = array<i64: 1, 64>}, {transform_indices = @transform_5, window_bounds = array<i64: 128, 64>}, {transform_indices = @transform_6, window_bounds = array<i64: 128, 64>}]} {
    %c0 = arith.constant 0 : index
    %c0_0 = arith.constant 0 : index
    %0 = vector.load %arg1[%c0, %c0_0] : memref<128x144xbf16, #tpu.memory_space<vmem>>, vector<128x144xbf16>
    %c0_1 = arith.constant 0 : index
    %c0_2 = arith.constant 0 : index
    %1 = vector.load %arg2[%c0_1, %c0_2] : memref<144x64xbf16, #tpu.memory_space<vmem>>, vector<144x64xbf16>
    %cst = arith.constant dense<0.000000e+00> : vector<128x64xf32>
    %2 = tpu.matmul %0, %1, %cst {dimension_numbers = #tpu.dot_dimension_numbers<[1], [0], [0], [1], [0, 0, 1, 1], [], []>} : vector<128x144xbf16>, vector<144x64xbf16>, vector<128x64xf32> -> vector<128x64xf32>
    %c0_3 = arith.constant 0 : index
    %c0_4 = arith.constant 0 : index
    %3 = vector.load %arg3[%c0_3, %c0_4] : memref<1x64xf32, #tpu.memory_space<vmem>>, vector<1x64xf32>
    %4 = vector.broadcast %3 : vector<1x64xf32> to vector<128x64xf32>
    %5 = arith.addf %2, %4 : vector<128x64xf32>
    %c0_5 = arith.constant 0 : index
    %c0_6 = arith.constant 0 : index
    %6 = vector.load %arg6[%c0_5, %c0_6] : memref<128x64xf32, #tpu.memory_space<vmem>>, vector<128x64xf32>
    tpu.vector_store %arg6[%c0_5, %c0_6], %5 {strides = array<i32>} : memref<128x64xf32, #tpu.memory_space<vmem>>, vector<128x64xf32>,
    %c0_7 = arith.constant 0 : index
    %c0_8 = arith.constant 0 : index
    %7 = vector.load %arg4[%c0_7, %c0_8] : memref<144x64xbf16, #tpu.memory_space<vmem>>, vector<144x64xbf16>
    %cst_9 = arith.constant dense<0.000000e+00> : vector<128x64xf32>
    %8 = tpu.matmul %0, %7, %cst_9 {dimension_numbers = #tpu.dot_dimension_numbers<[1], [0], [0], [1], [0, 0, 1, 1], [], []>} : vector<128x144xbf16>, vector<144x64xbf16>, vector<128x64xf32> -> vector<128x64xf32>
    %c0_10 = arith.constant 0 : index
    %c0_11 = arith.constant 0 : index
    %9 = vector.load %arg5[%c0_10, %c0_11] : memref<1x64xf32, #tpu.memory_space<vmem>>, vector<1x64xf32>
    %10 = vector.broadcast %9 : vector<1x64xf32> to vector<128x64xf32>
    %11 = arith.addf %8, %10 : vector<128x64xf32>
    %c0_12 = arith.constant 0 : index
    %c0_13 = arith.constant 0 : index
    %12 = vector.load %arg7[%c0_12, %c0_13] : memref<128x64xf32, #tpu.memory_space<vmem>>, vector<128x64xf32>
    tpu.vector_store %arg7[%c0_12, %c0_13], %11 {strides = array<i32>} : memref<128x64xf32, #tpu.memory_space<vmem>>, vector<128x64xf32>,
    return
  }
  func.func @transform_0(%arg0: i32) -> (i32, i32) {
    %c0_i32 = arith.constant 0 : i32
    %c0_i32_0 = arith.constant 0 : i32
    return %arg0, %c0_i32 : i32, i32
  }
  func.func @transform_1(%arg0: i32) -> (i32, i32) {
    %c0_i32 = arith.constant 0 : i32
    %c0_i32_0 = arith.constant 0 : i32
    %c0_i32_1 = arith.constant 0 : i32
    return %c0_i32, %c0_i32_0 : i32, i32
  }
  func.func @transform_2(%arg0: i32) -> (i32, i32) {
    %c0_i32 = arith.constant 0 : i32
    %c0_i32_0 = arith.constant 0 : i32
    %c0_i32_1 = arith.constant 0 : i32
    return %c0_i32, %c0_i32_0 : i32, i32
  }
  func.func @transform_3(%arg0: i32) -> (i32, i32) {
    %c0_i32 = arith.constant 0 : i32
    %c0_i32_0 = arith.constant 0 : i32
    %c0_i32_1 = arith.constant 0 : i32
    return %c0_i32, %c0_i32_0 : i32, i32
  }
  func.func @transform_4(%arg0: i32) -> (i32, i32) {
    %c0_i32 = arith.constant 0 : i32
    %c0_i32_0 = arith.constant 0 : i32
    %c0_i32_1 = arith.constant 0 : i32
    return %c0_i32, %c0_i32_0 : i32, i32
  }
  func.func @transform_5(%arg0: i32) -> (i32, i32) {
    %c0_i32 = arith.constant 0 : i32
    %c0_i32_0 = arith.constant 0 : i32
    return %arg0, %c0_i32 : i32, i32
  }
  func.func @transform_6(%arg0: i32) -> (i32, i32) {
    %c0_i32 = arith.constant 0 : i32
    %c0_i32_0 = arith.constant 0 : i32
    return %arg0, %c0_i32 : i32, i32
  }
}

module attributes {stable_mosaic.version = 11 : i64} {
  func.func @_pam_kernel(%arg0: i32, %arg1: memref<1x64x64xf32, #tpu.memory_space<vmem>>, %arg2: memref<64x8xbf16, #tpu.memory_space<vmem>>, %arg3: memref<1x8xf32, #tpu.memory_space<vmem>>, %arg4: memref<64x8xbf16, #tpu.memory_space<vmem>>, %arg5: memref<1x8xf32, #tpu.memory_space<vmem>>, %arg6: memref<64x64xbf16, #tpu.memory_space<vmem>>, %arg7: memref<1x64xf32, #tpu.memory_space<vmem>>, %arg8: memref<1xf32, #tpu.memory_space<smem>>, %arg9: memref<1x64x64xf32, #tpu.memory_space<vmem>>) attributes {dimension_semantics = [#tpu.dimension_semantics<parallel>], iteration_bounds = array<i64: 2>, scalar_prefetch = 0 : i64, scratch_operands = 0 : i64, tpu.core_type = #tpu.core_type<tc>, window_params = [{transform_indices = @transform_0, window_bounds = array<i64: 1, 64, 64>}, {pipeline_mode = #tpu.pipeline_mode<synchronous>, transform_indices = @transform_1, window_bounds = array<i64: 64, 8>}, {pipeline_mode = #tpu.pipeline_mode<synchronous>, transform_indices = @transform_2, window_bounds = array<i64: 1, 8>}, {pipeline_mode = #tpu.pipeline_mode<synchronous>, transform_indices = @transform_3, window_bounds = array<i64: 64, 8>}, {pipeline_mode = #tpu.pipeline_mode<synchronous>, transform_indices = @transform_4, window_bounds = array<i64: 1, 8>}, {pipeline_mode = #tpu.pipeline_mode<synchronous>, transform_indices = @transform_5, window_bounds = array<i64: 64, 64>}, {pipeline_mode = #tpu.pipeline_mode<synchronous>, transform_indices = @transform_6, window_bounds = array<i64: 1, 64>}, {transform_indices = @transform_7, window_bounds = array<i64: 1>}, {transform_indices = @transform_8, window_bounds = array<i64: 1, 64, 64>}]} {
    %c0 = arith.constant 0 : index
    %c0_0 = arith.constant 0 : index
    %c0_1 = arith.constant 0 : index
    %0 = vector.load %arg1[%c0, %c0_0, %c0_1] : memref<1x64x64xf32, #tpu.memory_space<vmem>>, vector<1x64x64xf32>
    %1 = vector.shape_cast %0 : vector<1x64x64xf32> to vector<64x64xf32>
    %2 = arith.truncf %1 : vector<64x64xf32> to vector<64x64xbf16>
    %c0_2 = arith.constant 0 : index
    %c0_3 = arith.constant 0 : index
    %3 = vector.load %arg2[%c0_2, %c0_3] : memref<64x8xbf16, #tpu.memory_space<vmem>>, vector<64x8xbf16>
    %cst = arith.constant dense<0.000000e+00> : vector<64x8xf32>
    %4 = tpu.matmul %2, %3, %cst {dimension_numbers = #tpu.dot_dimension_numbers<[1], [0], [0], [1], [0, 0, 1, 1], [], []>} : vector<64x64xbf16>, vector<64x8xbf16>, vector<64x8xf32> -> vector<64x8xf32>
    %c0_4 = arith.constant 0 : index
    %c0_5 = arith.constant 0 : index
    %5 = vector.load %arg3[%c0_4, %c0_5] : memref<1x8xf32, #tpu.memory_space<vmem>>, vector<1x8xf32>
    %6 = vector.broadcast %5 : vector<1x8xf32> to vector<64x8xf32>
    %7 = arith.addf %4, %6 : vector<64x8xf32>
    %c0_6 = arith.constant 0 : index
    %c0_7 = arith.constant 0 : index
    %8 = vector.load %arg4[%c0_6, %c0_7] : memref<64x8xbf16, #tpu.memory_space<vmem>>, vector<64x8xbf16>
    %cst_8 = arith.constant dense<0.000000e+00> : vector<64x8xf32>
    %9 = tpu.matmul %2, %8, %cst_8 {dimension_numbers = #tpu.dot_dimension_numbers<[1], [0], [0], [1], [0, 0, 1, 1], [], []>} : vector<64x64xbf16>, vector<64x8xbf16>, vector<64x8xf32> -> vector<64x8xf32>
    %c0_9 = arith.constant 0 : index
    %c0_10 = arith.constant 0 : index
    %10 = vector.load %arg5[%c0_9, %c0_10] : memref<1x8xf32, #tpu.memory_space<vmem>>, vector<1x8xf32>
    %11 = vector.broadcast %10 : vector<1x8xf32> to vector<64x8xf32>
    %12 = arith.addf %9, %11 : vector<64x8xf32>
    %c0_11 = arith.constant 0 : index
    %c0_12 = arith.constant 0 : index
    %13 = vector.load %arg6[%c0_11, %c0_12] : memref<64x64xbf16, #tpu.memory_space<vmem>>, vector<64x64xbf16>
    %cst_13 = arith.constant dense<0.000000e+00> : vector<64x64xf32>
    %14 = tpu.matmul %2, %13, %cst_13 {dimension_numbers = #tpu.dot_dimension_numbers<[1], [0], [0], [1], [0, 0, 1, 1], [], []>} : vector<64x64xbf16>, vector<64x64xbf16>, vector<64x64xf32> -> vector<64x64xf32>
    %c0_14 = arith.constant 0 : index
    %c0_15 = arith.constant 0 : index
    %15 = vector.load %arg7[%c0_14, %c0_15] : memref<1x64xf32, #tpu.memory_space<vmem>>, vector<1x64xf32>
    %16 = vector.broadcast %15 : vector<1x64xf32> to vector<64x64xf32>
    %17 = arith.addf %14, %16 : vector<64x64xf32>
    %18 = arith.truncf %7 : vector<64x8xf32> to vector<64x8xbf16>
    %19 = arith.truncf %12 : vector<64x8xf32> to vector<64x8xbf16>
    %cst_16 = arith.constant dense<0.000000e+00> : vector<64x64xf32>
    %20 = tpu.matmul %18, %19, %cst_16 {dimension_numbers = #tpu.dot_dimension_numbers<[1], [1], [0], [0], [0, 0, 1, 0], [], []>} : vector<64x8xbf16>, vector<64x8xbf16>, vector<64x64xf32> -> vector<64x64xf32>
    %cst_17 = arith.constant dense<0xFF800000> : vector<64xf32>
    %21 = vector.multi_reduction <maximumf>, %20, %cst_17 [1] : vector<64x64xf32> to vector<64xf32>
    %22 = vector.shape_cast %21 : vector<64xf32> to vector<64x1xf32>
    %23 = vector.broadcast %22 : vector<64x1xf32> to vector<64x64xf32>
    %24 = arith.subf %20, %23 : vector<64x64xf32>
    %25 = math.exp %24 : vector<64x64xf32>
    %cst_18 = arith.constant dense<0.000000e+00> : vector<64xf32>
    %26 = vector.multi_reduction <add>, %25, %cst_18 [1] : vector<64x64xf32> to vector<64xf32>
    %27 = vector.shape_cast %26 : vector<64xf32> to vector<64x1xf32>
    %28 = vector.broadcast %27 : vector<64x1xf32> to vector<64x64xf32>
    %29 = arith.divf %25, %28 : vector<64x64xf32>
    %30 = arith.truncf %29 : vector<64x64xf32> to vector<64x64xbf16>
    %31 = arith.truncf %17 : vector<64x64xf32> to vector<64x64xbf16>
    %cst_19 = arith.constant dense<0.000000e+00> : vector<64x64xf32>
    %32 = tpu.matmul %30, %31, %cst_19 {dimension_numbers = #tpu.dot_dimension_numbers<[1], [0], [0], [1], [0, 0, 1, 1], [], []>} : vector<64x64xbf16>, vector<64x64xbf16>, vector<64x64xf32> -> vector<64x64xf32>
    %c0_20 = arith.constant 0 : index
    %33 = memref.load %arg8[%c0_20] : memref<1xf32, #tpu.memory_space<smem>>
    %34 = vector.broadcast %33 : f32 to vector<64x64xf32>
    %35 = arith.mulf %34, %32 : vector<64x64xf32>
    %36 = arith.addf %35, %1 : vector<64x64xf32>
    %c0_21 = arith.constant 0 : index
    %c0_22 = arith.constant 0 : index
    %c0_23 = arith.constant 0 : index
    %37 = vector.load %arg9[%c0_21, %c0_22, %c0_23] : memref<1x64x64xf32, #tpu.memory_space<vmem>>, vector<1x64x64xf32>
    %38 = vector.shape_cast %37 : vector<1x64x64xf32> to vector<64x64xf32>
    %39 = vector.shape_cast %36 : vector<64x64xf32> to vector<1x64x64xf32>
    tpu.vector_store %arg9[%c0_21, %c0_22, %c0_23], %39 {strides = array<i32>} : memref<1x64x64xf32, #tpu.memory_space<vmem>>, vector<1x64x64xf32>,
    return
  }
  func.func @transform_0(%arg0: i32) -> (i32, i32, i32) {
    %c0_i32 = arith.constant 0 : i32
    %c0_i32_0 = arith.constant 0 : i32
    %c0_i32_1 = arith.constant 0 : i32
    return %arg0, %c0_i32, %c0_i32_0 : i32, i32, i32
  }
  func.func @transform_1(%arg0: i32) -> (i32, i32) {
    %c0_i32 = arith.constant 0 : i32
    %c0_i32_0 = arith.constant 0 : i32
    %c0_i32_1 = arith.constant 0 : i32
    return %c0_i32, %c0_i32_0 : i32, i32
  }
  func.func @transform_2(%arg0: i32) -> (i32, i32) {
    %c0_i32 = arith.constant 0 : i32
    %c0_i32_0 = arith.constant 0 : i32
    %c0_i32_1 = arith.constant 0 : i32
    return %c0_i32, %c0_i32_0 : i32, i32
  }
  func.func @transform_3(%arg0: i32) -> (i32, i32) {
    %c0_i32 = arith.constant 0 : i32
    %c0_i32_0 = arith.constant 0 : i32
    %c0_i32_1 = arith.constant 0 : i32
    return %c0_i32, %c0_i32_0 : i32, i32
  }
  func.func @transform_4(%arg0: i32) -> (i32, i32) {
    %c0_i32 = arith.constant 0 : i32
    %c0_i32_0 = arith.constant 0 : i32
    %c0_i32_1 = arith.constant 0 : i32
    return %c0_i32, %c0_i32_0 : i32, i32
  }
  func.func @transform_5(%arg0: i32) -> (i32, i32) {
    %c0_i32 = arith.constant 0 : i32
    %c0_i32_0 = arith.constant 0 : i32
    %c0_i32_1 = arith.constant 0 : i32
    return %c0_i32, %c0_i32_0 : i32, i32
  }
  func.func @transform_6(%arg0: i32) -> (i32, i32) {
    %c0_i32 = arith.constant 0 : i32
    %c0_i32_0 = arith.constant 0 : i32
    %c0_i32_1 = arith.constant 0 : i32
    return %c0_i32, %c0_i32_0 : i32, i32
  }
  func.func @transform_7(%arg0: i32) -> i32 {
    %c0_i32 = arith.constant 0 : i32
    %c0_i32_0 = arith.constant 0 : i32
    return %c0_i32 : i32
  }
  func.func @transform_8(%arg0: i32) -> (i32, i32, i32) {
    %c0_i32 = arith.constant 0 : i32
    %c0_i32_0 = arith.constant 0 : i32
    %c0_i32_1 = arith.constant 0 : i32
    return %arg0, %c0_i32, %c0_i32_0 : i32, i32, i32
  }
}

module attributes {stable_mosaic.version = 11 : i64} {
  func.func @_conv3x3_sum_kernel(%arg0: i32, %arg1: memref<128x576xbf16, #tpu.memory_space<vmem>>, %arg2: memref<576x64xbf16, #tpu.memory_space<vmem>>, %arg3: memref<1x64xf32, #tpu.memory_space<vmem>>, %arg4: memref<128x576xbf16, #tpu.memory_space<vmem>>, %arg5: memref<576x64xbf16, #tpu.memory_space<vmem>>, %arg6: memref<1x64xf32, #tpu.memory_space<vmem>>, %arg7: memref<128x64xf32, #tpu.memory_space<vmem>>) attributes {dimension_semantics = [#tpu.dimension_semantics<parallel>], iteration_bounds = array<i64: 1>, scalar_prefetch = 0 : i64, scratch_operands = 0 : i64, tpu.core_type = #tpu.core_type<tc>, window_params = [{transform_indices = @transform_0, window_bounds = array<i64: 128, 576>}, {pipeline_mode = #tpu.pipeline_mode<synchronous>, transform_indices = @transform_1, window_bounds = array<i64: 576, 64>}, {pipeline_mode = #tpu.pipeline_mode<synchronous>, transform_indices = @transform_2, window_bounds = array<i64: 1, 64>}, {transform_indices = @transform_3, window_bounds = array<i64: 128, 576>}, {pipeline_mode = #tpu.pipeline_mode<synchronous>, transform_indices = @transform_4, window_bounds = array<i64: 576, 64>}, {pipeline_mode = #tpu.pipeline_mode<synchronous>, transform_indices = @transform_5, window_bounds = array<i64: 1, 64>}, {transform_indices = @transform_6, window_bounds = array<i64: 128, 64>}]} {
    %c0 = arith.constant 0 : index
    %c0_0 = arith.constant 0 : index
    %0 = vector.load %arg1[%c0, %c0_0] : memref<128x576xbf16, #tpu.memory_space<vmem>>, vector<128x576xbf16>
    %c0_1 = arith.constant 0 : index
    %c0_2 = arith.constant 0 : index
    %1 = vector.load %arg2[%c0_1, %c0_2] : memref<576x64xbf16, #tpu.memory_space<vmem>>, vector<576x64xbf16>
    %cst = arith.constant dense<0.000000e+00> : vector<128x64xf32>
    %2 = tpu.matmul %0, %1, %cst {dimension_numbers = #tpu.dot_dimension_numbers<[1], [0], [0], [1], [0, 0, 1, 1], [], []>} : vector<128x576xbf16>, vector<576x64xbf16>, vector<128x64xf32> -> vector<128x64xf32>
    %c0_3 = arith.constant 0 : index
    %c0_4 = arith.constant 0 : index
    %3 = vector.load %arg3[%c0_3, %c0_4] : memref<1x64xf32, #tpu.memory_space<vmem>>, vector<1x64xf32>
    %4 = vector.broadcast %3 : vector<1x64xf32> to vector<128x64xf32>
    %5 = arith.addf %2, %4 : vector<128x64xf32>
    %c0_5 = arith.constant 0 : index
    %c0_6 = arith.constant 0 : index
    %6 = vector.load %arg4[%c0_5, %c0_6] : memref<128x576xbf16, #tpu.memory_space<vmem>>, vector<128x576xbf16>
    %c0_7 = arith.constant 0 : index
    %c0_8 = arith.constant 0 : index
    %7 = vector.load %arg5[%c0_7, %c0_8] : memref<576x64xbf16, #tpu.memory_space<vmem>>, vector<576x64xbf16>
    %cst_9 = arith.constant dense<0.000000e+00> : vector<128x64xf32>
    %8 = tpu.matmul %6, %7, %cst_9 {dimension_numbers = #tpu.dot_dimension_numbers<[1], [0], [0], [1], [0, 0, 1, 1], [], []>} : vector<128x576xbf16>, vector<576x64xbf16>, vector<128x64xf32> -> vector<128x64xf32>
    %9 = arith.addf %5, %8 : vector<128x64xf32>
    %c0_10 = arith.constant 0 : index
    %c0_11 = arith.constant 0 : index
    %10 = vector.load %arg6[%c0_10, %c0_11] : memref<1x64xf32, #tpu.memory_space<vmem>>, vector<1x64xf32>
    %11 = vector.broadcast %10 : vector<1x64xf32> to vector<128x64xf32>
    %12 = arith.addf %9, %11 : vector<128x64xf32>
    %c0_12 = arith.constant 0 : index
    %c0_13 = arith.constant 0 : index
    %13 = vector.load %arg7[%c0_12, %c0_13] : memref<128x64xf32, #tpu.memory_space<vmem>>, vector<128x64xf32>
    tpu.vector_store %arg7[%c0_12, %c0_13], %12 {strides = array<i32>} : memref<128x64xf32, #tpu.memory_space<vmem>>, vector<128x64xf32>,
    return
  }
  func.func @transform_0(%arg0: i32) -> (i32, i32) {
    %c0_i32 = arith.constant 0 : i32
    %c0_i32_0 = arith.constant 0 : i32
    return %arg0, %c0_i32 : i32, i32
  }
  func.func @transform_1(%arg0: i32) -> (i32, i32) {
    %c0_i32 = arith.constant 0 : i32
    %c0_i32_0 = arith.constant 0 : i32
    %c0_i32_1 = arith.constant 0 : i32
    return %c0_i32, %c0_i32_0 : i32, i32
  }
  func.func @transform_2(%arg0: i32) -> (i32, i32) {
    %c0_i32 = arith.constant 0 : i32
    %c0_i32_0 = arith.constant 0 : i32
    %c0_i32_1 = arith.constant 0 : i32
    return %c0_i32, %c0_i32_0 : i32, i32
  }
  func.func @transform_3(%arg0: i32) -> (i32, i32) {
    %c0_i32 = arith.constant 0 : i32
    %c0_i32_0 = arith.constant 0 : i32
    return %arg0, %c0_i32 : i32, i32
  }
  func.func @transform_4(%arg0: i32) -> (i32, i32) {
    %c0_i32 = arith.constant 0 : i32
    %c0_i32_0 = arith.constant 0 : i32
    %c0_i32_1 = arith.constant 0 : i32
    return %c0_i32, %c0_i32_0 : i32, i32
  }
  func.func @transform_5(%arg0: i32) -> (i32, i32) {
    %c0_i32 = arith.constant 0 : i32
    %c0_i32_0 = arith.constant 0 : i32
    %c0_i32_1 = arith.constant 0 : i32
    return %c0_i32, %c0_i32_0 : i32, i32
  }
  func.func @transform_6(%arg0: i32) -> (i32, i32) {
    %c0_i32 = arith.constant 0 : i32
    %c0_i32_0 = arith.constant 0 : i32
    return %arg0, %c0_i32 : i32, i32
  }
}

</mosaic_0001>

<llo_original>
// kernel: da_forward.6
$region0: #{da_forward.6}
  #allocation0 [shape = 'u32[]', space=smem, size = 0x4, offset = 0x4, fixed_abs, tag = 'smem constant byte address 0x4 - core index']
  #allocation1 [shape = 'u32[144,128]{1,0:T(1,128)}', space=vmem, size = 0x12000, scoped, tag = 'internal scratch']
  #allocation2 [shape = 'f32[1]{0:T(128)S(6)}', space=smem, size = 0x200, scoped, tag = 'scoped memory for da_forward.6']
  %s0 = inlined_call_operand.vmem [shape: f32[2,64,64], index: 0, kind: input, shape index: {}]
  %s1 = inlined_call_operand.<no memory space> [shape: f32[1], index: 1, kind: input, shape index: {}]
  %s2 = inlined_call_operand.vmem [shape: f32[2,64,64], index: 2, kind: output, shape index: {}]
  %s3 = sld [smem:[#allocation0]]
  $region41: #{da_forward.6} parent=0
    _
  %s5 = ssub.s32 1, %s3
  %s6 = scalar_select 0, %s5, %s3
  %7 = sst [smem:[#allocation2]] %s1
  loop: start=0, step=1, limit=4
  $region2: #{da_forward.6} parent=0 // loop_pre_header
    _
  $region3: #{da_forward.6} parent=0 // loop_header
    %s9 = sphi 0, %s13
    %p10 = scmp.ge.s32.totalorder %s9, 4
    %s19 = sphi 0, %s21
    %s22 = sphi 0, %s19
    %s23 = sphi 0, %s22
    %s39 = sphi 0, %s23
    %s43 = sphi 0, %s43
    %s45 = sphi 0, %s43
    %s46 = sphi 0, %s45
    %s60 = sphi 0, %s46
    %s66 = sphi 0, %s68
    %s69 = sphi 0, %s66
    %s70 = sphi 0, %s69
    %s86 = sphi 0, %s70
  $region4: #{da_forward.6} parent=0 // loop_header_branch
    %12 = sbr.rel (%p10) target = $region8
  $region5: #{da_forward.6} parent=0 // loop_body
    %s14 = ssub.s32 %s9, 1
    %s15 = ssub.s32 %s9, 2
    %s16 = sadd.s32 %s9, 1
    %s17 = ssub.s32 %s9, %s16
    %p18 = scmp.eq.s32.totalorder %s17, 0
    %s20 = sadd.s32 %s19, 1
    %s21 = scalar_select %p18, %s19, %s20
    %p24 = pneg %p18
    %p25 = scmp.eq.s32.totalorder %s9, 1
    %p26 = por %p24, %p25
    %p27 = scmp.ne.s32.totalorder %s19, %s22
    %p28 = scmp.eq.s32.totalorder %s9, 0
    %p29 = por %p27, %p28
    %p30 = scmp.ne.s32.totalorder %s19, %s22
    %p31 = scmp.eq.s32.totalorder %s14, 1
    %p32 = por %p30, %p31
    %p33 = scmp.ne.s32.totalorder %s22, %s23
    %p34 = scmp.eq.s32.totalorder %s14, 0
    %p35 = por %p33, %p34
    %p36 = scmp.ne.s32.totalorder %s22, %s23
    %p37 = scmp.eq.s32.totalorder %s15, 1
    %p38 = por %p36, %p37
    %p40 = scmp.ne.s32.totalorder %s23, %s39
    %p41 = scmp.eq.s32.totalorder %s15, 0
    %p42 = por %p40, %p41
    %s44 = sadd.s32 %s43, 1
    %p47 = scmp.eq.s32.totalorder %s9, 1
    %p48 = scmp.ne.s32.totalorder %s43, %s45
    %p49 = scmp.eq.s32.totalorder %s9, 0
    %p50 = por %p48, %p49
    %p51 = scmp.ne.s32.totalorder %s43, %s45
    %p52 = scmp.eq.s32.totalorder %s14, 1
    %p53 = por %p51, %p52
    %p54 = scmp.ne.s32.totalorder %s45, %s46
    %p55 = scmp.eq.s32.totalorder %s14, 0
    %p56 = por %p54, %p55
    %p57 = scmp.ne.s32.totalorder %s45, %s46
    %p58 = scmp.eq.s32.totalorder %s15, 1
    %p59 = por %p57, %p58
    %p61 = scmp.ne.s32.totalorder %s46, %s60
    %p62 = scmp.eq.s32.totalorder %s15, 0
    %p63 = por %p61, %p62
    %s64 = ssub.s32 %s9, %s16
    %p65 = scmp.eq.s32.totalorder %s64, 0
    %s67 = sadd.s32 %s66, 1
    %s68 = scalar_select %p65, %s66, %s67
    %p71 = pneg %p65
    %p72 = scmp.eq.s32.totalorder %s9, 1
    %p73 = por %p71, %p72
    %p74 = scmp.ne.s32.totalorder %s66, %s69
    %p75 = scmp.eq.s32.totalorder %s9, 0
    %p76 = por %p74, %p75
    %p77 = scmp.ne.s32.totalorder %s66, %s69
    %p78 = scmp.eq.s32.totalorder %s14, 1
    %p79 = por %p77, %p78
    %p80 = scmp.ne.s32.totalorder %s69, %s70
    %p81 = scmp.eq.s32.totalorder %s14, 0
    %p82 = por %p80, %p81
    %p83 = scmp.ne.s32.totalorder %s69, %s70
    %p84 = scmp.eq.s32.totalorder %s15, 1
    %p85 = por %p83, %p84
    %p87 = scmp.ne.s32.totalorder %s70, %s86
    %p88 = scmp.eq.s32.totalorder %s15, 0
    %p89 = por %p87, %p88
    %p90 = scmp.le.s32.totalorder 1, %s9
    %p91 = scmp.lt.s32.totalorder %s9, 3
    %p92 = pnand %p90, %p91
    %p93 = pneg %p92
    // Predicated region
    $region9: #{da_forward.6} parent=5 // pred_check
      _
    $region10: #{da_forward.6} parent=5 // pred_check_branch
      %95 = sbr.rel (%p92) target = $region12
    $region11: #{da_forward.6} parent=5 // pred_region
      %s96 = ssub.s32 %s9, 1
      // Predicated region
      $region13: #{da_forward.6} parent=11 // pred_check
        %p97 = pneg %p56
      $region14: #{da_forward.6} parent=11 // pred_check_branch
        %99 = sbr.rel (%p97) target = $region16
      $region15: #{da_forward.6} parent=11 // pred_region
        _
      $region16: #{da_forward.6} parent=11 // pred_fallthru
        _
    $region12: #{da_forward.6} parent=5 // pred_fallthru
      _
    %p100 = scmp.lt.s32.totalorder %s9, 2
    // Predicated region
    $region17: #{da_forward.6} parent=5 // pred_check
      %p101 = pneg %p100
    $region18: #{da_forward.6} parent=5 // pred_check_branch
      %103 = sbr.rel (%p101) target = $region20
    $region19: #{da_forward.6} parent=5 // pred_region
      // Predicated region
      $region21: #{da_forward.6} parent=19 // pred_check
        %p104 = pneg %p29
      $region22: #{da_forward.6} parent=19 // pred_check_branch
        %106 = sbr.rel (%p104) target = $region24
      $region23: #{da_forward.6} parent=19 // pred_region
        %p107 = scmp.lt.s32.totalorder %s9, 1
        %s108 = scalar_select %p107, %s9, 1
        %s109 = smul.addr %s108, 8
        %s110 = smul.addr %s109, 8
        %s111 = scalar_lea.vmem %s0, %s110
      $region24: #{da_forward.6} parent=19 // pred_fallthru
        _
    $region20: #{da_forward.6} parent=5 // pred_fallthru
      _
    %p112 = scmp.le.s32.totalorder 1, %s9
    %p113 = scmp.lt.s32.totalorder %s9, 3
    %p114 = pnand %p112, %p113
    %p115 = pneg %p114
    // Predicated region
    $region25: #{da_forward.6} parent=5 // pred_check
      _
    $region26: #{da_forward.6} parent=5 // pred_check_branch
      %117 = sbr.rel (%p114) target = $region28
    $region27: #{da_forward.6} parent=5 // pred_region
      %s118 = ssub.s32 %s9, 1
      %p119 = scmp.lt.s32.totalorder %s14, 1
      %s120 = scalar_select %p119, %s14, 1
      %s121 = smul.addr %s120, 8
      %s122 = smul.addr %s121, 8
      %s123 = scalar_lea.vmem %s0, %s122
      %p124 = pneg %p35
      %p125 = pneg %p32
      %p126 = pneg %p56
      %p127 = pneg %p53
      %p128 = pneg %p82
      %p129 = pneg %p79
      %p130 = scmp.lt.s32.totalorder %s14, 1
      %s131 = scalar_select %p130, %s14, 1
      %s132 = smul.addr %s131, 8
      %s133 = smul.addr %s132, 8
      %s134 = scalar_lea.vmem %s2, %s133
      %p135 = scmp.lt.s32.totalorder %s14, 1
      %s136 = scalar_select %p135, %s14, 1
      %s137 = smul.addr %s136, 8
      %s138 = smul.addr %s137, 8
      %s139 = scalar_lea.vmem %s0, %s138
      %p140 = scmp.lt.s32.totalorder %s14, 1
      %s141 = scalar_select %p140, %s14, 1
      %s142 = smul.addr %s141, 8
      %s143 = smul.addr %s142, 8
      %s144 = scalar_lea.vmem %s2, %s143
      %v146 = vld [vmem:[%s139] sm:$0xff]
      %v147 = vld [vmem:[%s139 + $0x8] sm:$0xff]
      %v148 = vld [vmem:[%s139 + $0x10] sm:$0xff]
      %v149 = vld [vmem:[%s139 + $0x18] sm:$0xff]
      %v150 = vld [vmem:[%s139 + $0x20] sm:$0xff]
      %v151 = vld [vmem:[%s139 + $0x28] sm:$0xff]
      %v152 = vld [vmem:[%s139 + $0x30] sm:$0xff]
      %v153 = vld [vmem:[%s139 + $0x38] sm:$0xff]
      %v154 = vpack.c.bf16 %v147, %v146
      %v155 = vpack.c.bf16 %v149, %v148
      %v156 = vpack.c.bf16 %v151, %v150
      %v157 = vpack.c.bf16 %v153, %v152
      %158 = vxpose.xlu0.c.b16.start [1/8] %v154, 128
      %159 = vxpose.xlu0.c.b16.cont [2/8] %v155, 128
      %160 = vxpose.xlu0.c.b16.cont [3/8] %v156, 128
      %161 = vxpose.xlu0.c.b16.cont [4/8] %v157, 128
      %162 = vxpose.xlu0.c.b16.cont [5/8] 0, 128
      %163 = vxpose.xlu0.c.b16.cont [6/8] 0, 128
      %164 = vxpose.xlu0.c.b16.cont [7/8] 0, 128
      %165 = vxpose.xlu0.c.b16.end [8/8] 0, 128
      %v166 = vpop.trf.xlu0
      %v167 = vpop.trf.xlu0
      %v168 = vpop.trf.xlu0
      %v169 = vpop.trf.xlu0
      %v170 = vpop.trf.xlu0
      %v171 = vpop.trf.xlu0
      %v172 = vpop.trf.xlu0
      %v173 = vpop.trf.xlu0
      %vm174 = vcmask 523264
      %v176 = vsel %vm174, %v166, 0
      %v179 = vsel %vm174, %v167, 0
      %v182 = vsel %vm174, %v168, 0
      %v185 = vsel %vm174, %v169, 0
      %187 = vmatprep.subr.bf16.mxu0 0
      %188 = vmatpush1.bf16.msra.mxu0 0
      %189 = vmatprep.subr.bf16.mxu0 0
      %190 = vmatpush1.bf16.msra.mxu0 0
      %191 = vmatprep.subr.bf16.mxu0 0
      %192 = vmatpush1.bf16.msra.mxu0 0
      %193 = vmatprep.subr.bf16.mxu0 0
      %194 = vmatpush1.bf16.msra.mxu0 0
      %195 = vmatprep.subr.bf16.mxu0 0
      %196 = vmatpush1.bf16.msra.mxu0 %v157
      %197 = vmatprep.subr.bf16.mxu0 0
      %198 = vmatpush1.bf16.msra.mxu0 %v156
      %199 = vmatprep.subr.bf16.mxu0 0
      %200 = vmatpush1.bf16.msra.mxu0 %v155
      %201 = vmatprep.subr.bf16.mxu0 0
      %202 = vmatpush1.bf16.msra.mxu0 %v154
      %203 = vmatprep.subr.bf16.mxu0 0
      %204 = vmatpush2.bf16.msra.mxu0 0
      %205 = vmatprep.subr.bf16.mxu0 0
      %206 = vmatpush2.bf16.msra.mxu0 0
      %207 = vmatprep.subr.bf16.mxu0 0
      %208 = vmatpush2.bf16.msra.mxu0 0
      %209 = vmatprep.subr.bf16.mxu0 0
      %210 = vmatpush2.bf16.msra.mxu0 0
      %211 = vmatprep.subr.bf16.mxu0 0
      %212 = vmatpush2.bf16.msra.mxu0 0
      %213 = vmatprep.subr.bf16.mxu0 0
      %214 = vmatpush2.bf16.msra.mxu0 0
      %215 = vmatprep.subr.bf16.mxu0 0
      %216 = vmatpush2.bf16.msra.mxu0 0
      %217 = vmatprep.subr.bf16.mxu0 0
      %218 = vmatpush2.bf16.msra.mxu0 0
      %219 = vmatprep.mubr.bf16.mxu0 0
      %220 = vmatmul.mubr.bf16.gmra.mxu0 %v176
      %v221 = vpop.f32.mrf.mxu0
      %v222 = vadd.f32 0.0, %v221
      %v223 = vpop.f32.mrf.mxu0
      %v224 = vpop.f32.mrf.mxu0
      %v225 = vadd.f32 0.0, %v224
      %v226 = vpop.f32.mrf.mxu0
      %227 = vmatprep.mubr.bf16.mxu0 0
      %228 = vmatmul.mubr.bf16.gmra.mxu0 %v179
      %v229 = vpop.f32.mrf.mxu0
      %v230 = vadd.f32 0.0, %v229
      %v231 = vpop.f32.mrf.mxu0
      %v232 = vpop.f32.mrf.mxu0
      %v233 = vadd.f32 0.0, %v232
      %v234 = vpop.f32.mrf.mxu0
      %235 = vmatprep.mubr.bf16.mxu0 0
      %236 = vmatmul.mubr.bf16.gmra.mxu0 %v182
      %v237 = vpop.f32.mrf.mxu0
      %v238 = vadd.f32 0.0, %v237
      %v239 = vpop.f32.mrf.mxu0
      %v240 = vpop.f32.mrf.mxu0
      %v241 = vadd.f32 0.0, %v240
      %v242 = vpop.f32.mrf.mxu0
      %243 = vmatprep.mubr.bf16.mxu0 0
      %244 = vmatmul.mubr.bf16.gmra.mxu0 %v185
      %v245 = vpop.f32.mrf.mxu0
      %v246 = vadd.f32 0.0, %v245
      %v247 = vpop.f32.mrf.mxu0
      %v248 = vpop.f32.mrf.mxu0
      %v249 = vadd.f32 0.0, %v248
      %v250 = vpop.f32.mrf.mxu0
      %251 = vdwg.mxu0
      %v252 = vsel %vm174, %v222, -inf
      %253 = vmax.xlane.f32.xlu0 %v252
      %v254 = vpop.xlane.xlu0 %253
      %v255 = vsel %vm174, %v225, -inf
      %256 = vmax.xlane.f32.xlu0 %v255
      %v257 = vpop.xlane.xlu0 %256
      %v258 = vsel %vm174, %v230, -inf
      %259 = vmax.xlane.f32.xlu0 %v258
      %v260 = vpop.xlane.xlu0 %259
      %v261 = vsel %vm174, %v233, -inf
      %262 = vmax.xlane.f32.xlu0 %v261
      %v263 = vpop.xlane.xlu0 %262
      %v264 = vsel %vm174, %v238, -inf
      %265 = vmax.xlane.f32.xlu0 %v264
      %v266 = vpop.xlane.xlu0 %265
      %v267 = vsel %vm174, %v241, -inf
      %268 = vmax.xlane.f32.xlu0 %v267
      %v269 = vpop.xlane.xlu0 %268
      %v270 = vsel %vm174, %v246, -inf
      %271 = vmax.xlane.f32.xlu0 %v270
      %v272 = vpop.xlane.xlu0 %271
      %v273 = vsel %vm174, %v249, -inf
      %274 = vmax.xlane.f32.xlu0 %v273
      %v275 = vpop.xlane.xlu0 %274
      %v276 = vsub.f32 %v254, %v222
      %v277 = vsub.f32 %v257, %v225
      %v278 = vsub.f32 %v260, %v230
      %v279 = vsub.f32 %v263, %v233
      %v280 = vsub.f32 %v266, %v238
      %v281 = vsub.f32 %v269, %v241
      %v282 = vsub.f32 %v272, %v246
      %v283 = vsub.f32 %v275, %v249
      %v284 = vsel %vm174, %v276, -inf
      %285 = vmax.xlane.f32.xlu0 %v284
      %v286 = vpop.xlane.xlu0 %285
      %v287 = vsel %vm174, %v277, -inf
      %288 = vmax.xlane.f32.xlu0 %v287
      %v289 = vpop.xlane.xlu0 %288
      %v290 = vsel %vm174, %v278, -inf
      %291 = vmax.xlane.f32.xlu0 %v290
      %v292 = vpop.xlane.xlu0 %291
      %v293 = vsel %vm174, %v279, -inf
      %294 = vmax.xlane.f32.xlu0 %v293
      %v295 = vpop.xlane.xlu0 %294
      %v296 = vsel %vm174, %v280, -inf
      %297 = vmax.xlane.f32.xlu0 %v296
      %v298 = vpop.xlane.xlu0 %297
      %v299 = vsel %vm174, %v281, -inf
      %300 = vmax.xlane.f32.xlu0 %v299
      %v301 = vpop.xlane.xlu0 %300
      %v302 = vsel %vm174, %v282, -inf
      %303 = vmax.xlane.f32.xlu0 %v302
      %v304 = vpop.xlane.xlu0 %303
      %v305 = vsel %vm174, %v283, -inf
      %306 = vmax.xlane.f32.xlu0 %v305
      %v307 = vpop.xlane.xlu0 %306
      %v308 = vsub.f32 %v276, %v286
      %v309 = vsub.f32 %v277, %v289
      %v310 = vsub.f32 %v278, %v292
      %v311 = vsub.f32 %v279, %v295
      %v312 = vsub.f32 %v280, %v298
      %v313 = vsub.f32 %v281, %v301
      %v314 = vsub.f32 %v282, %v304
      %v315 = vsub.f32 %v283, %v307
      %v316 = vmul.f32 %v308, 1.442695
      %v317 = vpow.pop %v316
      %v318 = vmul.f32 %v309, 1.442695
      %v319 = vpow.pop %v318
      %v320 = vmul.f32 %v310, 1.442695
      %v321 = vpow.pop %v320
      %v322 = vmul.f32 %v311, 1.442695
      %v323 = vpow.pop %v322
      %v324 = vmul.f32 %v312, 1.442695
      %v325 = vpow.pop %v324
      %v326 = vmul.f32 %v313, 1.442695
      %v327 = vpow.pop %v326
      %v328 = vmul.f32 %v314, 1.442695
      %v329 = vpow.pop %v328
      %v330 = vmul.f32 %v315, 1.442695
      %v331 = vpow.pop %v330
      %v332 = vsel %vm174, %v317, 0.0
      %333 = vadd.xlane.f32.xlu0 %v332
      %v334 = vpop.xlane.xlu0 %333
      %v335 = vsel %vm174, %v319, 0.0
      %336 = vadd.xlane.f32.xlu0 %v335
      %v337 = vpop.xlane.xlu0 %336
      %v338 = vsel %vm174, %v321, 0.0
      %339 = vadd.xlane.f32.xlu0 %v338
      %v340 = vpop.xlane.xlu0 %339
      %v341 = vsel %vm174, %v323, 0.0
      %342 = vadd.xlane.f32.xlu0 %v341
      %v343 = vpop.xlane.xlu0 %342
      %v344 = vsel %vm174, %v325, 0.0
      %345 = vadd.xlane.f32.xlu0 %v344
      %v346 = vpop.xlane.xlu0 %345
      %v347 = vsel %vm174, %v327, 0.0
      %348 = vadd.xlane.f32.xlu0 %v347
      %v349 = vpop.xlane.xlu0 %348
      %v350 = vsel %vm174, %v329, 0.0
      %351 = vadd.xlane.f32.xlu0 %v350
      %v352 = vpop.xlane.xlu0 %351
      %v353 = vsel %vm174, %v331, 0.0
      %354 = vadd.xlane.f32.xlu0 %v353
      %v355 = vpop.xlane.xlu0 %354
      %v356 = vrcp.pop %v334
      %v357 = vmul.f32 %v317, %v356
      %v358 = vrcp.pop %v337
      %v359 = vmul.f32 %v319, %v358
      %v360 = vrcp.pop %v340
      %v361 = vmul.f32 %v321, %v360
      %v362 = vrcp.pop %v343
      %v363 = vmul.f32 %v323, %v362
      %v364 = vrcp.pop %v346
      %v365 = vmul.f32 %v325, %v364
      %v366 = vrcp.pop %v349
      %v367 = vmul.f32 %v327, %v366
      %v368 = vrcp.pop %v352
      %v369 = vmul.f32 %v329, %v368
      %v370 = vrcp.pop %v355
      %v371 = vmul.f32 %v331, %v370
      %v372 = vpack.c.bf16 %v359, %v357
      %v373 = vpack.c.bf16 %v363, %v361
      %v374 = vpack.c.bf16 %v367, %v365
      %v375 = vpack.c.bf16 %v371, %v369
      %v377 = vsel %vm174, %v154, 0
      %v380 = vsel %vm174, %v155, 0
      %v383 = vsel %vm174, %v156, 0
      %v386 = vsel %vm174, %v157, 0
      %v389 = vsel %vm174, %v372, 0
      %v392 = vsel %vm174, %v373, 0
      %v395 = vsel %vm174, %v374, 0
      %v398 = vsel %vm174, %v375, 0
      %400 = vmatprep.subr.bf16.mxu0 0
      %401 = vmatpush1.bf16.xpose.msra.mxu0 0
      %402 = vmatprep.subr.bf16.mxu0 0
      %403 = vmatpush1.bf16.xpose.msra.mxu0 0
      %404 = vmatprep.subr.bf16.mxu0 0
      %405 = vmatpush1.bf16.xpose.msra.mxu0 0
      %406 = vmatprep.subr.bf16.mxu0 0
      %407 = vmatpush1.bf16.xpose.msra.mxu0 0
      %408 = vmatprep.subr.bf16.mxu0 0
      %409 = vmatpush1.bf16.xpose.msra.mxu0 %v398
      %410 = vmatprep.subr.bf16.mxu0 0
      %411 = vmatpush1.bf16.xpose.msra.mxu0 %v395
      %412 = vmatprep.subr.bf16.mxu0 0
      %413 = vmatpush1.bf16.xpose.msra.mxu0 %v392
      %414 = vmatprep.subr.bf16.mxu0 0
      %415 = vmatpush1.bf16.xpose.msra.mxu0 %v389
      %416 = vmatprep.subr.bf16.mxu0 0
      %417 = vmatpush2.bf16.xpose.msra.mxu0 0
      %418 = vmatprep.subr.bf16.mxu0 0
      %419 = vmatpush2.bf16.xpose.msra.mxu0 0
      %420 = vmatprep.subr.bf16.mxu0 0
      %421 = vmatpush2.bf16.xpose.msra.mxu0 0
      %422 = vmatprep.subr.bf16.mxu0 0
      %423 = vmatpush2.bf16.xpose.msra.mxu0 0
      %424 = vmatprep.subr.bf16.mxu0 0
      %425 = vmatpush2.bf16.xpose.msra.mxu0 0
      %426 = vmatprep.subr.bf16.mxu0 0
      %427 = vmatpush2.bf16.xpose.msra.mxu0 0
      %428 = vmatprep.subr.bf16.mxu0 0
      %429 = vmatpush2.bf16.xpose.msra.mxu0 0
      %430 = vmatprep.subr.bf16.mxu0 0
      %431 = vmatpush2.bf16.xpose.msra.mxu0 0
      %432 = vmatprep.mubr.bf16.mxu0 0
      %433 = vmatmul.mubr.bf16.gmra.mxu0 %v377
      %v434 = vpop.f32.mrf.mxu0
      %v435 = vadd.f32 0.0, %v434
      %v436 = vpop.f32.mrf.mxu0
      %v437 = vpop.f32.mrf.mxu0
      %v438 = vadd.f32 0.0, %v437
      %v439 = vpop.f32.mrf.mxu0
      %440 = vmatprep.mubr.bf16.mxu0 0
      %441 = vmatmul.mubr.bf16.gmra.mxu0 %v380
      %v442 = vpop.f32.mrf.mxu0
      %v443 = vadd.f32 0.0, %v442
      %v444 = vpop.f32.mrf.mxu0
      %v445 = vpop.f32.mrf.mxu0
      %v446 = vadd.f32 0.0, %v445
      %v447 = vpop.f32.mrf.mxu0
      %448 = vmatprep.mubr.bf16.mxu0 0
      %449 = vmatmul.mubr.bf16.gmra.mxu0 %v383
      %v450 = vpop.f32.mrf.mxu0
      %v451 = vadd.f32 0.0, %v450
      %v452 = vpop.f32.mrf.mxu0
      %v453 = vpop.f32.mrf.mxu0
      %v454 = vadd.f32 0.0, %v453
      %v455 = vpop.f32.mrf.mxu0
      %456 = vmatprep.mubr.bf16.mxu0 0
      %457 = vmatmul.mubr.bf16.gmra.mxu0 %v386
      %v458 = vpop.f32.mrf.mxu0
      %v459 = vadd.f32 0.0, %v458
      %v460 = vpop.f32.mrf.mxu0
      %v461 = vpop.f32.mrf.mxu0
      %v462 = vadd.f32 0.0, %v461
      %v463 = vpop.f32.mrf.mxu0
      %464 = vdwg.mxu0
      %s465 = sld [smem:[#allocation2]]
      %v466 = vstv %s465
      %v467 = vmul.f32 %v466, %v435
      %v468 = vmul.f32 %v466, %v438
      %v469 = vmul.f32 %v466, %v443
      %v470 = vmul.f32 %v466, %v446
      %v471 = vmul.f32 %v466, %v451
      %v472 = vmul.f32 %v466, %v454
      %v473 = vmul.f32 %v466, %v459
      %v474 = vmul.f32 %v466, %v462
      %v475 = vadd.f32 %v467, %v146
      %v476 = vadd.f32 %v468, %v147
      %v477 = vadd.f32 %v469, %v148
      %v478 = vadd.f32 %v470, %v149
      %v479 = vadd.f32 %v471, %v150
      %v480 = vadd.f32 %v472, %v151
      %v481 = vadd.f32 %v473, %v152
      %v482 = vadd.f32 %v474, %v153
      %483 = vst.msk [vmem:[%s144] sm:$0xff] %vm174, %v475
      %484 = vst.msk [vmem:[%s144 + $0x8] sm:$0xff] %vm174, %v476
      %485 = vst.msk [vmem:[%s144 + $0x10] sm:$0xff] %vm174, %v477
      %486 = vst.msk [vmem:[%s144 + $0x18] sm:$0xff] %vm174, %v478
      %487 = vst.msk [vmem:[%s144 + $0x20] sm:$0xff] %vm174, %v479
      %488 = vst.msk [vmem:[%s144 + $0x28] sm:$0xff] %vm174, %v480
      %489 = vst.msk [vmem:[%s144 + $0x30] sm:$0xff] %vm174, %v481
      %490 = vst.msk [vmem:[%s144 + $0x38] sm:$0xff] %vm174, %v482
      %p491 = scmp.lt.s32.totalorder %s14, 1
      %s492 = scalar_select %p491, %s14, 1
      %s493 = smul.addr %s492, 8
      %s494 = smul.addr %s493, 8
      %s495 = scalar_lea.vmem %s2, %s494
      // Predicated region
      $region29: #{da_forward.6} parent=27 // pred_check
        %p496 = pneg %p79
      $region30: #{da_forward.6} parent=27 // pred_check_branch
        %498 = sbr.rel (%p496) target = $region32
      $region31: #{da_forward.6} parent=27 // pred_region
        _
      $region32: #{da_forward.6} parent=27 // pred_fallthru
        _
    $region28: #{da_forward.6} parent=5 // pred_fallthru
      _
    %p499 = scmp.le.s32.totalorder 2, %s9
    // Predicated region
    $region33: #{da_forward.6} parent=5 // pred_check
      %p500 = pneg %p499
    $region34: #{da_forward.6} parent=5 // pred_check_branch
      %502 = sbr.rel (%p500) target = $region36
    $region35: #{da_forward.6} parent=5 // pred_region
      %s503 = ssub.s32 %s9, 2
      // Predicated region
      $region37: #{da_forward.6} parent=35 // pred_check
        %p504 = pneg %p85
      $region38: #{da_forward.6} parent=35 // pred_check_branch
        %506 = sbr.rel (%p504) target = $region40
      $region39: #{da_forward.6} parent=35 // pred_region
        %p507 = scmp.lt.s32.totalorder %s15, 1
        %s508 = scalar_select %p507, %s15, 1
        %s509 = smul.addr %s508, 8
        %s510 = smul.addr %s509, 8
        %s511 = scalar_lea.vmem %s2, %s510
      $region40: #{da_forward.6} parent=35 // pred_fallthru
        _
    $region36: #{da_forward.6} parent=5 // pred_fallthru
      _
  $region6: #{da_forward.6} parent=0 // loop_footer
    %s13 = sadd.s32 1, %s9
  $region7: #{da_forward.6} parent=0 // loop_footer_branch
    %8 = sbr.rel target = $region3
  $region8: #{da_forward.6} parent=0 // loop_exit
    _

// kernel: da_forward.4
$region0: #{da_forward.4}
  #allocation0 [shape = 'u32[]', space=smem, size = 0x4, offset = 0x4, fixed_abs, tag = 'smem constant byte address 0x4 - core index']
  #allocation1 [shape = 'u32[144,128]{1,0:T(1,128)}', space=vmem, size = 0x12000, scoped, tag = 'internal scratch']
  %s0 = inlined_call_operand.vmem [shape: bf16[128,144], index: 0, kind: input, shape index: {}]
  %s1 = inlined_call_operand.vmem [shape: bf16[144,64], index: 1, kind: input, shape index: {}]
  %s2 = inlined_call_operand.vmem [shape: f32[1,64], index: 2, kind: input, shape index: {}]
  %s3 = inlined_call_operand.vmem [shape: bf16[144,64], index: 3, kind: input, shape index: {}]
  %s4 = inlined_call_operand.vmem [shape: f32[1,64], index: 4, kind: input, shape index: {}]
  %s5 = inlined_call_operand.vmem [shape: f32[128,64], index: 5, kind: output, shape index: {0}]
  %s6 = inlined_call_operand.vmem [shape: f32[128,64], index: 6, kind: output, shape index: {1}]
  %7 = xla_tuple %s5, %s6
  %s8 = sld [smem:[#allocation0]]
  $region38: #{da_forward.4} parent=0
    _
  %s10 = ssub.s32 1, %s8
  %s11 = scalar_select 0, %s10, %s8
  // Predicated region
  $region2: #{da_forward.4} parent=0 // pred_check
    _
  $region3: #{da_forward.4} parent=0 // pred_check_branch
    %13 = sbr.rel (0) target = $region5
  $region4: #{da_forward.4} parent=0 // pred_region
    _
  $region5: #{da_forward.4} parent=0 // pred_fallthru
    _
  // Predicated region
  $region6: #{da_forward.4} parent=0 // pred_check
    _
  $region7: #{da_forward.4} parent=0 // pred_check_branch
    %15 = sbr.rel (0) target = $region9
  $region8: #{da_forward.4} parent=0 // pred_region
    _
  $region9: #{da_forward.4} parent=0 // pred_fallthru
    _
  // Predicated region
  $region10: #{da_forward.4} parent=0 // pred_check
    _
  $region11: #{da_forward.4} parent=0 // pred_check_branch
    %17 = sbr.rel (0) target = $region13
  $region12: #{da_forward.4} parent=0 // pred_region
    _
  $region13: #{da_forward.4} parent=0 // pred_fallthru
    _
  // Predicated region
  $region14: #{da_forward.4} parent=0 // pred_check
    _
  $region15: #{da_forward.4} parent=0 // pred_check_branch
    %19 = sbr.rel (0) target = $region17
  $region16: #{da_forward.4} parent=0 // pred_region
    _
  $region17: #{da_forward.4} parent=0 // pred_fallthru
    _
  // Predicated region
  $region18: #{da_forward.4} parent=0 // pred_check
    _
  $region19: #{da_forward.4} parent=0 // pred_check_branch
    %21 = sbr.rel (0) target = $region21
  $region20: #{da_forward.4} parent=0 // pred_region
    _
  $region21: #{da_forward.4} parent=0 // pred_fallthru
    _
  %v23 = vld [vmem:[%s0] sm:$0xff]
  %v24 = vld [vmem:[%s0 + $0x8] sm:$0xff]
  %v25 = vld [vmem:[%s0 + $0x10] sm:$0xff]
  %v26 = vld [vmem:[%s0 + $0x18] sm:$0xff]
  %v27 = vld [vmem:[%s0 + $0x20] sm:$0xff]
  %v28 = vld [vmem:[%s0 + $0x28] sm:$0xff]
  %v29 = vld [vmem:[%s0 + $0x30] sm:$0xff]
  %v30 = vld [vmem:[%s0 + $0x38] sm:$0xff]
  %v31 = vld [vmem:[%s0 + $0x40] sm:$0xff]
  %v32 = vld [vmem:[%s0 + $0x48] sm:$0xff]
  %v33 = vld [vmem:[%s0 + $0x50] sm:$0xff]
  %v34 = vld [vmem:[%s0 + $0x58] sm:$0xff]
  %v35 = vld [vmem:[%s0 + $0x60] sm:$0xff]
  %v36 = vld [vmem:[%s0 + $0x68] sm:$0xff]
  %v37 = vld [vmem:[%s0 + $0x70] sm:$0xff]
  %v38 = vld [vmem:[%s0 + $0x78] sm:$0xff]
  %v39 = vld [vmem:[%s1] sm:$0xf]
  %v40 = vld [vmem:[%s1 + $0x4] sm:$0xf]
  %v41 = vld [vmem:[%s1 + $0x8] sm:$0xf]
  %v42 = vld [vmem:[%s1 + $0xc] sm:$0xf]
  %v43 = vld [vmem:[%s1 + $0x10] sm:$0xf]
  %v44 = vld [vmem:[%s1 + $0x14] sm:$0xf]
  %v45 = vld [vmem:[%s1 + $0x18] sm:$0xf]
  %v46 = vld [vmem:[%s1 + $0x1c] sm:$0xf]
  %v47 = vld [vmem:[%s1 + $0x20] sm:$0xf]
  %v48 = vld [vmem:[%s1 + $0x24] sm:$0xf]
  %v49 = vld [vmem:[%s1 + $0x28] sm:$0xf]
  %v50 = vld [vmem:[%s1 + $0x2c] sm:$0xf]
  %v51 = vld [vmem:[%s1 + $0x30] sm:$0xf]
  %v52 = vld [vmem:[%s1 + $0x34] sm:$0xf]
  %v53 = vld [vmem:[%s1 + $0x38] sm:$0xf]
  %v54 = vld [vmem:[%s1 + $0x3c] sm:$0xf]
  %v55 = vld [vmem:[%s1 + $0x40] sm:$0xf]
  %v56 = vld [vmem:[%s1 + $0x44] sm:$0xf]
  %v57 = vld [vmem:[%s2] sm:$0x1]
  %v59 = vlaneseq
  %v60 = vshrl.u32 %v59, 7
  %v61 = vsub.s32 0, %v60
  %v62 = vrot.slane %v57, %v61
  %v80 = vunpack.c.l.b16 %v23
  %v81 = vunpack.c.h.b16 %v23
  %v82 = vunpack.c.l.b16 %v24
  %v83 = vunpack.c.h.b16 %v24
  %v84 = vunpack.c.l.b16 %v25
  %v85 = vunpack.c.h.b16 %v25
  %v86 = vunpack.c.l.b16 %v26
  %v87 = vunpack.c.h.b16 %v26
  %v88 = vunpack.c.l.b16 %v27
  %v89 = vunpack.c.h.b16 %v27
  %v90 = vunpack.c.l.b16 %v28
  %v91 = vunpack.c.h.b16 %v28
  %v92 = vunpack.c.l.b16 %v29
  %v93 = vunpack.c.h.b16 %v29
  %v94 = vunpack.c.l.b16 %v30
  %v95 = vunpack.c.h.b16 %v30
  %v96 = vunpack.c.l.b16 %v31
  %v97 = vunpack.c.h.b16 %v31
  %v98 = vunpack.c.l.b16 %v32
  %v99 = vunpack.c.h.b16 %v32
  %v100 = vunpack.c.l.b16 %v33
  %v101 = vunpack.c.h.b16 %v33
  %v102 = vunpack.c.l.b16 %v34
  %v103 = vunpack.c.h.b16 %v34
  %v104 = vunpack.c.l.b16 %v35
  %v105 = vunpack.c.h.b16 %v35
  %v106 = vunpack.c.l.b16 %v36
  %v107 = vunpack.c.h.b16 %v36
  %v108 = vunpack.c.l.b16 %v37
  %v109 = vunpack.c.h.b16 %v37
  %v110 = vunpack.c.l.b16 %v38
  %v111 = vunpack.c.h.b16 %v38
  %v112 = vpack.c.b16 %v82, %v80
  %v113 = vpack.c.b16 %v83, %v81
  %v114 = vpack.c.b16 %v86, %v84
  %v115 = vpack.c.b16 %v87, %v85
  %v116 = vpack.c.b16 %v90, %v88
  %v117 = vpack.c.b16 %v91, %v89
  %v118 = vpack.c.b16 %v94, %v92
  %v119 = vpack.c.b16 %v95, %v93
  %v120 = vpack.c.b16 %v98, %v96
  %v121 = vpack.c.b16 %v99, %v97
  %v122 = vpack.c.b16 %v102, %v100
  %v123 = vpack.c.b16 %v103, %v101
  %v124 = vpack.c.b16 %v106, %v104
  %v125 = vpack.c.b16 %v107, %v105
  %v126 = vpack.c.b16 %v110, %v108
  %v127 = vpack.c.b16 %v111, %v109
  %v154 = vunpack.c.l.b16 %v39
  %v155 = vunpack.c.l.b16 %v40
  %v156 = vunpack.c.l.b16 %v41
  %v157 = vunpack.c.l.b16 %v42
  %v158 = vunpack.c.l.b16 %v43
  %v159 = vunpack.c.l.b16 %v44
  %v160 = vunpack.c.l.b16 %v45
  %v161 = vunpack.c.l.b16 %v46
  %v162 = vunpack.c.l.b16 %v47
  %v163 = vunpack.c.l.b16 %v48
  %v164 = vunpack.c.l.b16 %v49
  %v165 = vunpack.c.l.b16 %v50
  %v166 = vunpack.c.l.b16 %v51
  %v167 = vunpack.c.l.b16 %v52
  %v168 = vunpack.c.l.b16 %v53
  %v169 = vunpack.c.l.b16 %v54
  %v170 = vunpack.c.l.b16 %v55
  %v171 = vunpack.c.l.b16 %v56
  %v172 = vpack.c.b16 %v155, %v154
  %v173 = vpack.c.b16 %v157, %v156
  %v174 = vpack.c.b16 %v159, %v158
  %v175 = vpack.c.b16 %v161, %v160
  %v176 = vpack.c.b16 %v163, %v162
  %v177 = vpack.c.b16 %v165, %v164
  %v178 = vpack.c.b16 %v167, %v166
  %v179 = vpack.c.b16 %v169, %v168
  %v180 = vpack.c.b16 %v171, %v170
  %vm190 = vcmask 130048
  %v192 = vsel %vm190, %v113, 0
  %v195 = vsel %vm190, %v115, 0
  %v198 = vsel %vm190, %v117, 0
  %v201 = vsel %vm190, %v119, 0
  %v204 = vsel %vm190, %v121, 0
  %v207 = vsel %vm190, %v123, 0
  %v210 = vsel %vm190, %v125, 0
  %v213 = vsel %vm190, %v127, 0
  %215 = vmatprep.subr.bf16.mxu0 0
  %216 = vmatpush1.bf16.msra.mxu0 %v179
  %217 = vmatprep.subr.bf16.mxu0 0
  %218 = vmatpush1.bf16.msra.mxu0 %v178
  %219 = vmatprep.subr.bf16.mxu0 0
  %220 = vmatpush1.bf16.msra.mxu0 %v177
  %221 = vmatprep.subr.bf16.mxu0 0
  %222 = vmatpush1.bf16.msra.mxu0 %v176
  %223 = vmatprep.subr.bf16.mxu0 0
  %224 = vmatpush1.bf16.msra.mxu0 %v175
  %225 = vmatprep.subr.bf16.mxu0 0
  %226 = vmatpush1.bf16.msra.mxu0 %v174
  %227 = vmatprep.subr.bf16.mxu0 0
  %228 = vmatpush1.bf16.msra.mxu0 %v173
  %229 = vmatprep.subr.bf16.mxu0 0
  %230 = vmatpush1.bf16.msra.mxu0 %v172
  %231 = vmatprep.subr.bf16.mxu0 0
  %232 = vmatpush2.bf16.msra.mxu0 0
  %233 = vmatprep.subr.bf16.mxu0 0
  %234 = vmatpush2.bf16.msra.mxu0 0
  %235 = vmatprep.subr.bf16.mxu0 0
  %236 = vmatpush2.bf16.msra.mxu0 0
  %237 = vmatprep.subr.bf16.mxu0 0
  %238 = vmatpush2.bf16.msra.mxu0 0
  %239 = vmatprep.subr.bf16.mxu0 0
  %240 = vmatpush2.bf16.msra.mxu0 0
  %241 = vmatprep.subr.bf16.mxu0 0
  %242 = vmatpush2.bf16.msra.mxu0 0
  %243 = vmatprep.subr.bf16.mxu0 0
  %244 = vmatpush2.bf16.msra.mxu0 0
  %245 = vmatprep.subr.bf16.mxu0 0
  %246 = vmatpush2.bf16.msra.mxu0 %v180
  %247 = vmatprep.mubr.bf16.mxu0 %v192
  %248 = vmatmul.mubr.bf16.gmra.mxu0 %v112
  %v249 = vpop.f32.mrf.mxu0
  %v250 = vadd.f32 %v62, %v249
  %v251 = vpop.f32.mrf.mxu0
  %v252 = vpop.f32.mrf.mxu0
  %v253 = vadd.f32 %v62, %v252
  %v254 = vpop.f32.mrf.mxu0
  %255 = vmatprep.mubr.bf16.mxu0 %v195
  %256 = vmatmul.mubr.bf16.gmra.mxu0 %v114
  %v257 = vpop.f32.mrf.mxu0
  %v258 = vadd.f32 %v62, %v257
  %v259 = vpop.f32.mrf.mxu0
  %v260 = vpop.f32.mrf.mxu0
  %v261 = vadd.f32 %v62, %v260
  %v262 = vpop.f32.mrf.mxu0
  %263 = vmatprep.mubr.bf16.mxu0 %v198
  %264 = vmatmul.mubr.bf16.gmra.mxu0 %v116
  %v265 = vpop.f32.mrf.mxu0
  %v266 = vadd.f32 %v62, %v265
  %v267 = vpop.f32.mrf.mxu0
  %v268 = vpop.f32.mrf.mxu0
  %v269 = vadd.f32 %v62, %v268
  %v270 = vpop.f32.mrf.mxu0
  %271 = vmatprep.mubr.bf16.mxu0 %v201
  %272 = vmatmul.mubr.bf16.gmra.mxu0 %v118
  %v273 = vpop.f32.mrf.mxu0
  %v274 = vadd.f32 %v62, %v273
  %v275 = vpop.f32.mrf.mxu0
  %v276 = vpop.f32.mrf.mxu0
  %v277 = vadd.f32 %v62, %v276
  %v278 = vpop.f32.mrf.mxu0
  %279 = vmatprep.mubr.bf16.mxu0 %v204
  %280 = vmatmul.mubr.bf16.gmra.mxu0 %v120
  %v281 = vpop.f32.mrf.mxu0
  %v282 = vadd.f32 %v62, %v281
  %v283 = vpop.f32.mrf.mxu0
  %v284 = vpop.f32.mrf.mxu0
  %v285 = vadd.f32 %v62, %v284
  %v286 = vpop.f32.mrf.mxu0
  %287 = vmatprep.mubr.bf16.mxu0 %v207
  %288 = vmatmul.mubr.bf16.gmra.mxu0 %v122
  %v289 = vpop.f32.mrf.mxu0
  %v290 = vadd.f32 %v62, %v289
  %v291 = vpop.f32.mrf.mxu0
  %v292 = vpop.f32.mrf.mxu0
  %v293 = vadd.f32 %v62, %v292
  %v294 = vpop.f32.mrf.mxu0
  %295 = vmatprep.mubr.bf16.mxu0 %v210
  %296 = vmatmul.mubr.bf16.gmra.mxu0 %v124
  %v297 = vpop.f32.mrf.mxu0
  %v298 = vadd.f32 %v62, %v297
  %v299 = vpop.f32.mrf.mxu0
  %v300 = vpop.f32.mrf.mxu0
  %v301 = vadd.f32 %v62, %v300
  %v302 = vpop.f32.mrf.mxu0
  %303 = vmatprep.mubr.bf16.mxu0 %v213
  %304 = vmatmul.mubr.bf16.gmra.mxu0 %v126
  %v305 = vpop.f32.mrf.mxu0
  %v306 = vadd.f32 %v62, %v305
  %v307 = vpop.f32.mrf.mxu0
  %v308 = vpop.f32.mrf.mxu0
  %v309 = vadd.f32 %v62, %v308
  %v310 = vpop.f32.mrf.mxu0
  %311 = vdwg.mxu0
  %vm312 = vcmask 523264
  %313 = vst.msk [vmem:[%s5] sm:$0xff] %vm312, %v250
  %314 = vst.msk [vmem:[%s5 + $0x8] sm:$0xff] %vm312, %v253
  %315 = vst.msk [vmem:[%s5 + $0x10] sm:$0xff] %vm312, %v258
  %316 = vst.msk [vmem:[%s5 + $0x18] sm:$0xff] %vm312, %v261
  %317 = vst.msk [vmem:[%s5 + $0x20] sm:$0xff] %vm312, %v266
  %318 = vst.msk [vmem:[%s5 + $0x28] sm:$0xff] %vm312, %v269
  %319 = vst.msk [vmem:[%s5 + $0x30] sm:$0xff] %vm312, %v274
  %320 = vst.msk [vmem:[%s5 + $0x38] sm:$0xff] %vm312, %v277
  %321 = vst.msk [vmem:[%s5 + $0x40] sm:$0xff] %vm312, %v282
  %322 = vst.msk [vmem:[%s5 + $0x48] sm:$0xff] %vm312, %v285
  %323 = vst.msk [vmem:[%s5 + $0x50] sm:$0xff] %vm312, %v290
  %324 = vst.msk [vmem:[%s5 + $0x58] sm:$0xff] %vm312, %v293
  %325 = vst.msk [vmem:[%s5 + $0x60] sm:$0xff] %vm312, %v298
  %326 = vst.msk [vmem:[%s5 + $0x68] sm:$0xff] %vm312, %v301
  %327 = vst.msk [vmem:[%s5 + $0x70] sm:$0xff] %vm312, %v306
  %328 = vst.msk [vmem:[%s5 + $0x78] sm:$0xff] %vm312, %v309
  %v329 = vld [vmem:[%s3] sm:$0xf]
  %v330 = vld [vmem:[%s3 + $0x4] sm:$0xf]
  %v331 = vld [vmem:[%s3 + $0x8] sm:$0xf]
  %v332 = vld [vmem:[%s3 + $0xc] sm:$0xf]
  %v333 = vld [vmem:[%s3 + $0x10] sm:$0xf]
  %v334 = vld [vmem:[%s3 + $0x14] sm:$0xf]
  %v335 = vld [vmem:[%s3 + $0x18] sm:$0xf]
  %v336 = vld [vmem:[%s3 + $0x1c] sm:$0xf]
  %v337 = vld [vmem:[%s3 + $0x20] sm:$0xf]
  %v338 = vld [vmem:[%s3 + $0x24] sm:$0xf]
  %v339 = vld [vmem:[%s3 + $0x28] sm:$0xf]
  %v340 = vld [vmem:[%s3 + $0x2c] sm:$0xf]
  %v341 = vld [vmem:[%s3 + $0x30] sm:$0xf]
  %v342 = vld [vmem:[%s3 + $0x34] sm:$0xf]
  %v343 = vld [vmem:[%s3 + $0x38] sm:$0xf]
  %v344 = vld [vmem:[%s3 + $0x3c] sm:$0xf]
  %v345 = vld [vmem:[%s3 + $0x40] sm:$0xf]
  %v346 = vld [vmem:[%s3 + $0x44] sm:$0xf]
  %v347 = vld [vmem:[%s4] sm:$0x1]
  %v349 = vlaneseq
  %v350 = vshrl.u32 %v349, 7
  %v351 = vsub.s32 0, %v350
  %v352 = vrot.slane %v347, %v351
  %v372 = vunpack.c.l.b16 %v329
  %v373 = vunpack.c.l.b16 %v330
  %v374 = vunpack.c.l.b16 %v331
  %v375 = vunpack.c.l.b16 %v332
  %v376 = vunpack.c.l.b16 %v333
  %v377 = vunpack.c.l.b16 %v334
  %v378 = vunpack.c.l.b16 %v335
  %v379 = vunpack.c.l.b16 %v336
  %v380 = vunpack.c.l.b16 %v337
  %v381 = vunpack.c.l.b16 %v338
  %v382 = vunpack.c.l.b16 %v339
  %v383 = vunpack.c.l.b16 %v340
  %v384 = vunpack.c.l.b16 %v341
  %v385 = vunpack.c.l.b16 %v342
  %v386 = vunpack.c.l.b16 %v343
  %v387 = vunpack.c.l.b16 %v344
  %v388 = vunpack.c.l.b16 %v345
  %v389 = vunpack.c.l.b16 %v346
  %v390 = vpack.c.b16 %v373, %v372
  %v391 = vpack.c.b16 %v375, %v374
  %v392 = vpack.c.b16 %v377, %v376
  %v393 = vpack.c.b16 %v379, %v378
  %v394 = vpack.c.b16 %v381, %v380
  %v395 = vpack.c.b16 %v383, %v382
  %v396 = vpack.c.b16 %v385, %v384
  %v397 = vpack.c.b16 %v387, %v386
  %v398 = vpack.c.b16 %v389, %v388
  %408 = vmatprep.subr.bf16.mxu0 0
  %409 = vmatpush1.bf16.msra.mxu0 %v397
  %410 = vmatprep.subr.bf16.mxu0 0
  %411 = vmatpush1.bf16.msra.mxu0 %v396
  %412 = vmatprep.subr.bf16.mxu0 0
  %413 = vmatpush1.bf16.msra.mxu0 %v395
  %414 = vmatprep.subr.bf16.mxu0 0
  %415 = vmatpush1.bf16.msra.mxu0 %v394
  %416 = vmatprep.subr.bf16.mxu0 0
  %417 = vmatpush1.bf16.msra.mxu0 %v393
  %418 = vmatprep.subr.bf16.mxu0 0
  %419 = vmatpush1.bf16.msra.mxu0 %v392
  %420 = vmatprep.subr.bf16.mxu0 0
  %421 = vmatpush1.bf16.msra.mxu0 %v391
  %422 = vmatprep.subr.bf16.mxu0 0
  %423 = vmatpush1.bf16.msra.mxu0 %v390
  %424 = vmatprep.subr.bf16.mxu0 0
  %425 = vmatpush2.bf16.msra.mxu0 0
  %426 = vmatprep.subr.bf16.mxu0 0
  %427 = vmatpush2.bf16.msra.mxu0 0
  %428 = vmatprep.subr.bf16.mxu0 0
  %429 = vmatpush2.bf16.msra.mxu0 0
  %430 = vmatprep.subr.bf16.mxu0 0
  %431 = vmatpush2.bf16.msra.mxu0 0
  %432 = vmatprep.subr.bf16.mxu0 0
  %433 = vmatpush2.bf16.msra.mxu0 0
  %434 = vmatprep.subr.bf16.mxu0 0
  %435 = vmatpush2.bf16.msra.mxu0 0
  %436 = vmatprep.subr.bf16.mxu0 0
  %437 = vmatpush2.bf16.msra.mxu0 0
  %438 = vmatprep.subr.bf16.mxu0 0
  %439 = vmatpush2.bf16.msra.mxu0 %v398
  %440 = vmatprep.mubr.bf16.mxu0 %v192
  %441 = vmatmul.mubr.bf16.gmra.mxu0 %v112
  %v442 = vpop.f32.mrf.mxu0
  %v443 = vadd.f32 %v352, %v442
  %v444 = vpop.f32.mrf.mxu0
  %v445 = vpop.f32.mrf.mxu0
  %v446 = vadd.f32 %v352, %v445
  %v447 = vpop.f32.mrf.mxu0
  %448 = vmatprep.mubr.bf16.mxu0 %v195
  %449 = vmatmul.mubr.bf16.gmra.mxu0 %v114
  %v450 = vpop.f32.mrf.mxu0
  %v451 = vadd.f32 %v352, %v450
  %v452 = vpop.f32.mrf.mxu0
  %v453 = vpop.f32.mrf.mxu0
  %v454 = vadd.f32 %v352, %v453
  %v455 = vpop.f32.mrf.mxu0
  %456 = vmatprep.mubr.bf16.mxu0 %v198
  %457 = vmatmul.mubr.bf16.gmra.mxu0 %v116
  %v458 = vpop.f32.mrf.mxu0
  %v459 = vadd.f32 %v352, %v458
  %v460 = vpop.f32.mrf.mxu0
  %v461 = vpop.f32.mrf.mxu0
  %v462 = vadd.f32 %v352, %v461
  %v463 = vpop.f32.mrf.mxu0
  %464 = vmatprep.mubr.bf16.mxu0 %v201
  %465 = vmatmul.mubr.bf16.gmra.mxu0 %v118
  %v466 = vpop.f32.mrf.mxu0
  %v467 = vadd.f32 %v352, %v466
  %v468 = vpop.f32.mrf.mxu0
  %v469 = vpop.f32.mrf.mxu0
  %v470 = vadd.f32 %v352, %v469
  %v471 = vpop.f32.mrf.mxu0
  %472 = vmatprep.mubr.bf16.mxu0 %v204
  %473 = vmatmul.mubr.bf16.gmra.mxu0 %v120
  %v474 = vpop.f32.mrf.mxu0
  %v475 = vadd.f32 %v352, %v474
  %v476 = vpop.f32.mrf.mxu0
  %v477 = vpop.f32.mrf.mxu0
  %v478 = vadd.f32 %v352, %v477
  %v479 = vpop.f32.mrf.mxu0
  %480 = vmatprep.mubr.bf16.mxu0 %v207
  %481 = vmatmul.mubr.bf16.gmra.mxu0 %v122
  %v482 = vpop.f32.mrf.mxu0
  %v483 = vadd.f32 %v352, %v482
  %v484 = vpop.f32.mrf.mxu0
  %v485 = vpop.f32.mrf.mxu0
  %v486 = vadd.f32 %v352, %v485
  %v487 = vpop.f32.mrf.mxu0
  %488 = vmatprep.mubr.bf16.mxu0 %v210
  %489 = vmatmul.mubr.bf16.gmra.mxu0 %v124
  %v490 = vpop.f32.mrf.mxu0
  %v491 = vadd.f32 %v352, %v490
  %v492 = vpop.f32.mrf.mxu0
  %v493 = vpop.f32.mrf.mxu0
  %v494 = vadd.f32 %v352, %v493
  %v495 = vpop.f32.mrf.mxu0
  %496 = vmatprep.mubr.bf16.mxu0 %v213
  %497 = vmatmul.mubr.bf16.gmra.mxu0 %v126
  %v498 = vpop.f32.mrf.mxu0
  %v499 = vadd.f32 %v352, %v498
  %v500 = vpop.f32.mrf.mxu0
  %v501 = vpop.f32.mrf.mxu0
  %v502 = vadd.f32 %v352, %v501
  %v503 = vpop.f32.mrf.mxu0
  %504 = vdwg.mxu0
  %505 = vst.msk [vmem:[%s6] sm:$0xff] %vm312, %v443
  %506 = vst.msk [vmem:[%s6 + $0x8] sm:$0xff] %vm312, %v446
  %507 = vst.msk [vmem:[%s6 + $0x10] sm:$0xff] %vm312, %v451
  %508 = vst.msk [vmem:[%s6 + $0x18] sm:$0xff] %vm312, %v454
  %509 = vst.msk [vmem:[%s6 + $0x20] sm:$0xff] %vm312, %v459
  %510 = vst.msk [vmem:[%s6 + $0x28] sm:$0xff] %vm312, %v462
  %511 = vst.msk [vmem:[%s6 + $0x30] sm:$0xff] %vm312, %v467
  %512 = vst.msk [vmem:[%s6 + $0x38] sm:$0xff] %vm312, %v470
  %513 = vst.msk [vmem:[%s6 + $0x40] sm:$0xff] %vm312, %v475
  %514 = vst.msk [vmem:[%s6 + $0x48] sm:$0xff] %vm312, %v478
  %515 = vst.msk [vmem:[%s6 + $0x50] sm:$0xff] %vm312, %v483
  %516 = vst.msk [vmem:[%s6 + $0x58] sm:$0xff] %vm312, %v486
  %517 = vst.msk [vmem:[%s6 + $0x60] sm:$0xff] %vm312, %v491
  %518 = vst.msk [vmem:[%s6 + $0x68] sm:$0xff] %vm312, %v494
  %519 = vst.msk [vmem:[%s6 + $0x70] sm:$0xff] %vm312, %v499
  %520 = vst.msk [vmem:[%s6 + $0x78] sm:$0xff] %vm312, %v502
  // Predicated region
  $region22: #{da_forward.4} parent=0 // pred_check
    _
  $region23: #{da_forward.4} parent=0 // pred_check_branch
    %522 = sbr.rel (0) target = $region25
  $region24: #{da_forward.4} parent=0 // pred_region
    _
  $region25: #{da_forward.4} parent=0 // pred_fallthru
    _
  // Predicated region
  $region26: #{da_forward.4} parent=0 // pred_check
    _
  $region27: #{da_forward.4} parent=0 // pred_check_branch
    %524 = sbr.rel (0) target = $region29
  $region28: #{da_forward.4} parent=0 // pred_region
    _
  $region29: #{da_forward.4} parent=0 // pred_fallthru
    _
  // Predicated region
  $region30: #{da_forward.4} parent=0 // pred_check
    _
  $region31: #{da_forward.4} parent=0 // pred_check_branch
    %526 = sbr.rel (0) target = $region33
  $region32: #{da_forward.4} parent=0 // pred_region
    _
  $region33: #{da_forward.4} parent=0 // pred_fallthru
    _
  // Predicated region
  $region34: #{da_forward.4} parent=0 // pred_check
    _
  $region35: #{da_forward.4} parent=0 // pred_check_branch
    %528 = sbr.rel (0) target = $region37
  $region36: #{da_forward.4} parent=0 // pred_region
    _
  $region37: #{da_forward.4} parent=0 // pred_fallthru
    _

// kernel: da_forward.5
$region0: #{da_forward.5}
  #allocation0 [shape = 'u32[]', space=smem, size = 0x4, offset = 0x4, fixed_abs, tag = 'smem constant byte address 0x4 - core index']
  #allocation1 [shape = 'u32[144,128]{1,0:T(1,128)}', space=vmem, size = 0x12000, scoped, tag = 'internal scratch']
  #allocation2 [shape = 'f32[1]{0:T(128)S(6)}', space=smem, size = 0x200, scoped, tag = 'scoped memory for da_forward.5']
  %s0 = inlined_call_operand.vmem [shape: f32[2,64,64], index: 0, kind: input, shape index: {}]
  %s1 = inlined_call_operand.vmem [shape: bf16[64,8], index: 1, kind: input, shape index: {}]
  %s2 = inlined_call_operand.vmem [shape: f32[1,8], index: 2, kind: input, shape index: {}]
  %s3 = inlined_call_operand.vmem [shape: bf16[64,8], index: 3, kind: input, shape index: {}]
  %s4 = inlined_call_operand.vmem [shape: f32[1,8], index: 4, kind: input, shape index: {}]
  %s5 = inlined_call_operand.vmem [shape: bf16[64,64], index: 5, kind: input, shape index: {}]
  %s6 = inlined_call_operand.vmem [shape: f32[1,64], index: 6, kind: input, shape index: {}]
  %s7 = inlined_call_operand.<no memory space> [shape: f32[1], index: 7, kind: input, shape index: {}]
  %s8 = inlined_call_operand.vmem [shape: f32[2,64,64], index: 8, kind: output, shape index: {}]
  %s9 = sld [smem:[#allocation0]]
  $region65: #{da_forward.5} parent=0
    _
  %s11 = ssub.s32 1, %s9
  %s12 = scalar_select 0, %s11, %s9
  %13 = sst [smem:[#allocation2]] %s7
  loop: start=0, step=1, limit=4
  $region2: #{da_forward.5} parent=0 // loop_pre_header
    _
  $region3: #{da_forward.5} parent=0 // loop_header
    %s15 = sphi 0, %s19
    %p16 = scmp.ge.s32.totalorder %s15, 4
    %s25 = sphi 0, %s27
    %s28 = sphi 0, %s25
    %s29 = sphi 0, %s28
    %s45 = sphi 0, %s29
    %s49 = sphi 0, %s49
    %s51 = sphi 0, %s49
    %s52 = sphi 0, %s51
    %s66 = sphi 0, %s52
    %s70 = sphi 0, %s70
    %s72 = sphi 0, %s70
    %s73 = sphi 0, %s72
    %s87 = sphi 0, %s73
    %s91 = sphi 0, %s91
    %s93 = sphi 0, %s91
    %s94 = sphi 0, %s93
    %s108 = sphi 0, %s94
    %s112 = sphi 0, %s112
    %s114 = sphi 0, %s112
    %s115 = sphi 0, %s114
    %s129 = sphi 0, %s115
    %s133 = sphi 0, %s133
    %s135 = sphi 0, %s133
    %s136 = sphi 0, %s135
    %s150 = sphi 0, %s136
    %s154 = sphi 0, %s154
    %s156 = sphi 0, %s154
    %s157 = sphi 0, %s156
    %s171 = sphi 0, %s157
    %s175 = sphi 0, %s175
    %s177 = sphi 0, %s175
    %s178 = sphi 0, %s177
    %s192 = sphi 0, %s178
    %s198 = sphi 0, %s200
    %s201 = sphi 0, %s198
    %s202 = sphi 0, %s201
    %s218 = sphi 0, %s202
  $region4: #{da_forward.5} parent=0 // loop_header_branch
    %18 = sbr.rel (%p16) target = $region8
  $region5: #{da_forward.5} parent=0 // loop_body
    %s20 = ssub.s32 %s15, 1
    %s21 = ssub.s32 %s15, 2
    %s22 = sadd.s32 %s15, 1
    %s23 = ssub.s32 %s15, %s22
    %p24 = scmp.eq.s32.totalorder %s23, 0
    %s26 = sadd.s32 %s25, 1
    %s27 = scalar_select %p24, %s25, %s26
    %p30 = pneg %p24
    %p31 = scmp.eq.s32.totalorder %s15, 1
    %p32 = por %p30, %p31
    %p33 = scmp.ne.s32.totalorder %s25, %s28
    %p34 = scmp.eq.s32.totalorder %s15, 0
    %p35 = por %p33, %p34
    %p36 = scmp.ne.s32.totalorder %s25, %s28
    %p37 = scmp.eq.s32.totalorder %s20, 1
    %p38 = por %p36, %p37
    %p39 = scmp.ne.s32.totalorder %s28, %s29
    %p40 = scmp.eq.s32.totalorder %s20, 0
    %p41 = por %p39, %p40
    %p42 = scmp.ne.s32.totalorder %s28, %s29
    %p43 = scmp.eq.s32.totalorder %s21, 1
    %p44 = por %p42, %p43
    %p46 = scmp.ne.s32.totalorder %s29, %s45
    %p47 = scmp.eq.s32.totalorder %s21, 0
    %p48 = por %p46, %p47
    %s50 = sadd.s32 %s49, 1
    %p53 = scmp.eq.s32.totalorder %s15, 1
    %p54 = scmp.ne.s32.totalorder %s49, %s51
    %p55 = scmp.eq.s32.totalorder %s15, 0
    %p56 = por %p54, %p55
    %p57 = scmp.ne.s32.totalorder %s49, %s51
    %p58 = scmp.eq.s32.totalorder %s20, 1
    %p59 = por %p57, %p58
    %p60 = scmp.ne.s32.totalorder %s51, %s52
    %p61 = scmp.eq.s32.totalorder %s20, 0
    %p62 = por %p60, %p61
    %p63 = scmp.ne.s32.totalorder %s51, %s52
    %p64 = scmp.eq.s32.totalorder %s21, 1
    %p65 = por %p63, %p64
    %p67 = scmp.ne.s32.totalorder %s52, %s66
    %p68 = scmp.eq.s32.totalorder %s21, 0
    %p69 = por %p67, %p68
    %s71 = sadd.s32 %s70, 1
    %p74 = scmp.eq.s32.totalorder %s15, 1
    %p75 = scmp.ne.s32.totalorder %s70, %s72
    %p76 = scmp.eq.s32.totalorder %s15, 0
    %p77 = por %p75, %p76
    %p78 = scmp.ne.s32.totalorder %s70, %s72
    %p79 = scmp.eq.s32.totalorder %s20, 1
    %p80 = por %p78, %p79
    %p81 = scmp.ne.s32.totalorder %s72, %s73
    %p82 = scmp.eq.s32.totalorder %s20, 0
    %p83 = por %p81, %p82
    %p84 = scmp.ne.s32.totalorder %s72, %s73
    %p85 = scmp.eq.s32.totalorder %s21, 1
    %p86 = por %p84, %p85
    %p88 = scmp.ne.s32.totalorder %s73, %s87
    %p89 = scmp.eq.s32.totalorder %s21, 0
    %p90 = por %p88, %p89
    %s92 = sadd.s32 %s91, 1
    %p95 = scmp.eq.s32.totalorder %s15, 1
    %p96 = scmp.ne.s32.totalorder %s91, %s93
    %p97 = scmp.eq.s32.totalorder %s15, 0
    %p98 = por %p96, %p97
    %p99 = scmp.ne.s32.totalorder %s91, %s93
    %p100 = scmp.eq.s32.totalorder %s20, 1
    %p101 = por %p99, %p100
    %p102 = scmp.ne.s32.totalorder %s93, %s94
    %p103 = scmp.eq.s32.totalorder %s20, 0
    %p104 = por %p102, %p103
    %p105 = scmp.ne.s32.totalorder %s93, %s94
    %p106 = scmp.eq.s32.totalorder %s21, 1
    %p107 = por %p105, %p106
    %p109 = scmp.ne.s32.totalorder %s94, %s108
    %p110 = scmp.eq.s32.totalorder %s21, 0
    %p111 = por %p109, %p110
    %s113 = sadd.s32 %s112, 1
    %p116 = scmp.eq.s32.totalorder %s15, 1
    %p117 = scmp.ne.s32.totalorder %s112, %s114
    %p118 = scmp.eq.s32.totalorder %s15, 0
    %p119 = por %p117, %p118
    %p120 = scmp.ne.s32.totalorder %s112, %s114
    %p121 = scmp.eq.s32.totalorder %s20, 1
    %p122 = por %p120, %p121
    %p123 = scmp.ne.s32.totalorder %s114, %s115
    %p124 = scmp.eq.s32.totalorder %s20, 0
    %p125 = por %p123, %p124
    %p126 = scmp.ne.s32.totalorder %s114, %s115
    %p127 = scmp.eq.s32.totalorder %s21, 1
    %p128 = por %p126, %p127
    %p130 = scmp.ne.s32.totalorder %s115, %s129
    %p131 = scmp.eq.s32.totalorder %s21, 0
    %p132 = por %p130, %p131
    %s134 = sadd.s32 %s133, 1
    %p137 = scmp.eq.s32.totalorder %s15, 1
    %p138 = scmp.ne.s32.totalorder %s133, %s135
    %p139 = scmp.eq.s32.totalorder %s15, 0
    %p140 = por %p138, %p139
    %p141 = scmp.ne.s32.totalorder %s133, %s135
    %p142 = scmp.eq.s32.totalorder %s20, 1
    %p143 = por %p141, %p142
    %p144 = scmp.ne.s32.totalorder %s135, %s136
    %p145 = scmp.eq.s32.totalorder %s20, 0
    %p146 = por %p144, %p145
    %p147 = scmp.ne.s32.totalorder %s135, %s136
    %p148 = scmp.eq.s32.totalorder %s21, 1
    %p149 = por %p147, %p148
    %p151 = scmp.ne.s32.totalorder %s136, %s150
    %p152 = scmp.eq.s32.totalorder %s21, 0
    %p153 = por %p151, %p152
    %s155 = sadd.s32 %s154, 1
    %p158 = scmp.eq.s32.totalorder %s15, 1
    %p159 = scmp.ne.s32.totalorder %s154, %s156
    %p160 = scmp.eq.s32.totalorder %s15, 0
    %p161 = por %p159, %p160
    %p162 = scmp.ne.s32.totalorder %s154, %s156
    %p163 = scmp.eq.s32.totalorder %s20, 1
    %p164 = por %p162, %p163
    %p165 = scmp.ne.s32.totalorder %s156, %s157
    %p166 = scmp.eq.s32.totalorder %s20, 0
    %p167 = por %p165, %p166
    %p168 = scmp.ne.s32.totalorder %s156, %s157
    %p169 = scmp.eq.s32.totalorder %s21, 1
    %p170 = por %p168, %p169
    %p172 = scmp.ne.s32.totalorder %s157, %s171
    %p173 = scmp.eq.s32.totalorder %s21, 0
    %p174 = por %p172, %p173
    %s176 = sadd.s32 %s175, 1
    %p179 = scmp.eq.s32.totalorder %s15, 1
    %p180 = scmp.ne.s32.totalorder %s175, %s177
    %p181 = scmp.eq.s32.totalorder %s15, 0
    %p182 = por %p180, %p181
    %p183 = scmp.ne.s32.totalorder %s175, %s177
    %p184 = scmp.eq.s32.totalorder %s20, 1
    %p185 = por %p183, %p184
    %p186 = scmp.ne.s32.totalorder %s177, %s178
    %p187 = scmp.eq.s32.totalorder %s20, 0
    %p188 = por %p186, %p187
    %p189 = scmp.ne.s32.totalorder %s177, %s178
    %p190 = scmp.eq.s32.totalorder %s21, 1
    %p191 = por %p189, %p190
    %p193 = scmp.ne.s32.totalorder %s178, %s192
    %p194 = scmp.eq.s32.totalorder %s21, 0
    %p195 = por %p193, %p194
    %s196 = ssub.s32 %s15, %s22
    %p197 = scmp.eq.s32.totalorder %s196, 0
    %s199 = sadd.s32 %s198, 1
    %s200 = scalar_select %p197, %s198, %s199
    %p203 = pneg %p197
    %p204 = scmp.eq.s32.totalorder %s15, 1
    %p205 = por %p203, %p204
    %p206 = scmp.ne.s32.totalorder %s198, %s201
    %p207 = scmp.eq.s32.totalorder %s15, 0
    %p208 = por %p206, %p207
    %p209 = scmp.ne.s32.totalorder %s198, %s201
    %p210 = scmp.eq.s32.totalorder %s20, 1
    %p211 = por %p209, %p210
    %p212 = scmp.ne.s32.totalorder %s201, %s202
    %p213 = scmp.eq.s32.totalorder %s20, 0
    %p214 = por %p212, %p213
    %p215 = scmp.ne.s32.totalorder %s201, %s202
    %p216 = scmp.eq.s32.totalorder %s21, 1
    %p217 = por %p215, %p216
    %p219 = scmp.ne.s32.totalorder %s202, %s218
    %p220 = scmp.eq.s32.totalorder %s21, 0
    %p221 = por %p219, %p220
    %p222 = scmp.le.s32.totalorder 1, %s15
    %p223 = scmp.lt.s32.totalorder %s15, 3
    %p224 = pnand %p222, %p223
    %p225 = pneg %p224
    // Predicated region
    $region9: #{da_forward.5} parent=5 // pred_check
      _
    $region10: #{da_forward.5} parent=5 // pred_check_branch
      %227 = sbr.rel (%p224) target = $region12
    $region11: #{da_forward.5} parent=5 // pred_region
      %s228 = ssub.s32 %s15, 1
      // Predicated region
      $region13: #{da_forward.5} parent=11 // pred_check
        %p229 = pneg %p62
      $region14: #{da_forward.5} parent=11 // pred_check_branch
        %231 = sbr.rel (%p229) target = $region16
      $region15: #{da_forward.5} parent=11 // pred_region
        _
      $region16: #{da_forward.5} parent=11 // pred_fallthru
        _
      // Predicated region
      $region17: #{da_forward.5} parent=11 // pred_check
        %p232 = pneg %p83
      $region18: #{da_forward.5} parent=11 // pred_check_branch
        %234 = sbr.rel (%p232) target = $region20
      $region19: #{da_forward.5} parent=11 // pred_region
        _
      $region20: #{da_forward.5} parent=11 // pred_fallthru
        _
      // Predicated region
      $region21: #{da_forward.5} parent=11 // pred_check
        %p235 = pneg %p104
      $region22: #{da_forward.5} parent=11 // pred_check_branch
        %237 = sbr.rel (%p235) target = $region24
      $region23: #{da_forward.5} parent=11 // pred_region
        _
      $region24: #{da_forward.5} parent=11 // pred_fallthru
        _
      // Predicated region
      $region25: #{da_forward.5} parent=11 // pred_check
        %p238 = pneg %p125
      $region26: #{da_forward.5} parent=11 // pred_check_branch
        %240 = sbr.rel (%p238) target = $region28
      $region27: #{da_forward.5} parent=11 // pred_region
        _
      $region28: #{da_forward.5} parent=11 // pred_fallthru
        _
      // Predicated region
      $region29: #{da_forward.5} parent=11 // pred_check
        %p241 = pneg %p146
      $region30: #{da_forward.5} parent=11 // pred_check_branch
        %243 = sbr.rel (%p241) target = $region32
      $region31: #{da_forward.5} parent=11 // pred_region
        _
      $region32: #{da_forward.5} parent=11 // pred_fallthru
        _
      // Predicated region
      $region33: #{da_forward.5} parent=11 // pred_check
        %p244 = pneg %p167
      $region34: #{da_forward.5} parent=11 // pred_check_branch
        %246 = sbr.rel (%p244) target = $region36
      $region35: #{da_forward.5} parent=11 // pred_region
        _
      $region36: #{da_forward.5} parent=11 // pred_fallthru
        _
      // Predicated region
      $region37: #{da_forward.5} parent=11 // pred_check
        %p247 = pneg %p188
      $region38: #{da_forward.5} parent=11 // pred_check_branch
        %249 = sbr.rel (%p247) target = $region40
      $region39: #{da_forward.5} parent=11 // pred_region
        _
      $region40: #{da_forward.5} parent=11 // pred_fallthru
        _
    $region12: #{da_forward.5} parent=5 // pred_fallthru
      _
    %p250 = scmp.lt.s32.totalorder %s15, 2
    // Predicated region
    $region41: #{da_forward.5} parent=5 // pred_check
      %p251 = pneg %p250
    $region42: #{da_forward.5} parent=5 // pred_check_branch
      %253 = sbr.rel (%p251) target = $region44
    $region43: #{da_forward.5} parent=5 // pred_region
      // Predicated region
      $region45: #{da_forward.5} parent=43 // pred_check
        %p254 = pneg %p35
      $region46: #{da_forward.5} parent=43 // pred_check_branch
        %256 = sbr.rel (%p254) target = $region48
      $region47: #{da_forward.5} parent=43 // pred_region
        %p257 = scmp.lt.s32.totalorder %s15, 1
        %s258 = scalar_select %p257, %s15, 1
        %s259 = smul.addr %s258, 8
        %s260 = smul.addr %s259, 8
        %s261 = scalar_lea.vmem %s0, %s260
      $region48: #{da_forward.5} parent=43 // pred_fallthru
        _
    $region44: #{da_forward.5} parent=5 // pred_fallthru
      _
    %p262 = scmp.le.s32.totalorder 1, %s15
    %p263 = scmp.lt.s32.totalorder %s15, 3
    %p264 = pnand %p262, %p263
    %p265 = pneg %p264
    // Predicated region
    $region49: #{da_forward.5} parent=5 // pred_check
      _
    $region50: #{da_forward.5} parent=5 // pred_check_branch
      %267 = sbr.rel (%p264) target = $region52
    $region51: #{da_forward.5} parent=5 // pred_region
      %s268 = ssub.s32 %s15, 1
      %p269 = scmp.lt.s32.totalorder %s20, 1
      %s270 = scalar_select %p269, %s20, 1
      %s271 = smul.addr %s270, 8
      %s272 = smul.addr %s271, 8
      %s273 = scalar_lea.vmem %s0, %s272
      %p274 = pneg %p41
      %p275 = pneg %p38
      %p276 = pneg %p62
      %p277 = pneg %p59
      %p278 = pneg %p83
      %p279 = pneg %p80
      %p280 = pneg %p104
      %p281 = pneg %p101
      %p282 = pneg %p125
      %p283 = pneg %p122
      %p284 = pneg %p146
      %p285 = pneg %p143
      %p286 = pneg %p167
      %p287 = pneg %p164
      %p288 = pneg %p188
      %p289 = pneg %p185
      %p290 = pneg %p214
      %p291 = pneg %p211
      %p292 = scmp.lt.s32.totalorder %s20, 1
      %s293 = scalar_select %p292, %s20, 1
      %s294 = smul.addr %s293, 8
      %s295 = smul.addr %s294, 8
      %s296 = scalar_lea.vmem %s8, %s295
      %p297 = scmp.lt.s32.totalorder %s20, 1
      %s298 = scalar_select %p297, %s20, 1
      %s299 = smul.addr %s298, 8
      %s300 = smul.addr %s299, 8
      %s301 = scalar_lea.vmem %s0, %s300
      %p302 = scmp.lt.s32.totalorder %s20, 1
      %s303 = scalar_select %p302, %s20, 1
      %s304 = smul.addr %s303, 8
      %s305 = smul.addr %s304, 8
      %s306 = scalar_lea.vmem %s8, %s305
      %v308 = vld [vmem:[%s301] sm:$0xff]
      %v309 = vld [vmem:[%s301 + $0x8] sm:$0xff]
      %v310 = vld [vmem:[%s301 + $0x10] sm:$0xff]
      %v311 = vld [vmem:[%s301 + $0x18] sm:$0xff]
      %v312 = vld [vmem:[%s301 + $0x20] sm:$0xff]
      %v313 = vld [vmem:[%s301 + $0x28] sm:$0xff]
      %v314 = vld [vmem:[%s301 + $0x30] sm:$0xff]
      %v315 = vld [vmem:[%s301 + $0x38] sm:$0xff]
      %v316 = vpack.c.bf16 %v309, %v308
      %v317 = vpack.c.bf16 %v311, %v310
      %v318 = vpack.c.bf16 %v313, %v312
      %v319 = vpack.c.bf16 %v315, %v314
      %v320 = vld [vmem:[%s1] sm:$0xf]
      %v321 = vld [vmem:[%s1 + $0x4] sm:$0xf]
      %v322 = vld [vmem:[%s1 + $0x8] sm:$0xf]
      %v323 = vld [vmem:[%s1 + $0xc] sm:$0xf]
      %v324 = vld [vmem:[%s1 + $0x10] sm:$0xf]
      %v325 = vld [vmem:[%s1 + $0x14] sm:$0xf]
      %v326 = vld [vmem:[%s1 + $0x18] sm:$0xf]
      %v327 = vld [vmem:[%s1 + $0x1c] sm:$0xf]
      %v328 = vld [vmem:[%s2] sm:$0x1]
      %v330 = vlaneseq
      %v331 = vshrl.u32 %v330, 7
      %v332 = vsub.s32 0, %v331
      %v333 = vrot.slane %v328, %v332
      %v343 = vunpack.c.l.b16 %v320
      %v344 = vunpack.c.l.b16 %v321
      %v345 = vunpack.c.l.b16 %v322
      %v346 = vunpack.c.l.b16 %v323
      %v347 = vunpack.c.l.b16 %v324
      %v348 = vunpack.c.l.b16 %v325
      %v349 = vunpack.c.l.b16 %v326
      %v350 = vunpack.c.l.b16 %v327
      %v351 = vpack.c.b16 %v344, %v343
      %v352 = vpack.c.b16 %v346, %v345
      %v353 = vpack.c.b16 %v348, %v347
      %v354 = vpack.c.b16 %v350, %v349
      %vm359 = vcmask 523264
      %v361 = vsel %vm359, %v316, 0
      %v364 = vsel %vm359, %v317, 0
      %v367 = vsel %vm359, %v318, 0
      %v370 = vsel %vm359, %v319, 0
      %372 = vmatprep.subr.bf16.mxu0 0
      %373 = vmatpush1.bf16.msra.mxu0 0
      %374 = vmatprep.subr.bf16.mxu0 0
      %375 = vmatpush1.bf16.msra.mxu0 0
      %376 = vmatprep.subr.bf16.mxu0 0
      %377 = vmatpush1.bf16.msra.mxu0 0
      %378 = vmatprep.subr.bf16.mxu0 0
      %379 = vmatpush1.bf16.msra.mxu0 0
      %380 = vmatprep.subr.bf16.mxu0 0
      %381 = vmatpush1.bf16.msra.mxu0 %v354
      %382 = vmatprep.subr.bf16.mxu0 0
      %383 = vmatpush1.bf16.msra.mxu0 %v353
      %384 = vmatprep.subr.bf16.mxu0 0
      %385 = vmatpush1.bf16.msra.mxu0 %v352
      %386 = vmatprep.subr.bf16.mxu0 0
      %387 = vmatpush1.bf16.msra.mxu0 %v351
      %388 = vmatprep.subr.bf16.mxu0 0
      %389 = vmatpush2.bf16.msra.mxu0 0
      %390 = vmatprep.subr.bf16.mxu0 0
      %391 = vmatpush2.bf16.msra.mxu0 0
      %392 = vmatprep.subr.bf16.mxu0 0
      %393 = vmatpush2.bf16.msra.mxu0 0
      %394 = vmatprep.subr.bf16.mxu0 0
      %395 = vmatpush2.bf16.msra.mxu0 0
      %396 = vmatprep.subr.bf16.mxu0 0
      %397 = vmatpush2.bf16.msra.mxu0 0
      %398 = vmatprep.subr.bf16.mxu0 0
      %399 = vmatpush2.bf16.msra.mxu0 0
      %400 = vmatprep.subr.bf16.mxu0 0
      %401 = vmatpush2.bf16.msra.mxu0 0
      %402 = vmatprep.subr.bf16.mxu0 0
      %403 = vmatpush2.bf16.msra.mxu0 0
      %404 = vmatprep.mubr.bf16.mxu0 0
      %405 = vmatmul.mubr.bf16.gmra.mxu0 %v361
      %v406 = vpop.f32.mrf.mxu0
      %v407 = vadd.f32 %v333, %v406
      %v408 = vpop.f32.mrf.mxu0
      %v409 = vpop.f32.mrf.mxu0
      %v410 = vadd.f32 %v333, %v409
      %v411 = vpop.f32.mrf.mxu0
      %412 = vmatprep.mubr.bf16.mxu0 0
      %413 = vmatmul.mubr.bf16.gmra.mxu0 %v364
      %v414 = vpop.f32.mrf.mxu0
      %v415 = vadd.f32 %v333, %v414
      %v416 = vpop.f32.mrf.mxu0
      %v417 = vpop.f32.mrf.mxu0
      %v418 = vadd.f32 %v333, %v417
      %v419 = vpop.f32.mrf.mxu0
      %420 = vmatprep.mubr.bf16.mxu0 0
      %421 = vmatmul.mubr.bf16.gmra.mxu0 %v367
      %v422 = vpop.f32.mrf.mxu0
      %v423 = vadd.f32 %v333, %v422
      %v424 = vpop.f32.mrf.mxu0
      %v425 = vpop.f32.mrf.mxu0
      %v426 = vadd.f32 %v333, %v425
      %v427 = vpop.f32.mrf.mxu0
      %428 = vmatprep.mubr.bf16.mxu0 0
      %429 = vmatmul.mubr.bf16.gmra.mxu0 %v370
      %v430 = vpop.f32.mrf.mxu0
      %v431 = vadd.f32 %v333, %v430
      %v432 = vpop.f32.mrf.mxu0
      %v433 = vpop.f32.mrf.mxu0
      %v434 = vadd.f32 %v333, %v433
      %v435 = vpop.f32.mrf.mxu0
      %436 = vdwg.mxu0
      %v437 = vld [vmem:[%s3] sm:$0xf]
      %v438 = vld [vmem:[%s3 + $0x4] sm:$0xf]
      %v439 = vld [vmem:[%s3 + $0x8] sm:$0xf]
      %v440 = vld [vmem:[%s3 + $0xc] sm:$0xf]
      %v441 = vld [vmem:[%s3 + $0x10] sm:$0xf]
      %v442 = vld [vmem:[%s3 + $0x14] sm:$0xf]
      %v443 = vld [vmem:[%s3 + $0x18] sm:$0xf]
      %v444 = vld [vmem:[%s3 + $0x1c] sm:$0xf]
      %v445 = vld [vmem:[%s4] sm:$0x1]
      %v447 = vlaneseq
      %v448 = vshrl.u32 %v447, 7
      %v449 = vsub.s32 0, %v448
      %v450 = vrot.slane %v445, %v449
      %v460 = vunpack.c.l.b16 %v437
      %v461 = vunpack.c.l.b16 %v438
      %v462 = vunpack.c.l.b16 %v439
      %v463 = vunpack.c.l.b16 %v440
      %v464 = vunpack.c.l.b16 %v441
      %v465 = vunpack.c.l.b16 %v442
      %v466 = vunpack.c.l.b16 %v443
      %v467 = vunpack.c.l.b16 %v444
      %v468 = vpack.c.b16 %v461, %v460
      %v469 = vpack.c.b16 %v463, %v462
      %v470 = vpack.c.b16 %v465, %v464
      %v471 = vpack.c.b16 %v467, %v466
      %476 = vmatprep.subr.bf16.mxu0 0
      %477 = vmatpush1.bf16.msra.mxu0 0
      %478 = vmatprep.subr.bf16.mxu0 0
      %479 = vmatpush1.bf16.msra.mxu0 0
      %480 = vmatprep.subr.bf16.mxu0 0
      %481 = vmatpush1.bf16.msra.mxu0 0
      %482 = vmatprep.subr.bf16.mxu0 0
      %483 = vmatpush1.bf16.msra.mxu0 0
      %484 = vmatprep.subr.bf16.mxu0 0
      %485 = vmatpush1.bf16.msra.mxu0 %v471
      %486 = vmatprep.subr.bf16.mxu0 0
      %487 = vmatpush1.bf16.msra.mxu0 %v470
      %488 = vmatprep.subr.bf16.mxu0 0
      %489 = vmatpush1.bf16.msra.mxu0 %v469
      %490 = vmatprep.subr.bf16.mxu0 0
      %491 = vmatpush1.bf16.msra.mxu0 %v468
      %492 = vmatprep.subr.bf16.mxu0 0
      %493 = vmatpush2.bf16.msra.mxu0 0
      %494 = vmatprep.subr.bf16.mxu0 0
      %495 = vmatpush2.bf16.msra.mxu0 0
      %496 = vmatprep.subr.bf16.mxu0 0
      %497 = vmatpush2.bf16.msra.mxu0 0
      %498 = vmatprep.subr.bf16.mxu0 0
      %499 = vmatpush2.bf16.msra.mxu0 0
      %500 = vmatprep.subr.bf16.mxu0 0
      %501 = vmatpush2.bf16.msra.mxu0 0
      %502 = vmatprep.subr.bf16.mxu0 0
      %503 = vmatpush2.bf16.msra.mxu0 0
      %504 = vmatprep.subr.bf16.mxu0 0
      %505 = vmatpush2.bf16.msra.mxu0 0
      %506 = vmatprep.subr.bf16.mxu0 0
      %507 = vmatpush2.bf16.msra.mxu0 0
      %508 = vmatprep.mubr.bf16.mxu0 0
      %509 = vmatmul.mubr.bf16.gmra.mxu0 %v361
      %v510 = vpop.f32.mrf.mxu0
      %v511 = vadd.f32 %v450, %v510
      %v512 = vpop.f32.mrf.mxu0
      %v513 = vpop.f32.mrf.mxu0
      %v514 = vadd.f32 %v450, %v513
      %v515 = vpop.f32.mrf.mxu0
      %516 = vmatprep.mubr.bf16.mxu0 0
      %517 = vmatmul.mubr.bf16.gmra.mxu0 %v364
      %v518 = vpop.f32.mrf.mxu0
      %v519 = vadd.f32 %v450, %v518
      %v520 = vpop.f32.mrf.mxu0
      %v521 = vpop.f32.mrf.mxu0
      %v522 = vadd.f32 %v450, %v521
      %v523 = vpop.f32.mrf.mxu0
      %524 = vmatprep.mubr.bf16.mxu0 0
      %525 = vmatmul.mubr.bf16.gmra.mxu0 %v367
      %v526 = vpop.f32.mrf.mxu0
      %v527 = vadd.f32 %v450, %v526
      %v528 = vpop.f32.mrf.mxu0
      %v529 = vpop.f32.mrf.mxu0
      %v530 = vadd.f32 %v450, %v529
      %v531 = vpop.f32.mrf.mxu0
      %532 = vmatprep.mubr.bf16.mxu0 0
      %533 = vmatmul.mubr.bf16.gmra.mxu0 %v370
      %v534 = vpop.f32.mrf.mxu0
      %v535 = vadd.f32 %v450, %v534
      %v536 = vpop.f32.mrf.mxu0
      %v537 = vpop.f32.mrf.mxu0
      %v538 = vadd.f32 %v450, %v537
      %v539 = vpop.f32.mrf.mxu0
      %540 = vdwg.mxu0
      %v541 = vld [vmem:[%s5] sm:$0xf]
      %v542 = vld [vmem:[%s5 + $0x4] sm:$0xf]
      %v543 = vld [vmem:[%s5 + $0x8] sm:$0xf]
      %v544 = vld [vmem:[%s5 + $0xc] sm:$0xf]
      %v545 = vld [vmem:[%s5 + $0x10] sm:$0xf]
      %v546 = vld [vmem:[%s5 + $0x14] sm:$0xf]
      %v547 = vld [vmem:[%s5 + $0x18] sm:$0xf]
      %v548 = vld [vmem:[%s5 + $0x1c] sm:$0xf]
      %v549 = vld [vmem:[%s6] sm:$0x1]
      %v551 = vlaneseq
      %v552 = vshrl.u32 %v551, 7
      %v553 = vsub.s32 0, %v552
      %v554 = vrot.slane %v549, %v553
      %v564 = vunpack.c.l.b16 %v541
      %v565 = vunpack.c.l.b16 %v542
      %v566 = vunpack.c.l.b16 %v543
      %v567 = vunpack.c.l.b16 %v544
      %v568 = vunpack.c.l.b16 %v545
      %v569 = vunpack.c.l.b16 %v546
      %v570 = vunpack.c.l.b16 %v547
      %v571 = vunpack.c.l.b16 %v548
      %v572 = vpack.c.b16 %v565, %v564
      %v573 = vpack.c.b16 %v567, %v566
      %v574 = vpack.c.b16 %v569, %v568
      %v575 = vpack.c.b16 %v571, %v570
      %580 = vmatprep.subr.bf16.mxu0 0
      %581 = vmatpush1.bf16.msra.mxu0 0
      %582 = vmatprep.subr.bf16.mxu0 0
      %583 = vmatpush1.bf16.msra.mxu0 0
      %584 = vmatprep.subr.bf16.mxu0 0
      %585 = vmatpush1.bf16.msra.mxu0 0
      %586 = vmatprep.subr.bf16.mxu0 0
      %587 = vmatpush1.bf16.msra.mxu0 0
      %588 = vmatprep.subr.bf16.mxu0 0
      %589 = vmatpush1.bf16.msra.mxu0 %v575
      %590 = vmatprep.subr.bf16.mxu0 0
      %591 = vmatpush1.bf16.msra.mxu0 %v574
      %592 = vmatprep.subr.bf16.mxu0 0
      %593 = vmatpush1.bf16.msra.mxu0 %v573
      %594 = vmatprep.subr.bf16.mxu0 0
      %595 = vmatpush1.bf16.msra.mxu0 %v572
      %596 = vmatprep.subr.bf16.mxu0 0
      %597 = vmatpush2.bf16.msra.mxu0 0
      %598 = vmatprep.subr.bf16.mxu0 0
      %599 = vmatpush2.bf16.msra.mxu0 0
      %600 = vmatprep.subr.bf16.mxu0 0
      %601 = vmatpush2.bf16.msra.mxu0 0
      %602 = vmatprep.subr.bf16.mxu0 0
      %603 = vmatpush2.bf16.msra.mxu0 0
      %604 = vmatprep.subr.bf16.mxu0 0
      %605 = vmatpush2.bf16.msra.mxu0 0
      %606 = vmatprep.subr.bf16.mxu0 0
      %607 = vmatpush2.bf16.msra.mxu0 0
      %608 = vmatprep.subr.bf16.mxu0 0
      %609 = vmatpush2.bf16.msra.mxu0 0
      %610 = vmatprep.subr.bf16.mxu0 0
      %611 = vmatpush2.bf16.msra.mxu0 0
      %612 = vmatprep.mubr.bf16.mxu0 0
      %613 = vmatmul.mubr.bf16.gmra.mxu0 %v361
      %v614 = vpop.f32.mrf.mxu0
      %v615 = vadd.f32 %v554, %v614
      %v616 = vpop.f32.mrf.mxu0
      %v617 = vpop.f32.mrf.mxu0
      %v618 = vadd.f32 %v554, %v617
      %v619 = vpop.f32.mrf.mxu0
      %620 = vmatprep.mubr.bf16.mxu0 0
      %621 = vmatmul.mubr.bf16.gmra.mxu0 %v364
      %v622 = vpop.f32.mrf.mxu0
      %v623 = vadd.f32 %v554, %v622
      %v624 = vpop.f32.mrf.mxu0
      %v625 = vpop.f32.mrf.mxu0
      %v626 = vadd.f32 %v554, %v625
      %v627 = vpop.f32.mrf.mxu0
      %628 = vmatprep.mubr.bf16.mxu0 0
      %629 = vmatmul.mubr.bf16.gmra.mxu0 %v367
      %v630 = vpop.f32.mrf.mxu0
      %v631 = vadd.f32 %v554, %v630
      %v632 = vpop.f32.mrf.mxu0
      %v633 = vpop.f32.mrf.mxu0
      %v634 = vadd.f32 %v554, %v633
      %v635 = vpop.f32.mrf.mxu0
      %636 = vmatprep.mubr.bf16.mxu0 0
      %637 = vmatmul.mubr.bf16.gmra.mxu0 %v370
      %v638 = vpop.f32.mrf.mxu0
      %v639 = vadd.f32 %v554, %v638
      %v640 = vpop.f32.mrf.mxu0
      %v641 = vpop.f32.mrf.mxu0
      %v642 = vadd.f32 %v554, %v641
      %v643 = vpop.f32.mrf.mxu0
      %644 = vdwg.mxu0
      %v645 = vpack.c.bf16 %v410, %v407
      %v646 = vpack.c.bf16 %v418, %v415
      %v647 = vpack.c.bf16 %v426, %v423
      %v648 = vpack.c.bf16 %v434, %v431
      %v649 = vpack.c.bf16 %v514, %v511
      %v650 = vpack.c.bf16 %v522, %v519
      %v651 = vpack.c.bf16 %v530, %v527
      %v652 = vpack.c.bf16 %v538, %v535
      %vm653 = vcmask 64512
      %v655 = vsel %vm653, %v645, 0
      %v658 = vsel %vm653, %v646, 0
      %v661 = vsel %vm653, %v647, 0
      %v664 = vsel %vm653, %v648, 0
      %v667 = vsel %vm653, %v649, 0
      %v670 = vsel %vm653, %v650, 0
      %v673 = vsel %vm653, %v651, 0
      %v676 = vsel %vm653, %v652, 0
      %678 = vmatprep.subr.bf16.mxu0 0
      %679 = vmatpush1.bf16.xpose.msra.mxu0 0
      %680 = vmatprep.subr.bf16.mxu0 0
      %681 = vmatpush1.bf16.xpose.msra.mxu0 0
      %682 = vmatprep.subr.bf16.mxu0 0
      %683 = vmatpush1.bf16.xpose.msra.mxu0 0
      %684 = vmatprep.subr.bf16.mxu0 0
      %685 = vmatpush1.bf16.xpose.msra.mxu0 0
      %686 = vmatprep.subr.bf16.mxu0 0
      %687 = vmatpush1.bf16.xpose.msra.mxu0 %v676
      %688 = vmatprep.subr.bf16.mxu0 0
      %689 = vmatpush1.bf16.xpose.msra.mxu0 %v673
      %690 = vmatprep.subr.bf16.mxu0 0
      %691 = vmatpush1.bf16.xpose.msra.mxu0 %v670
      %692 = vmatprep.subr.bf16.mxu0 0
      %693 = vmatpush1.bf16.xpose.msra.mxu0 %v667
      %694 = vmatprep.subr.bf16.mxu0 0
      %695 = vmatpush2.bf16.xpose.msra.mxu0 0
      %696 = vmatprep.subr.bf16.mxu0 0
      %697 = vmatpush2.bf16.xpose.msra.mxu0 0
      %698 = vmatprep.subr.bf16.mxu0 0
      %699 = vmatpush2.bf16.xpose.msra.mxu0 0
      %700 = vmatprep.subr.bf16.mxu0 0
      %701 = vmatpush2.bf16.xpose.msra.mxu0 0
      %702 = vmatprep.subr.bf16.mxu0 0
      %703 = vmatpush2.bf16.xpose.msra.mxu0 0
      %704 = vmatprep.subr.bf16.mxu0 0
      %705 = vmatpush2.bf16.xpose.msra.mxu0 0
      %706 = vmatprep.subr.bf16.mxu0 0
      %707 = vmatpush2.bf16.xpose.msra.mxu0 0
      %708 = vmatprep.subr.bf16.mxu0 0
      %709 = vmatpush2.bf16.xpose.msra.mxu0 0
      %710 = vmatprep.mubr.bf16.mxu0 0
      %711 = vmatmul.mubr.bf16.gmra.mxu0 %v655
      %v712 = vpop.f32.mrf.mxu0
      %v713 = vadd.f32 0.0, %v712
      %v714 = vpop.f32.mrf.mxu0
      %v715 = vpop.f32.mrf.mxu0
      %v716 = vadd.f32 0.0, %v715
      %v717 = vpop.f32.mrf.mxu0
      %718 = vmatprep.mubr.bf16.mxu0 0
      %719 = vmatmul.mubr.bf16.gmra.mxu0 %v658
      %v720 = vpop.f32.mrf.mxu0
      %v721 = vadd.f32 0.0, %v720
      %v722 = vpop.f32.mrf.mxu0
      %v723 = vpop.f32.mrf.mxu0
      %v724 = vadd.f32 0.0, %v723
      %v725 = vpop.f32.mrf.mxu0
      %726 = vmatprep.mubr.bf16.mxu0 0
      %727 = vmatmul.mubr.bf16.gmra.mxu0 %v661
      %v728 = vpop.f32.mrf.mxu0
      %v729 = vadd.f32 0.0, %v728
      %v730 = vpop.f32.mrf.mxu0
      %v731 = vpop.f32.mrf.mxu0
      %v732 = vadd.f32 0.0, %v731
      %v733 = vpop.f32.mrf.mxu0
      %734 = vmatprep.mubr.bf16.mxu0 0
      %735 = vmatmul.mubr.bf16.gmra.mxu0 %v664
      %v736 = vpop.f32.mrf.mxu0
      %v737 = vadd.f32 0.0, %v736
      %v738 = vpop.f32.mrf.mxu0
      %v739 = vpop.f32.mrf.mxu0
      %v740 = vadd.f32 0.0, %v739
      %v741 = vpop.f32.mrf.mxu0
      %742 = vdwg.mxu0
      %v743 = vsel %vm359, %v713, -inf
      %744 = vmax.xlane.f32.xlu0 %v743
      %v745 = vpop.xlane.xlu0 %744
      %v746 = vsel %vm359, %v716, -inf
      %747 = vmax.xlane.f32.xlu0 %v746
      %v748 = vpop.xlane.xlu0 %747
      %v749 = vsel %vm359, %v721, -inf
      %750 = vmax.xlane.f32.xlu0 %v749
      %v751 = vpop.xlane.xlu0 %750
      %v752 = vsel %vm359, %v724, -inf
      %753 = vmax.xlane.f32.xlu0 %v752
      %v754 = vpop.xlane.xlu0 %753
      %v755 = vsel %vm359, %v729, -inf
      %756 = vmax.xlane.f32.xlu0 %v755
      %v757 = vpop.xlane.xlu0 %756
      %v758 = vsel %vm359, %v732, -inf
      %759 = vmax.xlane.f32.xlu0 %v758
      %v760 = vpop.xlane.xlu0 %759
      %v761 = vsel %vm359, %v737, -inf
      %762 = vmax.xlane.f32.xlu0 %v761
      %v763 = vpop.xlane.xlu0 %762
      %v764 = vsel %vm359, %v740, -inf
      %765 = vmax.xlane.f32.xlu0 %v764
      %v766 = vpop.xlane.xlu0 %765
      %v767 = vsub.f32 %v713, %v745
      %v768 = vsub.f32 %v716, %v748
      %v769 = vsub.f32 %v721, %v751
      %v770 = vsub.f32 %v724, %v754
      %v771 = vsub.f32 %v729, %v757
      %v772 = vsub.f32 %v732, %v760
      %v773 = vsub.f32 %v737, %v763
      %v774 = vsub.f32 %v740, %v766
      %v775 = vmul.f32 %v767, 1.442695
      %v776 = vpow.pop %v775
      %v777 = vmul.f32 %v768, 1.442695
      %v778 = vpow.pop %v777
      %v779 = vmul.f32 %v769, 1.442695
      %v780 = vpow.pop %v779
      %v781 = vmul.f32 %v770, 1.442695
      %v782 = vpow.pop %v781
      %v783 = vmul.f32 %v771, 1.442695
      %v784 = vpow.pop %v783
      %v785 = vmul.f32 %v772, 1.442695
      %v786 = vpow.pop %v785
      %v787 = vmul.f32 %v773, 1.442695
      %v788 = vpow.pop %v787
      %v789 = vmul.f32 %v774, 1.442695
      %v790 = vpow.pop %v789
      %v791 = vsel %vm359, %v776, 0.0
      %792 = vadd.xlane.f32.xlu0 %v791
      %v793 = vpop.xlane.xlu0 %792
      %v794 = vsel %vm359, %v778, 0.0
      %795 = vadd.xlane.f32.xlu0 %v794
      %v796 = vpop.xlane.xlu0 %795
      %v797 = vsel %vm359, %v780, 0.0
      %798 = vadd.xlane.f32.xlu0 %v797
      %v799 = vpop.xlane.xlu0 %798
      %v800 = vsel %vm359, %v782, 0.0
      %801 = vadd.xlane.f32.xlu0 %v800
      %v802 = vpop.xlane.xlu0 %801
      %v803 = vsel %vm359, %v784, 0.0
      %804 = vadd.xlane.f32.xlu0 %v803
      %v805 = vpop.xlane.xlu0 %804
      %v806 = vsel %vm359, %v786, 0.0
      %807 = vadd.xlane.f32.xlu0 %v806
      %v808 = vpop.xlane.xlu0 %807
      %v809 = vsel %vm359, %v788, 0.0
      %810 = vadd.xlane.f32.xlu0 %v809
      %v811 = vpop.xlane.xlu0 %810
      %v812 = vsel %vm359, %v790, 0.0
      %813 = vadd.xlane.f32.xlu0 %v812
      %v814 = vpop.xlane.xlu0 %813
      %v815 = vrcp.pop %v793
      %v816 = vmul.f32 %v776, %v815
      %v817 = vrcp.pop %v796
      %v818 = vmul.f32 %v778, %v817
      %v819 = vrcp.pop %v799
      %v820 = vmul.f32 %v780, %v819
      %v821 = vrcp.pop %v802
      %v822 = vmul.f32 %v782, %v821
      %v823 = vrcp.pop %v805
      %v824 = vmul.f32 %v784, %v823
      %v825 = vrcp.pop %v808
      %v826 = vmul.f32 %v786, %v825
      %v827 = vrcp.pop %v811
      %v828 = vmul.f32 %v788, %v827
      %v829 = vrcp.pop %v814
      %v830 = vmul.f32 %v790, %v829
      %v831 = vpack.c.bf16 %v818, %v816
      %v832 = vpack.c.bf16 %v822, %v820
      %v833 = vpack.c.bf16 %v826, %v824
      %v834 = vpack.c.bf16 %v830, %v828
      %v835 = vpack.c.bf16 %v618, %v615
      %v836 = vpack.c.bf16 %v626, %v623
      %v837 = vpack.c.bf16 %v634, %v631
      %v838 = vpack.c.bf16 %v642, %v639
      %v840 = vsel %vm359, %v831, 0
      %v843 = vsel %vm359, %v832, 0
      %v846 = vsel %vm359, %v833, 0
      %v849 = vsel %vm359, %v834, 0
      %851 = vmatprep.subr.bf16.mxu0 0
      %852 = vmatpush1.bf16.msra.mxu0 0
      %853 = vmatprep.subr.bf16.mxu0 0
      %854 = vmatpush1.bf16.msra.mxu0 0
      %855 = vmatprep.subr.bf16.mxu0 0
      %856 = vmatpush1.bf16.msra.mxu0 0
      %857 = vmatprep.subr.bf16.mxu0 0
      %858 = vmatpush1.bf16.msra.mxu0 0
      %859 = vmatprep.subr.bf16.mxu0 0
      %860 = vmatpush1.bf16.msra.mxu0 %v838
      %861 = vmatprep.subr.bf16.mxu0 0
      %862 = vmatpush1.bf16.msra.mxu0 %v837
      %863 = vmatprep.subr.bf16.mxu0 0
      %864 = vmatpush1.bf16.msra.mxu0 %v836
      %865 = vmatprep.subr.bf16.mxu0 0
      %866 = vmatpush1.bf16.msra.mxu0 %v835
      %867 = vmatprep.subr.bf16.mxu0 0
      %868 = vmatpush2.bf16.msra.mxu0 0
      %869 = vmatprep.subr.bf16.mxu0 0
      %870 = vmatpush2.bf16.msra.mxu0 0
      %871 = vmatprep.subr.bf16.mxu0 0
      %872 = vmatpush2.bf16.msra.mxu0 0
      %873 = vmatprep.subr.bf16.mxu0 0
      %874 = vmatpush2.bf16.msra.mxu0 0
      %875 = vmatprep.subr.bf16.mxu0 0
      %876 = vmatpush2.bf16.msra.mxu0 0
      %877 = vmatprep.subr.bf16.mxu0 0
      %878 = vmatpush2.bf16.msra.mxu0 0
      %879 = vmatprep.subr.bf16.mxu0 0
      %880 = vmatpush2.bf16.msra.mxu0 0
      %881 = vmatprep.subr.bf16.mxu0 0
      %882 = vmatpush2.bf16.msra.mxu0 0
      %883 = vmatprep.mubr.bf16.mxu0 0
      %884 = vmatmul.mubr.bf16.gmra.mxu0 %v840
      %v885 = vpop.f32.mrf.mxu0
      %v886 = vadd.f32 0.0, %v885
      %v887 = vpop.f32.mrf.mxu0
      %v888 = vpop.f32.mrf.mxu0
      %v889 = vadd.f32 0.0, %v888
      %v890 = vpop.f32.mrf.mxu0
      %891 = vmatprep.mubr.bf16.mxu0 0
      %892 = vmatmul.mubr.bf16.gmra.mxu0 %v843
      %v893 = vpop.f32.mrf.mxu0
      %v894 = vadd.f32 0.0, %v893
      %v895 = vpop.f32.mrf.mxu0
      %v896 = vpop.f32.mrf.mxu0
      %v897 = vadd.f32 0.0, %v896
      %v898 = vpop.f32.mrf.mxu0
      %899 = vmatprep.mubr.bf16.mxu0 0
      %900 = vmatmul.mubr.bf16.gmra.mxu0 %v846
      %v901 = vpop.f32.mrf.mxu0
      %v902 = vadd.f32 0.0, %v901
      %v903 = vpop.f32.mrf.mxu0
      %v904 = vpop.f32.mrf.mxu0
      %v905 = vadd.f32 0.0, %v904
      %v906 = vpop.f32.mrf.mxu0
      %907 = vmatprep.mubr.bf16.mxu0 0
      %908 = vmatmul.mubr.bf16.gmra.mxu0 %v849
      %v909 = vpop.f32.mrf.mxu0
      %v910 = vadd.f32 0.0, %v909
      %v911 = vpop.f32.mrf.mxu0
      %v912 = vpop.f32.mrf.mxu0
      %v913 = vadd.f32 0.0, %v912
      %v914 = vpop.f32.mrf.mxu0
      %915 = vdwg.mxu0
      %s916 = sld [smem:[#allocation2]]
      %v917 = vstv %s916
      %v918 = vmul.f32 %v917, %v886
      %v919 = vmul.f32 %v917, %v889
      %v920 = vmul.f32 %v917, %v894
      %v921 = vmul.f32 %v917, %v897
      %v922 = vmul.f32 %v917, %v902
      %v923 = vmul.f32 %v917, %v905
      %v924 = vmul.f32 %v917, %v910
      %v925 = vmul.f32 %v917, %v913
      %v926 = vadd.f32 %v918, %v308
      %v927 = vadd.f32 %v919, %v309
      %v928 = vadd.f32 %v920, %v310
      %v929 = vadd.f32 %v921, %v311
      %v930 = vadd.f32 %v922, %v312
      %v931 = vadd.f32 %v923, %v313
      %v932 = vadd.f32 %v924, %v314
      %v933 = vadd.f32 %v925, %v315
      %934 = vst.msk [vmem:[%s306] sm:$0xff] %vm359, %v926
      %935 = vst.msk [vmem:[%s306 + $0x8] sm:$0xff] %vm359, %v927
      %936 = vst.msk [vmem:[%s306 + $0x10] sm:$0xff] %vm359, %v928
      %937 = vst.msk [vmem:[%s306 + $0x18] sm:$0xff] %vm359, %v929
      %938 = vst.msk [vmem:[%s306 + $0x20] sm:$0xff] %vm359, %v930
      %939 = vst.msk [vmem:[%s306 + $0x28] sm:$0xff] %vm359, %v931
      %940 = vst.msk [vmem:[%s306 + $0x30] sm:$0xff] %vm359, %v932
      %941 = vst.msk [vmem:[%s306 + $0x38] sm:$0xff] %vm359, %v933
      %p942 = scmp.lt.s32.totalorder %s20, 1
      %s943 = scalar_select %p942, %s20, 1
      %s944 = smul.addr %s943, 8
      %s945 = smul.addr %s944, 8
      %s946 = scalar_lea.vmem %s8, %s945
      // Predicated region
      $region53: #{da_forward.5} parent=51 // pred_check
        %p947 = pneg %p211
      $region54: #{da_forward.5} parent=51 // pred_check_branch
        %949 = sbr.rel (%p947) target = $region56
      $region55: #{da_forward.5} parent=51 // pred_region
        _
      $region56: #{da_forward.5} parent=51 // pred_fallthru
        _
    $region52: #{da_forward.5} parent=5 // pred_fallthru
      _
    %p950 = scmp.le.s32.totalorder 2, %s15
    // Predicated region
    $region57: #{da_forward.5} parent=5 // pred_check
      %p951 = pneg %p950
    $region58: #{da_forward.5} parent=5 // pred_check_branch
      %953 = sbr.rel (%p951) target = $region60
    $region59: #{da_forward.5} parent=5 // pred_region
      %s954 = ssub.s32 %s15, 2
      // Predicated region
      $region61: #{da_forward.5} parent=59 // pred_check
        %p955 = pneg %p217
      $region62: #{da_forward.5} parent=59 // pred_check_branch
        %957 = sbr.rel (%p955) target = $region64
      $region63: #{da_forward.5} parent=59 // pred_region
        %p958 = scmp.lt.s32.totalorder %s21, 1
        %s959 = scalar_select %p958, %s21, 1
        %s960 = smul.addr %s959, 8
        %s961 = smul.addr %s960, 8
        %s962 = scalar_lea.vmem %s8, %s961
      $region64: #{da_forward.5} parent=59 // pred_fallthru
        _
    $region60: #{da_forward.5} parent=5 // pred_fallthru
      _
  $region6: #{da_forward.5} parent=0 // loop_footer
    %s19 = sadd.s32 1, %s15
  $region7: #{da_forward.5} parent=0 // loop_footer_branch
    %14 = sbr.rel target = $region3
  $region8: #{da_forward.5} parent=0 // loop_exit
    _

// kernel: da_forward.7
$region0: #{da_forward.7}
  #allocation0 [shape = 'u32[]', space=smem, size = 0x4, offset = 0x4, fixed_abs, tag = 'smem constant byte address 0x4 - core index']
  #allocation1 [shape = 'u32[144,128]{1,0:T(1,128)}', space=vmem, size = 0x12000, scoped, tag = 'internal scratch']
  %s0 = inlined_call_operand.vmem [shape: bf16[128,576], index: 0, kind: input, shape index: {}]
  %s1 = inlined_call_operand.vmem [shape: bf16[576,64], index: 1, kind: input, shape index: {}]
  %s2 = inlined_call_operand.vmem [shape: f32[1,64], index: 2, kind: input, shape index: {}]
  %s3 = inlined_call_operand.vmem [shape: bf16[128,576], index: 3, kind: input, shape index: {}]
  %s4 = inlined_call_operand.vmem [shape: bf16[576,64], index: 4, kind: input, shape index: {}]
  %s5 = inlined_call_operand.vmem [shape: f32[1,64], index: 5, kind: input, shape index: {}]
  %s6 = inlined_call_operand.hbm [shape: f32[128,64], index: 6, kind: output, shape index: {}]
  %s7 = sld [smem:[#allocation0]]
  $region34: #{da_forward.7} parent=0
    _
  %s9 = ssub.s32 1, %s7
  %s10 = scalar_select 0, %s9, %s7
  $region1: #{da_forward.7} parent=0
    #allocation2 [shape = 'u8[65536]{0}', space=vmem, size = 0x10000, scoped, tag = 'output window, operand 0, single buffered']
    #allocation3 [shape = 's32[1]{0}', space=sflag, size = 0x4, scoped, tag = 'scoped memory for da_forward.7']
    %11 = vsyncpa [#allocation3], 0
    // Predicated region
    $region2: #{da_forward.7} parent=1 // pred_check
      _
    $region3: #{da_forward.7} parent=1 // pred_check_branch
      %13 = sbr.rel (0) target = $region5
    $region4: #{da_forward.7} parent=1 // pred_region
      _
    $region5: #{da_forward.7} parent=1 // pred_fallthru
      _
    // Predicated region
    $region6: #{da_forward.7} parent=1 // pred_check
      _
    $region7: #{da_forward.7} parent=1 // pred_check_branch
      %15 = sbr.rel (0) target = $region9
    $region8: #{da_forward.7} parent=1 // pred_region
      _
    $region9: #{da_forward.7} parent=1 // pred_fallthru
      _
    // Predicated region
    $region10: #{da_forward.7} parent=1 // pred_check
      _
    $region11: #{da_forward.7} parent=1 // pred_check_branch
      %17 = sbr.rel (0) target = $region13
    $region12: #{da_forward.7} parent=1 // pred_region
      _
    $region13: #{da_forward.7} parent=1 // pred_fallthru
      _
    // Predicated region
    $region14: #{da_forward.7} parent=1 // pred_check
      _
    $region15: #{da_forward.7} parent=1 // pred_check_branch
      %19 = sbr.rel (0) target = $region17
    $region16: #{da_forward.7} parent=1 // pred_region
      _
    $region17: #{da_forward.7} parent=1 // pred_fallthru
      _
    // Predicated region
    $region18: #{da_forward.7} parent=1 // pred_check
      _
    $region19: #{da_forward.7} parent=1 // pred_check_branch
      %21 = sbr.rel (0) target = $region21
    $region20: #{da_forward.7} parent=1 // pred_region
      _
    $region21: #{da_forward.7} parent=1 // pred_fallthru
      _
    // Predicated region
    $region22: #{da_forward.7} parent=1 // pred_check
      _
    $region23: #{da_forward.7} parent=1 // pred_check_branch
      %23 = sbr.rel (0) target = $region25
    $region24: #{da_forward.7} parent=1 // pred_region
      _
    $region25: #{da_forward.7} parent=1 // pred_fallthru
      _
    %v25 = vld [vmem:[%s0] sm:$0xff]
    %v26 = vld [vmem:[%s0 + $0x8] sm:$0xff]
    %v27 = vld [vmem:[%s0 + $0x10] sm:$0xf]
    %v28 = vld [vmem:[%s0 + $0x14] sm:$0xff]
    %v29 = vld [vmem:[%s0 + $0x1c] sm:$0xff]
    %v30 = vld [vmem:[%s0 + $0x24] sm:$0xf]
    %v31 = vld [vmem:[%s0 + $0x28] sm:$0xff]
    %v32 = vld [vmem:[%s0 + $0x30] sm:$0xff]
    %v33 = vld [vmem:[%s0 + $0x38] sm:$0xf]
    %v34 = vld [vmem:[%s0 + $0x3c] sm:$0xff]
    %v35 = vld [vmem:[%s0 + $0x44] sm:$0xff]
    %v36 = vld [vmem:[%s0 + $0x4c] sm:$0xf]
    %v37 = vld [vmem:[%s0 + $0x50] sm:$0xff]
    %v38 = vld [vmem:[%s0 + $0x58] sm:$0xff]
    %v39 = vld [vmem:[%s0 + $0x60] sm:$0xf]
    %v40 = vld [vmem:[%s0 + $0x64] sm:$0xff]
    %v41 = vld [vmem:[%s0 + $0x6c] sm:$0xff]
    %v42 = vld [vmem:[%s0 + $0x74] sm:$0xf]
    %v43 = vld [vmem:[%s0 + $0x78] sm:$0xff]
    %v44 = vld [vmem:[%s0 + $0x80] sm:$0xff]
    %v45 = vld [vmem:[%s0 + $0x88] sm:$0xf]
    %v46 = vld [vmem:[%s0 + $0x8c] sm:$0xff]
    %v47 = vld [vmem:[%s0 + $0x94] sm:$0xff]
    %v48 = vld [vmem:[%s0 + $0x9c] sm:$0xf]
    %v49 = vld [vmem:[%s0 + $0xa0] sm:$0xff]
    %v50 = vld [vmem:[%s0 + $0xa8] sm:$0xff]
    %v51 = vld [vmem:[%s0 + $0xb0] sm:$0xf]
    %v52 = vld [vmem:[%s0 + $0xb4] sm:$0xff]
    %v53 = vld [vmem:[%s0 + $0xbc] sm:$0xff]
    %v54 = vld [vmem:[%s0 + $0xc4] sm:$0xf]
    %v55 = vld [vmem:[%s0 + $0xc8] sm:$0xff]
    %v56 = vld [vmem:[%s0 + $0xd0] sm:$0xff]
    %v57 = vld [vmem:[%s0 + $0xd8] sm:$0xf]
    %v58 = vld [vmem:[%s0 + $0xdc] sm:$0xff]
    %v59 = vld [vmem:[%s0 + $0xe4] sm:$0xff]
    %v60 = vld [vmem:[%s0 + $0xec] sm:$0xf]
    %v61 = vld [vmem:[%s0 + $0xf0] sm:$0xff]
    %v62 = vld [vmem:[%s0 + $0xf8] sm:$0xff]
    %v63 = vld [vmem:[%s0 + $0x100] sm:$0xf]
    %v64 = vld [vmem:[%s0 + $0x104] sm:$0xff]
    %v65 = vld [vmem:[%s0 + $0x10c] sm:$0xff]
    %v66 = vld [vmem:[%s0 + $0x114] sm:$0xf]
    %v67 = vld [vmem:[%s0 + $0x118] sm:$0xff]
    %v68 = vld [vmem:[%s0 + $0x120] sm:$0xff]
    %v69 = vld [vmem:[%s0 + $0x128] sm:$0xf]
    %v70 = vld [vmem:[%s0 + $0x12c] sm:$0xff]
    %v71 = vld [vmem:[%s0 + $0x134] sm:$0xff]
    %v72 = vld [vmem:[%s0 + $0x13c] sm:$0xf]
    %v73 = vld [vmem:[%s1] sm:$0xf]
    %v74 = vld [vmem:[%s1 + $0x4] sm:$0xf]
    %v75 = vld [vmem:[%s1 + $0x8] sm:$0xf]
    %v76 = vld [vmem:[%s1 + $0xc] sm:$0xf]
    %v77 = vld [vmem:[%s1 + $0x10] sm:$0xf]
    %v78 = vld [vmem:[%s1 + $0x14] sm:$0xf]
    %v79 = vld [vmem:[%s1 + $0x18] sm:$0xf]
    %v80 = vld [vmem:[%s1 + $0x1c] sm:$0xf]
    %v81 = vld [vmem:[%s1 + $0x20] sm:$0xf]
    %v82 = vld [vmem:[%s1 + $0x24] sm:$0xf]
    %v83 = vld [vmem:[%s1 + $0x28] sm:$0xf]
    %v84 = vld [vmem:[%s1 + $0x2c] sm:$0xf]
    %v85 = vld [vmem:[%s1 + $0x30] sm:$0xf]
    %v86 = vld [vmem:[%s1 + $0x34] sm:$0xf]
    %v87 = vld [vmem:[%s1 + $0x38] sm:$0xf]
    %v88 = vld [vmem:[%s1 + $0x3c] sm:$0xf]
    %v89 = vld [vmem:[%s1 + $0x40] sm:$0xf]
    %v90 = vld [vmem:[%s1 + $0x44] sm:$0xf]
    %v91 = vld [vmem:[%s1 + $0x48] sm:$0xf]
    %v92 = vld [vmem:[%s1 + $0x4c] sm:$0xf]
    %v93 = vld [vmem:[%s1 + $0x50] sm:$0xf]
    %v94 = vld [vmem:[%s1 + $0x54] sm:$0xf]
    %v95 = vld [vmem:[%s1 + $0x58] sm:$0xf]
    %v96 = vld [vmem:[%s1 + $0x5c] sm:$0xf]
    %v97 = vld [vmem:[%s1 + $0x60] sm:$0xf]
    %v98 = vld [vmem:[%s1 + $0x64] sm:$0xf]
    %v99 = vld [vmem:[%s1 + $0x68] sm:$0xf]
    %v100 = vld [vmem:[%s1 + $0x6c] sm:$0xf]
    %v101 = vld [vmem:[%s1 + $0x70] sm:$0xf]
    %v102 = vld [vmem:[%s1 + $0x74] sm:$0xf]
    %v103 = vld [vmem:[%s1 + $0x78] sm:$0xf]
    %v104 = vld [vmem:[%s1 + $0x7c] sm:$0xf]
    %v105 = vld [vmem:[%s1 + $0x80] sm:$0xf]
    %v106 = vld [vmem:[%s1 + $0x84] sm:$0xf]
    %v107 = vld [vmem:[%s1 + $0x88] sm:$0xf]
    %v108 = vld [vmem:[%s1 + $0x8c] sm:$0xf]
    %v109 = vld [vmem:[%s1 + $0x90] sm:$0xf]
    %v110 = vld [vmem:[%s1 + $0x94] sm:$0xf]
    %v111 = vld [vmem:[%s1 + $0x98] sm:$0xf]
    %v112 = vld [vmem:[%s1 + $0x9c] sm:$0xf]
    %v113 = vld [vmem:[%s1 + $0xa0] sm:$0xf]
    %v114 = vld [vmem:[%s1 + $0xa4] sm:$0xf]
    %v115 = vld [vmem:[%s1 + $0xa8] sm:$0xf]
    %v116 = vld [vmem:[%s1 + $0xac] sm:$0xf]
    %v117 = vld [vmem:[%s1 + $0xb0] sm:$0xf]
    %v118 = vld [vmem:[%s1 + $0xb4] sm:$0xf]
    %v119 = vld [vmem:[%s1 + $0xb8] sm:$0xf]
    %v120 = vld [vmem:[%s1 + $0xbc] sm:$0xf]
    %v121 = vld [vmem:[%s1 + $0xc0] sm:$0xf]
    %v122 = vld [vmem:[%s1 + $0xc4] sm:$0xf]
    %v123 = vld [vmem:[%s1 + $0xc8] sm:$0xf]
    %v124 = vld [vmem:[%s1 + $0xcc] sm:$0xf]
    %v125 = vld [vmem:[%s1 + $0xd0] sm:$0xf]
    %v126 = vld [vmem:[%s1 + $0xd4] sm:$0xf]
    %v127 = vld [vmem:[%s1 + $0xd8] sm:$0xf]
    %v128 = vld [vmem:[%s1 + $0xdc] sm:$0xf]
    %v129 = vld [vmem:[%s1 + $0xe0] sm:$0xf]
    %v130 = vld [vmem:[%s1 + $0xe4] sm:$0xf]
    %v131 = vld [vmem:[%s1 + $0xe8] sm:$0xf]
    %v132 = vld [vmem:[%s1 + $0xec] sm:$0xf]
    %v133 = vld [vmem:[%s1 + $0xf0] sm:$0xf]
    %v134 = vld [vmem:[%s1 + $0xf4] sm:$0xf]
    %v135 = vld [vmem:[%s1 + $0xf8] sm:$0xf]
    %v136 = vld [vmem:[%s1 + $0xfc] sm:$0xf]
    %v137 = vld [vmem:[%s1 + $0x100] sm:$0xf]
    %v138 = vld [vmem:[%s1 + $0x104] sm:$0xf]
    %v139 = vld [vmem:[%s1 + $0x108] sm:$0xf]
    %v140 = vld [vmem:[%s1 + $0x10c] sm:$0xf]
    %v141 = vld [vmem:[%s1 + $0x110] sm:$0xf]
    %v142 = vld [vmem:[%s1 + $0x114] sm:$0xf]
    %v143 = vld [vmem:[%s1 + $0x118] sm:$0xf]
    %v144 = vld [vmem:[%s1 + $0x11c] sm:$0xf]
    %v145 = vld [vmem:[%s2] sm:$0x1]
    %v147 = vlaneseq
    %v148 = vshrl.u32 %v147, 7
    %v149 = vsub.s32 0, %v148
    %v150 = vrot.slane %v145, %v149
    %v200 = vunpack.c.l.b16 %v25
    %v201 = vunpack.c.h.b16 %v25
    %v202 = vunpack.c.l.b16 %v26
    %v203 = vunpack.c.h.b16 %v26
    %v204 = vunpack.c.l.b16 %v27
    %v205 = vunpack.c.l.b16 %v28
    %v206 = vunpack.c.h.b16 %v28
    %v207 = vunpack.c.l.b16 %v29
    %v208 = vunpack.c.h.b16 %v29
    %v209 = vunpack.c.l.b16 %v30
    %v210 = vunpack.c.l.b16 %v31
    %v211 = vunpack.c.h.b16 %v31
    %v212 = vunpack.c.l.b16 %v32
    %v213 = vunpack.c.h.b16 %v32
    %v214 = vunpack.c.l.b16 %v33
    %v215 = vunpack.c.l.b16 %v34
    %v216 = vunpack.c.h.b16 %v34
    %v217 = vunpack.c.l.b16 %v35
    %v218 = vunpack.c.h.b16 %v35
    %v219 = vunpack.c.l.b16 %v36
    %v220 = vunpack.c.l.b16 %v37
    %v221 = vunpack.c.h.b16 %v37
    %v222 = vunpack.c.l.b16 %v38
    %v223 = vunpack.c.h.b16 %v38
    %v224 = vunpack.c.l.b16 %v39
    %v225 = vunpack.c.l.b16 %v40
    %v226 = vunpack.c.h.b16 %v40
    %v227 = vunpack.c.l.b16 %v41
    %v228 = vunpack.c.h.b16 %v41
    %v229 = vunpack.c.l.b16 %v42
    %v230 = vunpack.c.l.b16 %v43
    %v231 = vunpack.c.h.b16 %v43
    %v232 = vunpack.c.l.b16 %v44
    %v233 = vunpack.c.h.b16 %v44
    %v234 = vunpack.c.l.b16 %v45
    %v235 = vunpack.c.l.b16 %v46
    %v236 = vunpack.c.h.b16 %v46
    %v237 = vunpack.c.l.b16 %v47
    %v238 = vunpack.c.h.b16 %v47
    %v239 = vunpack.c.l.b16 %v48
    %v240 = vunpack.c.l.b16 %v49
    %v241 = vunpack.c.h.b16 %v49
    %v242 = vunpack.c.l.b16 %v50
    %v243 = vunpack.c.h.b16 %v50
    %v244 = vunpack.c.l.b16 %v51
    %v245 = vunpack.c.l.b16 %v52
    %v246 = vunpack.c.h.b16 %v52
    %v247 = vunpack.c.l.b16 %v53
    %v248 = vunpack.c.h.b16 %v53
    %v249 = vunpack.c.l.b16 %v54
    %v250 = vunpack.c.l.b16 %v55
    %v251 = vunpack.c.h.b16 %v55
    %v252 = vunpack.c.l.b16 %v56
    %v253 = vunpack.c.h.b16 %v56
    %v254 = vunpack.c.l.b16 %v57
    %v255 = vunpack.c.l.b16 %v58
    %v256 = vunpack.c.h.b16 %v58
    %v257 = vunpack.c.l.b16 %v59
    %v258 = vunpack.c.h.b16 %v59
    %v259 = vunpack.c.l.b16 %v60
    %v260 = vunpack.c.l.b16 %v61
    %v261 = vunpack.c.h.b16 %v61
    %v262 = vunpack.c.l.b16 %v62
    %v263 = vunpack.c.h.b16 %v62
    %v264 = vunpack.c.l.b16 %v63
    %v265 = vunpack.c.l.b16 %v64
    %v266 = vunpack.c.h.b16 %v64
    %v267 = vunpack.c.l.b16 %v65
    %v268 = vunpack.c.h.b16 %v65
    %v269 = vunpack.c.l.b16 %v66
    %v270 = vunpack.c.l.b16 %v67
    %v271 = vunpack.c.h.b16 %v67
    %v272 = vunpack.c.l.b16 %v68
    %v273 = vunpack.c.h.b16 %v68
    %v274 = vunpack.c.l.b16 %v69
    %v275 = vunpack.c.l.b16 %v70
    %v276 = vunpack.c.h.b16 %v70
    %v277 = vunpack.c.l.b16 %v71
    %v278 = vunpack.c.h.b16 %v71
    %v279 = vunpack.c.l.b16 %v72
    %v280 = vpack.c.b16 %v205, %v200
    %v281 = vpack.c.b16 %v206, %v201
    %v282 = vpack.c.b16 %v207, %v202
    %v283 = vpack.c.b16 %v208, %v203
    %v284 = vpack.c.b16 %v209, %v204
    %v285 = vpack.c.b16 %v215, %v210
    %v286 = vpack.c.b16 %v216, %v211
    %v287 = vpack.c.b16 %v217, %v212
    %v288 = vpack.c.b16 %v218, %v213
    %v289 = vpack.c.b16 %v219, %v214
    %v290 = vpack.c.b16 %v225, %v220
    %v291 = vpack.c.b16 %v226, %v221
    %v292 = vpack.c.b16 %v227, %v222
    %v293 = vpack.c.b16 %v228, %v223
    %v294 = vpack.c.b16 %v229, %v224
    %v295 = vpack.c.b16 %v235, %v230
    %v296 = vpack.c.b16 %v236, %v231
    %v297 = vpack.c.b16 %v237, %v232
    %v298 = vpack.c.b16 %v238, %v233
    %v299 = vpack.c.b16 %v239, %v234
    %v300 = vpack.c.b16 %v245, %v240
    %v301 = vpack.c.b16 %v246, %v241
    %v302 = vpack.c.b16 %v247, %v242
    %v303 = vpack.c.b16 %v248, %v243
    %v304 = vpack.c.b16 %v249, %v244
    %v305 = vpack.c.b16 %v255, %v250
    %v306 = vpack.c.b16 %v256, %v251
    %v307 = vpack.c.b16 %v257, %v252
    %v308 = vpack.c.b16 %v258, %v253
    %v309 = vpack.c.b16 %v259, %v254
    %v310 = vpack.c.b16 %v265, %v260
    %v311 = vpack.c.b16 %v266, %v261
    %v312 = vpack.c.b16 %v267, %v262
    %v313 = vpack.c.b16 %v268, %v263
    %v314 = vpack.c.b16 %v269, %v264
    %v315 = vpack.c.b16 %v275, %v270
    %v316 = vpack.c.b16 %v276, %v271
    %v317 = vpack.c.b16 %v277, %v272
    %v318 = vpack.c.b16 %v278, %v273
    %v319 = vpack.c.b16 %v279, %v274
    %v424 = vunpack.c.l.b16 %v73
    %v425 = vunpack.c.l.b16 %v74
    %v426 = vunpack.c.l.b16 %v75
    %v427 = vunpack.c.l.b16 %v76
    %v428 = vunpack.c.l.b16 %v77
    %v429 = vunpack.c.l.b16 %v78
    %v430 = vunpack.c.l.b16 %v79
    %v431 = vunpack.c.l.b16 %v80
    %v432 = vunpack.c.l.b16 %v81
    %v433 = vunpack.c.l.b16 %v82
    %v434 = vunpack.c.l.b16 %v83
    %v435 = vunpack.c.l.b16 %v84
    %v436 = vunpack.c.l.b16 %v85
    %v437 = vunpack.c.l.b16 %v86
    %v438 = vunpack.c.l.b16 %v87
    %v439 = vunpack.c.l.b16 %v88
    %v440 = vunpack.c.l.b16 %v89
    %v441 = vunpack.c.l.b16 %v90
    %v442 = vunpack.c.l.b16 %v91
    %v443 = vunpack.c.l.b16 %v92
    %v444 = vunpack.c.l.b16 %v93
    %v445 = vunpack.c.l.b16 %v94
    %v446 = vunpack.c.l.b16 %v95
    %v447 = vunpack.c.l.b16 %v96
    %v448 = vunpack.c.l.b16 %v97
    %v449 = vunpack.c.l.b16 %v98
    %v450 = vunpack.c.l.b16 %v99
    %v451 = vunpack.c.l.b16 %v100
    %v452 = vunpack.c.l.b16 %v101
    %v453 = vunpack.c.l.b16 %v102
    %v454 = vunpack.c.l.b16 %v103
    %v455 = vunpack.c.l.b16 %v104
    %v456 = vunpack.c.l.b16 %v105
    %v457 = vunpack.c.l.b16 %v106
    %v458 = vunpack.c.l.b16 %v107
    %v459 = vunpack.c.l.b16 %v108
    %v460 = vunpack.c.l.b16 %v109
    %v461 = vunpack.c.l.b16 %v110
    %v462 = vunpack.c.l.b16 %v111
    %v463 = vunpack.c.l.b16 %v112
    %v464 = vunpack.c.l.b16 %v113
    %v465 = vunpack.c.l.b16 %v114
    %v466 = vunpack.c.l.b16 %v115
    %v467 = vunpack.c.l.b16 %v116
    %v468 = vunpack.c.l.b16 %v117
    %v469 = vunpack.c.l.b16 %v118
    %v470 = vunpack.c.l.b16 %v119
    %v471 = vunpack.c.l.b16 %v120
    %v472 = vunpack.c.l.b16 %v121
    %v473 = vunpack.c.l.b16 %v122
    %v474 = vunpack.c.l.b16 %v123
    %v475 = vunpack.c.l.b16 %v124
    %v476 = vunpack.c.l.b16 %v125
    %v477 = vunpack.c.l.b16 %v126
    %v478 = vunpack.c.l.b16 %v127
    %v479 = vunpack.c.l.b16 %v128
    %v480 = vunpack.c.l.b16 %v129
    %v481 = vunpack.c.l.b16 %v130
    %v482 = vunpack.c.l.b16 %v131
    %v483 = vunpack.c.l.b16 %v132
    %v484 = vunpack.c.l.b16 %v133
    %v485 = vunpack.c.l.b16 %v134
    %v486 = vunpack.c.l.b16 %v135
    %v487 = vunpack.c.l.b16 %v136
    %v488 = vunpack.c.l.b16 %v137
    %v489 = vunpack.c.l.b16 %v138
    %v490 = vunpack.c.l.b16 %v139
    %v491 = vunpack.c.l.b16 %v140
    %v492 = vunpack.c.l.b16 %v141
    %v493 = vunpack.c.l.b16 %v142
    %v494 = vunpack.c.l.b16 %v143
    %v495 = vunpack.c.l.b16 %v144
    %v496 = vpack.c.b16 %v425, %v424
    %v497 = vpack.c.b16 %v427, %v426
    %v498 = vpack.c.b16 %v429, %v428
    %v499 = vpack.c.b16 %v431, %v430
    %v500 = vpack.c.b16 %v433, %v432
    %v501 = vpack.c.b16 %v435, %v434
    %v502 = vpack.c.b16 %v437, %v436
    %v503 = vpack.c.b16 %v439, %v438
    %v504 = vpack.c.b16 %v441, %v440
    %v505 = vpack.c.b16 %v443, %v442
    %v506 = vpack.c.b16 %v445, %v444
    %v507 = vpack.c.b16 %v447, %v446
    %v508 = vpack.c.b16 %v449, %v448
    %v509 = vpack.c.b16 %v451, %v450
    %v510 = vpack.c.b16 %v453, %v452
    %v511 = vpack.c.b16 %v455, %v454
    %v512 = vpack.c.b16 %v457, %v456
    %v513 = vpack.c.b16 %v459, %v458
    %v514 = vpack.c.b16 %v461, %v460
    %v515 = vpack.c.b16 %v463, %v462
    %v516 = vpack.c.b16 %v465, %v464
    %v517 = vpack.c.b16 %v467, %v466
    %v518 = vpack.c.b16 %v469, %v468
    %v519 = vpack.c.b16 %v471, %v470
    %v520 = vpack.c.b16 %v473, %v472
    %v521 = vpack.c.b16 %v475, %v474
    %v522 = vpack.c.b16 %v477, %v476
    %v523 = vpack.c.b16 %v479, %v478
    %v524 = vpack.c.b16 %v481, %v480
    %v525 = vpack.c.b16 %v483, %v482
    %v526 = vpack.c.b16 %v485, %v484
    %v527 = vpack.c.b16 %v487, %v486
    %v528 = vpack.c.b16 %v489, %v488
    %v529 = vpack.c.b16 %v491, %v490
    %v530 = vpack.c.b16 %v493, %v492
    %v531 = vpack.c.b16 %v495, %v494
    %vm568 = vcmask 523264
    %v570 = vsel %vm568, %v284, 0
    %v573 = vsel %vm568, %v289, 0
    %v576 = vsel %vm568, %v294, 0
    %v579 = vsel %vm568, %v299, 0
    %v582 = vsel %vm568, %v304, 0
    %v585 = vsel %vm568, %v309, 0
    %v588 = vsel %vm568, %v314, 0
    %v591 = vsel %vm568, %v319, 0
    %593 = vmatprep.subr.bf16.mxu0 0
    %594 = vmatpush1.bf16.msra.mxu0 %v503
    %595 = vmatprep.subr.bf16.mxu0 0
    %596 = vmatpush1.bf16.msra.mxu0 %v502
    %597 = vmatprep.subr.bf16.mxu0 0
    %598 = vmatpush1.bf16.msra.mxu0 %v501
    %599 = vmatprep.subr.bf16.mxu0 0
    %600 = vmatpush1.bf16.msra.mxu0 %v500
    %601 = vmatprep.subr.bf16.mxu0 0
    %602 = vmatpush1.bf16.msra.mxu0 %v499
    %603 = vmatprep.subr.bf16.mxu0 0
    %604 = vmatpush1.bf16.msra.mxu0 %v498
    %605 = vmatprep.subr.bf16.mxu0 0
    %606 = vmatpush1.bf16.msra.mxu0 %v497
    %607 = vmatprep.subr.bf16.mxu0 0
    %608 = vmatpush1.bf16.msra.mxu0 %v496
    %609 = vmatprep.subr.bf16.mxu0 0
    %610 = vmatpush2.bf16.msra.mxu0 %v511
    %611 = vmatprep.subr.bf16.mxu0 0
    %612 = vmatpush2.bf16.msra.mxu0 %v510
    %613 = vmatprep.subr.bf16.mxu0 0
    %614 = vmatpush2.bf16.msra.mxu0 %v509
    %615 = vmatprep.subr.bf16.mxu0 0
    %616 = vmatpush2.bf16.msra.mxu0 %v508
    %617 = vmatprep.subr.bf16.mxu0 0
    %618 = vmatpush2.bf16.msra.mxu0 %v507
    %619 = vmatprep.subr.bf16.mxu0 0
    %620 = vmatpush2.bf16.msra.mxu0 %v506
    %621 = vmatprep.subr.bf16.mxu0 0
    %622 = vmatpush2.bf16.msra.mxu0 %v505
    %623 = vmatprep.subr.bf16.mxu0 0
    %624 = vmatpush2.bf16.msra.mxu0 %v504
    %625 = vmatprep.mubr.bf16.mxu0 %v281
    %626 = vmatmul.mubr.bf16.gmra.mxu0 %v280
    %v627 = vpop.f32.mrf.mxu0
    %v628 = vadd.f32 %v150, %v627
    %v629 = vpop.f32.mrf.mxu0
    %v630 = vpop.f32.mrf.mxu0
    %v631 = vadd.f32 %v150, %v630
    %v632 = vpop.f32.mrf.mxu0
    %633 = vmatprep.mubr.bf16.mxu0 %v286
    %634 = vmatmul.mubr.bf16.gmra.mxu0 %v285
    %v635 = vpop.f32.mrf.mxu0
    %v636 = vadd.f32 %v150, %v635
    %v637 = vpop.f32.mrf.mxu0
    %v638 = vpop.f32.mrf.mxu0
    %v639 = vadd.f32 %v150, %v638
    %v640 = vpop.f32.mrf.mxu0
    %641 = vmatprep.mubr.bf16.mxu0 %v291
    %642 = vmatmul.mubr.bf16.gmra.mxu0 %v290
    %v643 = vpop.f32.mrf.mxu0
    %v644 = vadd.f32 %v150, %v643
    %v645 = vpop.f32.mrf.mxu0
    %v646 = vpop.f32.mrf.mxu0
    %v647 = vadd.f32 %v150, %v646
    %v648 = vpop.f32.mrf.mxu0
    %649 = vmatprep.mubr.bf16.mxu0 %v296
    %650 = vmatmul.mubr.bf16.gmra.mxu0 %v295
    %v651 = vpop.f32.mrf.mxu0
    %v652 = vadd.f32 %v150, %v651
    %v653 = vpop.f32.mrf.mxu0
    %v654 = vpop.f32.mrf.mxu0
    %v655 = vadd.f32 %v150, %v654
    %v656 = vpop.f32.mrf.mxu0
    %657 = vmatprep.mubr.bf16.mxu0 %v301
    %658 = vmatmul.mubr.bf16.gmra.mxu0 %v300
    %v659 = vpop.f32.mrf.mxu0
    %v660 = vadd.f32 %v150, %v659
    %v661 = vpop.f32.mrf.mxu0
    %v662 = vpop.f32.mrf.mxu0
    %v663 = vadd.f32 %v150, %v662
    %v664 = vpop.f32.mrf.mxu0
    %665 = vmatprep.mubr.bf16.mxu0 %v306
    %666 = vmatmul.mubr.bf16.gmra.mxu0 %v305
    %v667 = vpop.f32.mrf.mxu0
    %v668 = vadd.f32 %v150, %v667
    %v669 = vpop.f32.mrf.mxu0
    %v670 = vpop.f32.mrf.mxu0
    %v671 = vadd.f32 %v150, %v670
    %v672 = vpop.f32.mrf.mxu0
    %673 = vmatprep.mubr.bf16.mxu0 %v311
    %674 = vmatmul.mubr.bf16.gmra.mxu0 %v310
    %v675 = vpop.f32.mrf.mxu0
    %v676 = vadd.f32 %v150, %v675
    %v677 = vpop.f32.mrf.mxu0
    %v678 = vpop.f32.mrf.mxu0
    %v679 = vadd.f32 %v150, %v678
    %v680 = vpop.f32.mrf.mxu0
    %681 = vmatprep.mubr.bf16.mxu0 %v316
    %682 = vmatmul.mubr.bf16.gmra.mxu0 %v315
    %v683 = vpop.f32.mrf.mxu0
    %v684 = vadd.f32 %v150, %v683
    %v685 = vpop.f32.mrf.mxu0
    %v686 = vpop.f32.mrf.mxu0
    %v687 = vadd.f32 %v150, %v686
    %v688 = vpop.f32.mrf.mxu0
    %689 = vdwg.mxu0
    %690 = vmatprep.subr.bf16.mxu0 0
    %691 = vmatpush1.bf16.msra.mxu0 %v519
    %692 = vmatprep.subr.bf16.mxu0 0
    %693 = vmatpush1.bf16.msra.mxu0 %v518
    %694 = vmatprep.subr.bf16.mxu0 0
    %695 = vmatpush1.bf16.msra.mxu0 %v517
    %696 = vmatprep.subr.bf16.mxu0 0
    %697 = vmatpush1.bf16.msra.mxu0 %v516
    %698 = vmatprep.subr.bf16.mxu0 0
    %699 = vmatpush1.bf16.msra.mxu0 %v515
    %700 = vmatprep.subr.bf16.mxu0 0
    %701 = vmatpush1.bf16.msra.mxu0 %v514
    %702 = vmatprep.subr.bf16.mxu0 0
    %703 = vmatpush1.bf16.msra.mxu0 %v513
    %704 = vmatprep.subr.bf16.mxu0 0
    %705 = vmatpush1.bf16.msra.mxu0 %v512
    %706 = vmatprep.subr.bf16.mxu0 0
    %707 = vmatpush2.bf16.msra.mxu0 %v527
    %708 = vmatprep.subr.bf16.mxu0 0
    %709 = vmatpush2.bf16.msra.mxu0 %v526
    %710 = vmatprep.subr.bf16.mxu0 0
    %711 = vmatpush2.bf16.msra.mxu0 %v525
    %712 = vmatprep.subr.bf16.mxu0 0
    %713 = vmatpush2.bf16.msra.mxu0 %v524
    %714 = vmatprep.subr.bf16.mxu0 0
    %715 = vmatpush2.bf16.msra.mxu0 %v523
    %716 = vmatprep.subr.bf16.mxu0 0
    %717 = vmatpush2.bf16.msra.mxu0 %v522
    %718 = vmatprep.subr.bf16.mxu0 0
    %719 = vmatpush2.bf16.msra.mxu0 %v521
    %720 = vmatprep.subr.bf16.mxu0 0
    %721 = vmatpush2.bf16.msra.mxu0 %v520
    %722 = vmatprep.mubr.bf16.mxu0 %v283
    %723 = vmatmul.mubr.bf16.gmra.mxu0 %v282
    %v724 = vpop.f32.mrf.mxu0
    %v725 = vadd.f32 %v628, %v724
    %v726 = vpop.f32.mrf.mxu0
    %v727 = vpop.f32.mrf.mxu0
    %v728 = vadd.f32 %v631, %v727
    %v729 = vpop.f32.mrf.mxu0
    %730 = vmatprep.mubr.bf16.mxu0 %v288
    %731 = vmatmul.mubr.bf16.gmra.mxu0 %v287
    %v732 = vpop.f32.mrf.mxu0
    %v733 = vadd.f32 %v636, %v732
    %v734 = vpop.f32.mrf.mxu0
    %v735 = vpop.f32.mrf.mxu0
    %v736 = vadd.f32 %v639, %v735
    %v737 = vpop.f32.mrf.mxu0
    %738 = vmatprep.mubr.bf16.mxu0 %v293
    %739 = vmatmul.mubr.bf16.gmra.mxu0 %v292
    %v740 = vpop.f32.mrf.mxu0
    %v741 = vadd.f32 %v644, %v740
    %v742 = vpop.f32.mrf.mxu0
    %v743 = vpop.f32.mrf.mxu0
    %v744 = vadd.f32 %v647, %v743
    %v745 = vpop.f32.mrf.mxu0
    %746 = vmatprep.mubr.bf16.mxu0 %v298
    %747 = vmatmul.mubr.bf16.gmra.mxu0 %v297
    %v748 = vpop.f32.mrf.mxu0
    %v749 = vadd.f32 %v652, %v748
    %v750 = vpop.f32.mrf.mxu0
    %v751 = vpop.f32.mrf.mxu0
    %v752 = vadd.f32 %v655, %v751
    %v753 = vpop.f32.mrf.mxu0
    %754 = vmatprep.mubr.bf16.mxu0 %v303
    %755 = vmatmul.mubr.bf16.gmra.mxu0 %v302
    %v756 = vpop.f32.mrf.mxu0
    %v757 = vadd.f32 %v660, %v756
    %v758 = vpop.f32.mrf.mxu0
    %v759 = vpop.f32.mrf.mxu0
    %v760 = vadd.f32 %v663, %v759
    %v761 = vpop.f32.mrf.mxu0
    %762 = vmatprep.mubr.bf16.mxu0 %v308
    %763 = vmatmul.mubr.bf16.gmra.mxu0 %v307
    %v764 = vpop.f32.mrf.mxu0
    %v765 = vadd.f32 %v668, %v764
    %v766 = vpop.f32.mrf.mxu0
    %v767 = vpop.f32.mrf.mxu0
    %v768 = vadd.f32 %v671, %v767
    %v769 = vpop.f32.mrf.mxu0
    %770 = vmatprep.mubr.bf16.mxu0 %v313
    %771 = vmatmul.mubr.bf16.gmra.mxu0 %v312
    %v772 = vpop.f32.mrf.mxu0
    %v773 = vadd.f32 %v676, %v772
    %v774 = vpop.f32.mrf.mxu0
    %v775 = vpop.f32.mrf.mxu0
    %v776 = vadd.f32 %v679, %v775
    %v777 = vpop.f32.mrf.mxu0
    %778 = vmatprep.mubr.bf16.mxu0 %v318
    %779 = vmatmul.mubr.bf16.gmra.mxu0 %v317
    %v780 = vpop.f32.mrf.mxu0
    %v781 = vadd.f32 %v684, %v780
    %v782 = vpop.f32.mrf.mxu0
    %v783 = vpop.f32.mrf.mxu0
    %v784 = vadd.f32 %v687, %v783
    %v785 = vpop.f32.mrf.mxu0
    %786 = vdwg.mxu0
    %787 = vmatprep.subr.bf16.mxu0 0
    %788 = vmatpush1.bf16.msra.mxu0 0
    %789 = vmatprep.subr.bf16.mxu0 0
    %790 = vmatpush1.bf16.msra.mxu0 0
    %791 = vmatprep.subr.bf16.mxu0 0
    %792 = vmatpush1.bf16.msra.mxu0 0
    %793 = vmatprep.subr.bf16.mxu0 0
    %794 = vmatpush1.bf16.msra.mxu0 0
    %795 = vmatprep.subr.bf16.mxu0 0
    %796 = vmatpush1.bf16.msra.mxu0 %v531
    %797 = vmatprep.subr.bf16.mxu0 0
    %798 = vmatpush1.bf16.msra.mxu0 %v530
    %799 = vmatprep.subr.bf16.mxu0 0
    %800 = vmatpush1.bf16.msra.mxu0 %v529
    %801 = vmatprep.subr.bf16.mxu0 0
    %802 = vmatpush1.bf16.msra.mxu0 %v528
    %803 = vmatprep.subr.bf16.mxu0 0
    %804 = vmatpush2.bf16.msra.mxu0 0
    %805 = vmatprep.subr.bf16.mxu0 0
    %806 = vmatpush2.bf16.msra.mxu0 0
    %807 = vmatprep.subr.bf16.mxu0 0
    %808 = vmatpush2.bf16.msra.mxu0 0
    %809 = vmatprep.subr.bf16.mxu0 0
    %810 = vmatpush2.bf16.msra.mxu0 0
    %811 = vmatprep.subr.bf16.mxu0 0
    %812 = vmatpush2.bf16.msra.mxu0 0
    %813 = vmatprep.subr.bf16.mxu0 0
    %814 = vmatpush2.bf16.msra.mxu0 0
    %815 = vmatprep.subr.bf16.mxu0 0
    %816 = vmatpush2.bf16.msra.mxu0 0
    %817 = vmatprep.subr.bf16.mxu0 0
    %818 = vmatpush2.bf16.msra.mxu0 0
    %819 = vmatprep.mubr.bf16.mxu0 0
    %820 = vmatmul.mubr.bf16.gmra.mxu0 %v570
    %v821 = vpop.f32.mrf.mxu0
    %v822 = vadd.f32 %v725, %v821
    %v823 = vpop.f32.mrf.mxu0
    %v824 = vpop.f32.mrf.mxu0
    %v825 = vadd.f32 %v728, %v824
    %v826 = vpop.f32.mrf.mxu0
    %827 = vmatprep.mubr.bf16.mxu0 0
    %828 = vmatmul.mubr.bf16.gmra.mxu0 %v573
    %v829 = vpop.f32.mrf.mxu0
    %v830 = vadd.f32 %v733, %v829
    %v831 = vpop.f32.mrf.mxu0
    %v832 = vpop.f32.mrf.mxu0
    %v833 = vadd.f32 %v736, %v832
    %v834 = vpop.f32.mrf.mxu0
    %835 = vmatprep.mubr.bf16.mxu0 0
    %836 = vmatmul.mubr.bf16.gmra.mxu0 %v576
    %v837 = vpop.f32.mrf.mxu0
    %v838 = vadd.f32 %v741, %v837
    %v839 = vpop.f32.mrf.mxu0
    %v840 = vpop.f32.mrf.mxu0
    %v841 = vadd.f32 %v744, %v840
    %v842 = vpop.f32.mrf.mxu0
    %843 = vmatprep.mubr.bf16.mxu0 0
    %844 = vmatmul.mubr.bf16.gmra.mxu0 %v579
    %v845 = vpop.f32.mrf.mxu0
    %v846 = vadd.f32 %v749, %v845
    %v847 = vpop.f32.mrf.mxu0
    %v848 = vpop.f32.mrf.mxu0
    %v849 = vadd.f32 %v752, %v848
    %v850 = vpop.f32.mrf.mxu0
    %851 = vmatprep.mubr.bf16.mxu0 0
    %852 = vmatmul.mubr.bf16.gmra.mxu0 %v582
    %v853 = vpop.f32.mrf.mxu0
    %v854 = vadd.f32 %v757, %v853
    %v855 = vpop.f32.mrf.mxu0
    %v856 = vpop.f32.mrf.mxu0
    %v857 = vadd.f32 %v760, %v856
    %v858 = vpop.f32.mrf.mxu0
    %859 = vmatprep.mubr.bf16.mxu0 0
    %860 = vmatmul.mubr.bf16.gmra.mxu0 %v585
    %v861 = vpop.f32.mrf.mxu0
    %v862 = vadd.f32 %v765, %v861
    %v863 = vpop.f32.mrf.mxu0
    %v864 = vpop.f32.mrf.mxu0
    %v865 = vadd.f32 %v768, %v864
    %v866 = vpop.f32.mrf.mxu0
    %867 = vmatprep.mubr.bf16.mxu0 0
    %868 = vmatmul.mubr.bf16.gmra.mxu0 %v588
    %v869 = vpop.f32.mrf.mxu0
    %v870 = vadd.f32 %v773, %v869
    %v871 = vpop.f32.mrf.mxu0
    %v872 = vpop.f32.mrf.mxu0
    %v873 = vadd.f32 %v776, %v872
    %v874 = vpop.f32.mrf.mxu0
    %875 = vmatprep.mubr.bf16.mxu0 0
    %876 = vmatmul.mubr.bf16.gmra.mxu0 %v591
    %v877 = vpop.f32.mrf.mxu0
    %v878 = vadd.f32 %v781, %v877
    %v879 = vpop.f32.mrf.mxu0
    %v880 = vpop.f32.mrf.mxu0
    %v881 = vadd.f32 %v784, %v880
    %v882 = vpop.f32.mrf.mxu0
    %883 = vdwg.mxu0
    %v884 = vld [vmem:[%s3] sm:$0xff]
    %v885 = vld [vmem:[%s3 + $0x8] sm:$0xff]
    %v886 = vld [vmem:[%s3 + $0x10] sm:$0xf]
    %v887 = vld [vmem:[%s3 + $0x14] sm:$0xff]
    %v888 = vld [vmem:[%s3 + $0x1c] sm:$0xff]
    %v889 = vld [vmem:[%s3 + $0x24] sm:$0xf]
    %v890 = vld [vmem:[%s3 + $0x28] sm:$0xff]
    %v891 = vld [vmem:[%s3 + $0x30] sm:$0xff]
    %v892 = vld [vmem:[%s3 + $0x38] sm:$0xf]
    %v893 = vld [vmem:[%s3 + $0x3c] sm:$0xff]
    %v894 = vld [vmem:[%s3 + $0x44] sm:$0xff]
    %v895 = vld [vmem:[%s3 + $0x4c] sm:$0xf]
    %v896 = vld [vmem:[%s3 + $0x50] sm:$0xff]
    %v897 = vld [vmem:[%s3 + $0x58] sm:$0xff]
    %v898 = vld [vmem:[%s3 + $0x60] sm:$0xf]
    %v899 = vld [vmem:[%s3 + $0x64] sm:$0xff]
    %v900 = vld [vmem:[%s3 + $0x6c] sm:$0xff]
    %v901 = vld [vmem:[%s3 + $0x74] sm:$0xf]
    %v902 = vld [vmem:[%s3 + $0x78] sm:$0xff]
    %v903 = vld [vmem:[%s3 + $0x80] sm:$0xff]
    %v904 = vld [vmem:[%s3 + $0x88] sm:$0xf]
    %v905 = vld [vmem:[%s3 + $0x8c] sm:$0xff]
    %v906 = vld [vmem:[%s3 + $0x94] sm:$0xff]
    %v907 = vld [vmem:[%s3 + $0x9c] sm:$0xf]
    %v908 = vld [vmem:[%s3 + $0xa0] sm:$0xff]
    %v909 = vld [vmem:[%s3 + $0xa8] sm:$0xff]
    %v910 = vld [vmem:[%s3 + $0xb0] sm:$0xf]
    %v911 = vld [vmem:[%s3 + $0xb4] sm:$0xff]
    %v912 = vld [vmem:[%s3 + $0xbc] sm:$0xff]
    %v913 = vld [vmem:[%s3 + $0xc4] sm:$0xf]
    %v914 = vld [vmem:[%s3 + $0xc8] sm:$0xff]
    %v915 = vld [vmem:[%s3 + $0xd0] sm:$0xff]
    %v916 = vld [vmem:[%s3 + $0xd8] sm:$0xf]
    %v917 = vld [vmem:[%s3 + $0xdc] sm:$0xff]
    %v918 = vld [vmem:[%s3 + $0xe4] sm:$0xff]
    %v919 = vld [vmem:[%s3 + $0xec] sm:$0xf]
    %v920 = vld [vmem:[%s3 + $0xf0] sm:$0xff]
    %v921 = vld [vmem:[%s3 + $0xf8] sm:$0xff]
    %v922 = vld [vmem:[%s3 + $0x100] sm:$0xf]
    %v923 = vld [vmem:[%s3 + $0x104] sm:$0xff]
    %v924 = vld [vmem:[%s3 + $0x10c] sm:$0xff]
    %v925 = vld [vmem:[%s3 + $0x114] sm:$0xf]
    %v926 = vld [vmem:[%s3 + $0x118] sm:$0xff]
    %v927 = vld [vmem:[%s3 + $0x120] sm:$0xff]
    %v928 = vld [vmem:[%s3 + $0x128] sm:$0xf]
    %v929 = vld [vmem:[%s3 + $0x12c] sm:$0xff]
    %v930 = vld [vmem:[%s3 + $0x134] sm:$0xff]
    %v931 = vld [vmem:[%s3 + $0x13c] sm:$0xf]
    %v932 = vld [vmem:[%s4] sm:$0xf]
    %v933 = vld [vmem:[%s4 + $0x4] sm:$0xf]
    %v934 = vld [vmem:[%s4 + $0x8] sm:$0xf]
    %v935 = vld [vmem:[%s4 + $0xc] sm:$0xf]
    %v936 = vld [vmem:[%s4 + $0x10] sm:$0xf]
    %v937 = vld [vmem:[%s4 + $0x14] sm:$0xf]
    %v938 = vld [vmem:[%s4 + $0x18] sm:$0xf]
    %v939 = vld [vmem:[%s4 + $0x1c] sm:$0xf]
    %v940 = vld [vmem:[%s4 + $0x20] sm:$0xf]
    %v941 = vld [vmem:[%s4 + $0x24] sm:$0xf]
    %v942 = vld [vmem:[%s4 + $0x28] sm:$0xf]
    %v943 = vld [vmem:[%s4 + $0x2c] sm:$0xf]
    %v944 = vld [vmem:[%s4 + $0x30] sm:$0xf]
    %v945 = vld [vmem:[%s4 + $0x34] sm:$0xf]
    %v946 = vld [vmem:[%s4 + $0x38] sm:$0xf]
    %v947 = vld [vmem:[%s4 + $0x3c] sm:$0xf]
    %v948 = vld [vmem:[%s4 + $0x40] sm:$0xf]
    %v949 = vld [vmem:[%s4 + $0x44] sm:$0xf]
    %v950 = vld [vmem:[%s4 + $0x48] sm:$0xf]
    %v951 = vld [vmem:[%s4 + $0x4c] sm:$0xf]
    %v952 = vld [vmem:[%s4 + $0x50] sm:$0xf]
    %v953 = vld [vmem:[%s4 + $0x54] sm:$0xf]
    %v954 = vld [vmem:[%s4 + $0x58] sm:$0xf]
    %v955 = vld [vmem:[%s4 + $0x5c] sm:$0xf]
    %v956 = vld [vmem:[%s4 + $0x60] sm:$0xf]
    %v957 = vld [vmem:[%s4 + $0x64] sm:$0xf]
    %v958 = vld [vmem:[%s4 + $0x68] sm:$0xf]
    %v959 = vld [vmem:[%s4 + $0x6c] sm:$0xf]
    %v960 = vld [vmem:[%s4 + $0x70] sm:$0xf]
    %v961 = vld [vmem:[%s4 + $0x74] sm:$0xf]
    %v962 = vld [vmem:[%s4 + $0x78] sm:$0xf]
    %v963 = vld [vmem:[%s4 + $0x7c] sm:$0xf]
    %v964 = vld [vmem:[%s4 + $0x80] sm:$0xf]
    %v965 = vld [vmem:[%s4 + $0x84] sm:$0xf]
    %v966 = vld [vmem:[%s4 + $0x88] sm:$0xf]
    %v967 = vld [vmem:[%s4 + $0x8c] sm:$0xf]
    %v968 = vld [vmem:[%s4 + $0x90] sm:$0xf]
    %v969 = vld [vmem:[%s4 + $0x94] sm:$0xf]
    %v970 = vld [vmem:[%s4 + $0x98] sm:$0xf]
    %v971 = vld [vmem:[%s4 + $0x9c] sm:$0xf]
    %v972 = vld [vmem:[%s4 + $0xa0] sm:$0xf]
    %v973 = vld [vmem:[%s4 + $0xa4] sm:$0xf]
    %v974 = vld [vmem:[%s4 + $0xa8] sm:$0xf]
    %v975 = vld [vmem:[%s4 + $0xac] sm:$0xf]
    %v976 = vld [vmem:[%s4 + $0xb0] sm:$0xf]
    %v977 = vld [vmem:[%s4 + $0xb4] sm:$0xf]
    %v978 = vld [vmem:[%s4 + $0xb8] sm:$0xf]
    %v979 = vld [vmem:[%s4 + $0xbc] sm:$0xf]
    %v980 = vld [vmem:[%s4 + $0xc0] sm:$0xf]
    %v981 = vld [vmem:[%s4 + $0xc4] sm:$0xf]
    %v982 = vld [vmem:[%s4 + $0xc8] sm:$0xf]
    %v983 = vld [vmem:[%s4 + $0xcc] sm:$0xf]
    %v984 = vld [vmem:[%s4 + $0xd0] sm:$0xf]
    %v985 = vld [vmem:[%s4 + $0xd4] sm:$0xf]
    %v986 = vld [vmem:[%s4 + $0xd8] sm:$0xf]
    %v987 = vld [vmem:[%s4 + $0xdc] sm:$0xf]
    %v988 = vld [vmem:[%s4 + $0xe0] sm:$0xf]
    %v989 = vld [vmem:[%s4 + $0xe4] sm:$0xf]
    %v990 = vld [vmem:[%s4 + $0xe8] sm:$0xf]
    %v991 = vld [vmem:[%s4 + $0xec] sm:$0xf]
    %v992 = vld [vmem:[%s4 + $0xf0] sm:$0xf]
    %v993 = vld [vmem:[%s4 + $0xf4] sm:$0xf]
    %v994 = vld [vmem:[%s4 + $0xf8] sm:$0xf]
    %v995 = vld [vmem:[%s4 + $0xfc] sm:$0xf]
    %v996 = vld [vmem:[%s4 + $0x100] sm:$0xf]
    %v997 = vld [vmem:[%s4 + $0x104] sm:$0xf]
    %v998 = vld [vmem:[%s4 + $0x108] sm:$0xf]
    %v999 = vld [vmem:[%s4 + $0x10c] sm:$0xf]
    %v1000 = vld [vmem:[%s4 + $0x110] sm:$0xf]
    %v1001 = vld [vmem:[%s4 + $0x114] sm:$0xf]
    %v1002 = vld [vmem:[%s4 + $0x118] sm:$0xf]
    %v1003 = vld [vmem:[%s4 + $0x11c] sm:$0xf]
    %v1052 = vunpack.c.l.b16 %v884
    %v1053 = vunpack.c.h.b16 %v884
    %v1054 = vunpack.c.l.b16 %v885
    %v1055 = vunpack.c.h.b16 %v885
    %v1056 = vunpack.c.l.b16 %v886
    %v1057 = vunpack.c.l.b16 %v887
    %v1058 = vunpack.c.h.b16 %v887
    %v1059 = vunpack.c.l.b16 %v888
    %v1060 = vunpack.c.h.b16 %v888
    %v1061 = vunpack.c.l.b16 %v889
    %v1062 = vunpack.c.l.b16 %v890
    %v1063 = vunpack.c.h.b16 %v890
    %v1064 = vunpack.c.l.b16 %v891
    %v1065 = vunpack.c.h.b16 %v891
    %v1066 = vunpack.c.l.b16 %v892
    %v1067 = vunpack.c.l.b16 %v893
    %v1068 = vunpack.c.h.b16 %v893
    %v1069 = vunpack.c.l.b16 %v894
    %v1070 = vunpack.c.h.b16 %v894
    %v1071 = vunpack.c.l.b16 %v895
    %v1072 = vunpack.c.l.b16 %v896
    %v1073 = vunpack.c.h.b16 %v896
    %v1074 = vunpack.c.l.b16 %v897
    %v1075 = vunpack.c.h.b16 %v897
    %v1076 = vunpack.c.l.b16 %v898
    %v1077 = vunpack.c.l.b16 %v899
    %v1078 = vunpack.c.h.b16 %v899
    %v1079 = vunpack.c.l.b16 %v900
    %v1080 = vunpack.c.h.b16 %v900
    %v1081 = vunpack.c.l.b16 %v901
    %v1082 = vunpack.c.l.b16 %v902
    %v1083 = vunpack.c.h.b16 %v902
    %v1084 = vunpack.c.l.b16 %v903
    %v1085 = vunpack.c.h.b16 %v903
    %v1086 = vunpack.c.l.b16 %v904
    %v1087 = vunpack.c.l.b16 %v905
    %v1088 = vunpack.c.h.b16 %v905
    %v1089 = vunpack.c.l.b16 %v906
    %v1090 = vunpack.c.h.b16 %v906
    %v1091 = vunpack.c.l.b16 %v907
    %v1092 = vunpack.c.l.b16 %v908
    %v1093 = vunpack.c.h.b16 %v908
    %v1094 = vunpack.c.l.b16 %v909
    %v1095 = vunpack.c.h.b16 %v909
    %v1096 = vunpack.c.l.b16 %v910
    %v1097 = vunpack.c.l.b16 %v911
    %v1098 = vunpack.c.h.b16 %v911
    %v1099 = vunpack.c.l.b16 %v912
    %v1100 = vunpack.c.h.b16 %v912
    %v1101 = vunpack.c.l.b16 %v913
    %v1102 = vunpack.c.l.b16 %v914
    %v1103 = vunpack.c.h.b16 %v914
    %v1104 = vunpack.c.l.b16 %v915
    %v1105 = vunpack.c.h.b16 %v915
    %v1106 = vunpack.c.l.b16 %v916
    %v1107 = vunpack.c.l.b16 %v917
    %v1108 = vunpack.c.h.b16 %v917
    %v1109 = vunpack.c.l.b16 %v918
    %v1110 = vunpack.c.h.b16 %v918
    %v1111 = vunpack.c.l.b16 %v919
    %v1112 = vunpack.c.l.b16 %v920
    %v1113 = vunpack.c.h.b16 %v920
    %v1114 = vunpack.c.l.b16 %v921
    %v1115 = vunpack.c.h.b16 %v921
    %v1116 = vunpack.c.l.b16 %v922
    %v1117 = vunpack.c.l.b16 %v923
    %v1118 = vunpack.c.h.b16 %v923
    %v1119 = vunpack.c.l.b16 %v924
    %v1120 = vunpack.c.h.b16 %v924
    %v1121 = vunpack.c.l.b16 %v925
    %v1122 = vunpack.c.l.b16 %v926
    %v1123 = vunpack.c.h.b16 %v926
    %v1124 = vunpack.c.l.b16 %v927
    %v1125 = vunpack.c.h.b16 %v927
    %v1126 = vunpack.c.l.b16 %v928
    %v1127 = vunpack.c.l.b16 %v929
    %v1128 = vunpack.c.h.b16 %v929
    %v1129 = vunpack.c.l.b16 %v930
    %v1130 = vunpack.c.h.b16 %v930
    %v1131 = vunpack.c.l.b16 %v931
    %v1132 = vpack.c.b16 %v1057, %v1052
    %v1133 = vpack.c.b16 %v1058, %v1053
    %v1134 = vpack.c.b16 %v1059, %v1054
    %v1135 = vpack.c.b16 %v1060, %v1055
    %v1136 = vpack.c.b16 %v1061, %v1056
    %v1137 = vpack.c.b16 %v1067, %v1062
    %v1138 = vpack.c.b16 %v1068, %v1063
    %v1139 = vpack.c.b16 %v1069, %v1064
    %v1140 = vpack.c.b16 %v1070, %v1065
    %v1141 = vpack.c.b16 %v1071, %v1066
    %v1142 = vpack.c.b16 %v1077, %v1072
    %v1143 = vpack.c.b16 %v1078, %v1073
    %v1144 = vpack.c.b16 %v1079, %v1074
    %v1145 = vpack.c.b16 %v1080, %v1075
    %v1146 = vpack.c.b16 %v1081, %v1076
    %v1147 = vpack.c.b16 %v1087, %v1082
    %v1148 = vpack.c.b16 %v1088, %v1083
    %v1149 = vpack.c.b16 %v1089, %v1084
    %v1150 = vpack.c.b16 %v1090, %v1085
    %v1151 = vpack.c.b16 %v1091, %v1086
    %v1152 = vpack.c.b16 %v1097, %v1092
    %v1153 = vpack.c.b16 %v1098, %v1093
    %v1154 = vpack.c.b16 %v1099, %v1094
    %v1155 = vpack.c.b16 %v1100, %v1095
    %v1156 = vpack.c.b16 %v1101, %v1096
    %v1157 = vpack.c.b16 %v1107, %v1102
    %v1158 = vpack.c.b16 %v1108, %v1103
    %v1159 = vpack.c.b16 %v1109, %v1104
    %v1160 = vpack.c.b16 %v1110, %v1105
    %v1161 = vpack.c.b16 %v1111, %v1106
    %v1162 = vpack.c.b16 %v1117, %v1112
    %v1163 = vpack.c.b16 %v1118, %v1113
    %v1164 = vpack.c.b16 %v1119, %v1114
    %v1165 = vpack.c.b16 %v1120, %v1115
    %v1166 = vpack.c.b16 %v1121, %v1116
    %v1167 = vpack.c.b16 %v1127, %v1122
    %v1168 = vpack.c.b16 %v1128, %v1123
    %v1169 = vpack.c.b16 %v1129, %v1124
    %v1170 = vpack.c.b16 %v1130, %v1125
    %v1171 = vpack.c.b16 %v1131, %v1126
    %v1276 = vunpack.c.l.b16 %v932
    %v1277 = vunpack.c.l.b16 %v933
    %v1278 = vunpack.c.l.b16 %v934
    %v1279 = vunpack.c.l.b16 %v935
    %v1280 = vunpack.c.l.b16 %v936
    %v1281 = vunpack.c.l.b16 %v937
    %v1282 = vunpack.c.l.b16 %v938
    %v1283 = vunpack.c.l.b16 %v939
    %v1284 = vunpack.c.l.b16 %v940
    %v1285 = vunpack.c.l.b16 %v941
    %v1286 = vunpack.c.l.b16 %v942
    %v1287 = vunpack.c.l.b16 %v943
    %v1288 = vunpack.c.l.b16 %v944
    %v1289 = vunpack.c.l.b16 %v945
    %v1290 = vunpack.c.l.b16 %v946
    %v1291 = vunpack.c.l.b16 %v947
    %v1292 = vunpack.c.l.b16 %v948
    %v1293 = vunpack.c.l.b16 %v949
    %v1294 = vunpack.c.l.b16 %v950
    %v1295 = vunpack.c.l.b16 %v951
    %v1296 = vunpack.c.l.b16 %v952
    %v1297 = vunpack.c.l.b16 %v953
    %v1298 = vunpack.c.l.b16 %v954
    %v1299 = vunpack.c.l.b16 %v955
    %v1300 = vunpack.c.l.b16 %v956
    %v1301 = vunpack.c.l.b16 %v957
    %v1302 = vunpack.c.l.b16 %v958
    %v1303 = vunpack.c.l.b16 %v959
    %v1304 = vunpack.c.l.b16 %v960
    %v1305 = vunpack.c.l.b16 %v961
    %v1306 = vunpack.c.l.b16 %v962
    %v1307 = vunpack.c.l.b16 %v963
    %v1308 = vunpack.c.l.b16 %v964
    %v1309 = vunpack.c.l.b16 %v965
    %v1310 = vunpack.c.l.b16 %v966
    %v1311 = vunpack.c.l.b16 %v967
    %v1312 = vunpack.c.l.b16 %v968
    %v1313 = vunpack.c.l.b16 %v969
    %v1314 = vunpack.c.l.b16 %v970
    %v1315 = vunpack.c.l.b16 %v971
    %v1316 = vunpack.c.l.b16 %v972
    %v1317 = vunpack.c.l.b16 %v973
    %v1318 = vunpack.c.l.b16 %v974
    %v1319 = vunpack.c.l.b16 %v975
    %v1320 = vunpack.c.l.b16 %v976
    %v1321 = vunpack.c.l.b16 %v977
    %v1322 = vunpack.c.l.b16 %v978
    %v1323 = vunpack.c.l.b16 %v979
    %v1324 = vunpack.c.l.b16 %v980
    %v1325 = vunpack.c.l.b16 %v981
    %v1326 = vunpack.c.l.b16 %v982
    %v1327 = vunpack.c.l.b16 %v983
    %v1328 = vunpack.c.l.b16 %v984
    %v1329 = vunpack.c.l.b16 %v985
    %v1330 = vunpack.c.l.b16 %v986
    %v1331 = vunpack.c.l.b16 %v987
    %v1332 = vunpack.c.l.b16 %v988
    %v1333 = vunpack.c.l.b16 %v989
    %v1334 = vunpack.c.l.b16 %v990
    %v1335 = vunpack.c.l.b16 %v991
    %v1336 = vunpack.c.l.b16 %v992
    %v1337 = vunpack.c.l.b16 %v993
    %v1338 = vunpack.c.l.b16 %v994
    %v1339 = vunpack.c.l.b16 %v995
    %v1340 = vunpack.c.l.b16 %v996
    %v1341 = vunpack.c.l.b16 %v997
    %v1342 = vunpack.c.l.b16 %v998
    %v1343 = vunpack.c.l.b16 %v999
    %v1344 = vunpack.c.l.b16 %v1000
    %v1345 = vunpack.c.l.b16 %v1001
    %v1346 = vunpack.c.l.b16 %v1002
    %v1347 = vunpack.c.l.b16 %v1003
    %v1348 = vpack.c.b16 %v1277, %v1276
    %v1349 = vpack.c.b16 %v1279, %v1278
    %v1350 = vpack.c.b16 %v1281, %v1280
    %v1351 = vpack.c.b16 %v1283, %v1282
    %v1352 = vpack.c.b16 %v1285, %v1284
    %v1353 = vpack.c.b16 %v1287, %v1286
    %v1354 = vpack.c.b16 %v1289, %v1288
    %v1355 = vpack.c.b16 %v1291, %v1290
    %v1356 = vpack.c.b16 %v1293, %v1292
    %v1357 = vpack.c.b16 %v1295, %v1294
    %v1358 = vpack.c.b16 %v1297, %v1296
    %v1359 = vpack.c.b16 %v1299, %v1298
    %v1360 = vpack.c.b16 %v1301, %v1300
    %v1361 = vpack.c.b16 %v1303, %v1302
    %v1362 = vpack.c.b16 %v1305, %v1304
    %v1363 = vpack.c.b16 %v1307, %v1306
    %v1364 = vpack.c.b16 %v1309, %v1308
    %v1365 = vpack.c.b16 %v1311, %v1310
    %v1366 = vpack.c.b16 %v1313, %v1312
    %v1367 = vpack.c.b16 %v1315, %v1314
    %v1368 = vpack.c.b16 %v1317, %v1316
    %v1369 = vpack.c.b16 %v1319, %v1318
    %v1370 = vpack.c.b16 %v1321, %v1320
    %v1371 = vpack.c.b16 %v1323, %v1322
    %v1372 = vpack.c.b16 %v1325, %v1324
    %v1373 = vpack.c.b16 %v1327, %v1326
    %v1374 = vpack.c.b16 %v1329, %v1328
    %v1375 = vpack.c.b16 %v1331, %v1330
    %v1376 = vpack.c.b16 %v1333, %v1332
    %v1377 = vpack.c.b16 %v1335, %v1334
    %v1378 = vpack.c.b16 %v1337, %v1336
    %v1379 = vpack.c.b16 %v1339, %v1338
    %v1380 = vpack.c.b16 %v1341, %v1340
    %v1381 = vpack.c.b16 %v1343, %v1342
    %v1382 = vpack.c.b16 %v1345, %v1344
    %v1383 = vpack.c.b16 %v1347, %v1346
    %v1421 = vsel %vm568, %v1136, 0
    %v1424 = vsel %vm568, %v1141, 0
    %v1427 = vsel %vm568, %v1146, 0
    %v1430 = vsel %vm568, %v1151, 0
    %v1433 = vsel %vm568, %v1156, 0
    %v1436 = vsel %vm568, %v1161, 0
    %v1439 = vsel %vm568, %v1166, 0
    %v1442 = vsel %vm568, %v1171, 0
    %1444 = vmatprep.subr.bf16.mxu0 0
    %1445 = vmatpush1.bf16.msra.mxu0 %v1355
    %1446 = vmatprep.subr.bf16.mxu0 0
    %1447 = vmatpush1.bf16.msra.mxu0 %v1354
    %1448 = vmatprep.subr.bf16.mxu0 0
    %1449 = vmatpush1.bf16.msra.mxu0 %v1353
    %1450 = vmatprep.subr.bf16.mxu0 0
    %1451 = vmatpush1.bf16.msra.mxu0 %v1352
    %1452 = vmatprep.subr.bf16.mxu0 0
    %1453 = vmatpush1.bf16.msra.mxu0 %v1351
    %1454 = vmatprep.subr.bf16.mxu0 0
    %1455 = vmatpush1.bf16.msra.mxu0 %v1350
    %1456 = vmatprep.subr.bf16.mxu0 0
    %1457 = vmatpush1.bf16.msra.mxu0 %v1349
    %1458 = vmatprep.subr.bf16.mxu0 0
    %1459 = vmatpush1.bf16.msra.mxu0 %v1348
    %1460 = vmatprep.subr.bf16.mxu0 0
    %1461 = vmatpush2.bf16.msra.mxu0 %v1363
    %1462 = vmatprep.subr.bf16.mxu0 0
    %1463 = vmatpush2.bf16.msra.mxu0 %v1362
    %1464 = vmatprep.subr.bf16.mxu0 0
    %1465 = vmatpush2.bf16.msra.mxu0 %v1361
    %1466 = vmatprep.subr.bf16.mxu0 0
    %1467 = vmatpush2.bf16.msra.mxu0 %v1360
    %1468 = vmatprep.subr.bf16.mxu0 0
    %1469 = vmatpush2.bf16.msra.mxu0 %v1359
    %1470 = vmatprep.subr.bf16.mxu0 0
    %1471 = vmatpush2.bf16.msra.mxu0 %v1358
    %1472 = vmatprep.subr.bf16.mxu0 0
    %1473 = vmatpush2.bf16.msra.mxu0 %v1357
    %1474 = vmatprep.subr.bf16.mxu0 0
    %1475 = vmatpush2.bf16.msra.mxu0 %v1356
    %1476 = vmatprep.mubr.bf16.mxu0 %v1133
    %1477 = vmatmul.mubr.bf16.gmra.mxu0 %v1132
    %v1478 = vpop.f32.mrf.mxu0
    %v1479 = vadd.f32 0.0, %v1478
    %v1480 = vpop.f32.mrf.mxu0
    %v1481 = vpop.f32.mrf.mxu0
    %v1482 = vadd.f32 0.0, %v1481
    %v1483 = vpop.f32.mrf.mxu0
    %1484 = vmatprep.mubr.bf16.mxu0 %v1138
    %1485 = vmatmul.mubr.bf16.gmra.mxu0 %v1137
    %v1486 = vpop.f32.mrf.mxu0
    %v1487 = vadd.f32 0.0, %v1486
    %v1488 = vpop.f32.mrf.mxu0
    %v1489 = vpop.f32.mrf.mxu0
    %v1490 = vadd.f32 0.0, %v1489
    %v1491 = vpop.f32.mrf.mxu0
    %1492 = vmatprep.mubr.bf16.mxu0 %v1143
    %1493 = vmatmul.mubr.bf16.gmra.mxu0 %v1142
    %v1494 = vpop.f32.mrf.mxu0
    %v1495 = vadd.f32 0.0, %v1494
    %v1496 = vpop.f32.mrf.mxu0
    %v1497 = vpop.f32.mrf.mxu0
    %v1498 = vadd.f32 0.0, %v1497
    %v1499 = vpop.f32.mrf.mxu0
    %1500 = vmatprep.mubr.bf16.mxu0 %v1148
    %1501 = vmatmul.mubr.bf16.gmra.mxu0 %v1147
    %v1502 = vpop.f32.mrf.mxu0
    %v1503 = vadd.f32 0.0, %v1502
    %v1504 = vpop.f32.mrf.mxu0
    %v1505 = vpop.f32.mrf.mxu0
    %v1506 = vadd.f32 0.0, %v1505
    %v1507 = vpop.f32.mrf.mxu0
    %1508 = vmatprep.mubr.bf16.mxu0 %v1153
    %1509 = vmatmul.mubr.bf16.gmra.mxu0 %v1152
    %v1510 = vpop.f32.mrf.mxu0
    %v1511 = vadd.f32 0.0, %v1510
    %v1512 = vpop.f32.mrf.mxu0
    %v1513 = vpop.f32.mrf.mxu0
    %v1514 = vadd.f32 0.0, %v1513
    %v1515 = vpop.f32.mrf.mxu0
    %1516 = vmatprep.mubr.bf16.mxu0 %v1158
    %1517 = vmatmul.mubr.bf16.gmra.mxu0 %v1157
    %v1518 = vpop.f32.mrf.mxu0
    %v1519 = vadd.f32 0.0, %v1518
    %v1520 = vpop.f32.mrf.mxu0
    %v1521 = vpop.f32.mrf.mxu0
    %v1522 = vadd.f32 0.0, %v1521
    %v1523 = vpop.f32.mrf.mxu0
    %1524 = vmatprep.mubr.bf16.mxu0 %v1163
    %1525 = vmatmul.mubr.bf16.gmra.mxu0 %v1162
    %v1526 = vpop.f32.mrf.mxu0
    %v1527 = vadd.f32 0.0, %v1526
    %v1528 = vpop.f32.mrf.mxu0
    %v1529 = vpop.f32.mrf.mxu0
    %v1530 = vadd.f32 0.0, %v1529
    %v1531 = vpop.f32.mrf.mxu0
    %1532 = vmatprep.mubr.bf16.mxu0 %v1168
    %1533 = vmatmul.mubr.bf16.gmra.mxu0 %v1167
    %v1534 = vpop.f32.mrf.mxu0
    %v1535 = vadd.f32 0.0, %v1534
    %v1536 = vpop.f32.mrf.mxu0
    %v1537 = vpop.f32.mrf.mxu0
    %v1538 = vadd.f32 0.0, %v1537
    %v1539 = vpop.f32.mrf.mxu0
    %1540 = vdwg.mxu0
    %1541 = vmatprep.subr.bf16.mxu0 0
    %1542 = vmatpush1.bf16.msra.mxu0 %v1371
    %1543 = vmatprep.subr.bf16.mxu0 0
    %1544 = vmatpush1.bf16.msra.mxu0 %v1370
    %1545 = vmatprep.subr.bf16.mxu0 0
    %1546 = vmatpush1.bf16.msra.mxu0 %v1369
    %1547 = vmatprep.subr.bf16.mxu0 0
    %1548 = vmatpush1.bf16.msra.mxu0 %v1368
    %1549 = vmatprep.subr.bf16.mxu0 0
    %1550 = vmatpush1.bf16.msra.mxu0 %v1367
    %1551 = vmatprep.subr.bf16.mxu0 0
    %1552 = vmatpush1.bf16.msra.mxu0 %v1366
    %1553 = vmatprep.subr.bf16.mxu0 0
    %1554 = vmatpush1.bf16.msra.mxu0 %v1365
    %1555 = vmatprep.subr.bf16.mxu0 0
    %1556 = vmatpush1.bf16.msra.mxu0 %v1364
    %1557 = vmatprep.subr.bf16.mxu0 0
    %1558 = vmatpush2.bf16.msra.mxu0 %v1379
    %1559 = vmatprep.subr.bf16.mxu0 0
    %1560 = vmatpush2.bf16.msra.mxu0 %v1378
    %1561 = vmatprep.subr.bf16.mxu0 0
    %1562 = vmatpush2.bf16.msra.mxu0 %v1377
    %1563 = vmatprep.subr.bf16.mxu0 0
    %1564 = vmatpush2.bf16.msra.mxu0 %v1376
    %1565 = vmatprep.subr.bf16.mxu0 0
    %1566 = vmatpush2.bf16.msra.mxu0 %v1375
    %1567 = vmatprep.subr.bf16.mxu0 0
    %1568 = vmatpush2.bf16.msra.mxu0 %v1374
    %1569 = vmatprep.subr.bf16.mxu0 0
    %1570 = vmatpush2.bf16.msra.mxu0 %v1373
    %1571 = vmatprep.subr.bf16.mxu0 0
    %1572 = vmatpush2.bf16.msra.mxu0 %v1372
    %1573 = vmatprep.mubr.bf16.mxu0 %v1135
    %1574 = vmatmul.mubr.bf16.gmra.mxu0 %v1134
    %v1575 = vpop.f32.mrf.mxu0
    %v1576 = vadd.f32 %v1479, %v1575
    %v1577 = vpop.f32.mrf.mxu0
    %v1578 = vpop.f32.mrf.mxu0
    %v1579 = vadd.f32 %v1482, %v1578
    %v1580 = vpop.f32.mrf.mxu0
    %1581 = vmatprep.mubr.bf16.mxu0 %v1140
    %1582 = vmatmul.mubr.bf16.gmra.mxu0 %v1139
    %v1583 = vpop.f32.mrf.mxu0
    %v1584 = vadd.f32 %v1487, %v1583
    %v1585 = vpop.f32.mrf.mxu0
    %v1586 = vpop.f32.mrf.mxu0
    %v1587 = vadd.f32 %v1490, %v1586
    %v1588 = vpop.f32.mrf.mxu0
    %1589 = vmatprep.mubr.bf16.mxu0 %v1145
    %1590 = vmatmul.mubr.bf16.gmra.mxu0 %v1144
    %v1591 = vpop.f32.mrf.mxu0
    %v1592 = vadd.f32 %v1495, %v1591
    %v1593 = vpop.f32.mrf.mxu0
    %v1594 = vpop.f32.mrf.mxu0
    %v1595 = vadd.f32 %v1498, %v1594
    %v1596 = vpop.f32.mrf.mxu0
    %1597 = vmatprep.mubr.bf16.mxu0 %v1150
    %1598 = vmatmul.mubr.bf16.gmra.mxu0 %v1149
    %v1599 = vpop.f32.mrf.mxu0
    %v1600 = vadd.f32 %v1503, %v1599
    %v1601 = vpop.f32.mrf.mxu0
    %v1602 = vpop.f32.mrf.mxu0
    %v1603 = vadd.f32 %v1506, %v1602
    %v1604 = vpop.f32.mrf.mxu0
    %1605 = vmatprep.mubr.bf16.mxu0 %v1155
    %1606 = vmatmul.mubr.bf16.gmra.mxu0 %v1154
    %v1607 = vpop.f32.mrf.mxu0
    %v1608 = vadd.f32 %v1511, %v1607
    %v1609 = vpop.f32.mrf.mxu0
    %v1610 = vpop.f32.mrf.mxu0
    %v1611 = vadd.f32 %v1514, %v1610
    %v1612 = vpop.f32.mrf.mxu0
    %1613 = vmatprep.mubr.bf16.mxu0 %v1160
    %1614 = vmatmul.mubr.bf16.gmra.mxu0 %v1159
    %v1615 = vpop.f32.mrf.mxu0
    %v1616 = vadd.f32 %v1519, %v1615
    %v1617 = vpop.f32.mrf.mxu0
    %v1618 = vpop.f32.mrf.mxu0
    %v1619 = vadd.f32 %v1522, %v1618
    %v1620 = vpop.f32.mrf.mxu0
    %1621 = vmatprep.mubr.bf16.mxu0 %v1165
    %1622 = vmatmul.mubr.bf16.gmra.mxu0 %v1164
    %v1623 = vpop.f32.mrf.mxu0
    %v1624 = vadd.f32 %v1527, %v1623
    %v1625 = vpop.f32.mrf.mxu0
    %v1626 = vpop.f32.mrf.mxu0
    %v1627 = vadd.f32 %v1530, %v1626
    %v1628 = vpop.f32.mrf.mxu0
    %1629 = vmatprep.mubr.bf16.mxu0 %v1170
    %1630 = vmatmul.mubr.bf16.gmra.mxu0 %v1169
    %v1631 = vpop.f32.mrf.mxu0
    %v1632 = vadd.f32 %v1535, %v1631
    %v1633 = vpop.f32.mrf.mxu0
    %v1634 = vpop.f32.mrf.mxu0
    %v1635 = vadd.f32 %v1538, %v1634
    %v1636 = vpop.f32.mrf.mxu0
    %1637 = vdwg.mxu0
    %1638 = vmatprep.subr.bf16.mxu0 0
    %1639 = vmatpush1.bf16.msra.mxu0 0
    %1640 = vmatprep.subr.bf16.mxu0 0
    %1641 = vmatpush1.bf16.msra.mxu0 0
    %1642 = vmatprep.subr.bf16.mxu0 0
    %1643 = vmatpush1.bf16.msra.mxu0 0
    %1644 = vmatprep.subr.bf16.mxu0 0
    %1645 = vmatpush1.bf16.msra.mxu0 0
    %1646 = vmatprep.subr.bf16.mxu0 0
    %1647 = vmatpush1.bf16.msra.mxu0 %v1383
    %1648 = vmatprep.subr.bf16.mxu0 0
    %1649 = vmatpush1.bf16.msra.mxu0 %v1382
    %1650 = vmatprep.subr.bf16.mxu0 0
    %1651 = vmatpush1.bf16.msra.mxu0 %v1381
    %1652 = vmatprep.subr.bf16.mxu0 0
    %1653 = vmatpush1.bf16.msra.mxu0 %v1380
    %1654 = vmatprep.subr.bf16.mxu0 0
    %1655 = vmatpush2.bf16.msra.mxu0 0
    %1656 = vmatprep.subr.bf16.mxu0 0
    %1657 = vmatpush2.bf16.msra.mxu0 0
    %1658 = vmatprep.subr.bf16.mxu0 0
    %1659 = vmatpush2.bf16.msra.mxu0 0
    %1660 = vmatprep.subr.bf16.mxu0 0
    %1661 = vmatpush2.bf16.msra.mxu0 0
    %1662 = vmatprep.subr.bf16.mxu0 0
    %1663 = vmatpush2.bf16.msra.mxu0 0
    %1664 = vmatprep.subr.bf16.mxu0 0
    %1665 = vmatpush2.bf16.msra.mxu0 0
    %1666 = vmatprep.subr.bf16.mxu0 0
    %1667 = vmatpush2.bf16.msra.mxu0 0
    %1668 = vmatprep.subr.bf16.mxu0 0
    %1669 = vmatpush2.bf16.msra.mxu0 0
    %1670 = vmatprep.mubr.bf16.mxu0 0
    %1671 = vmatmul.mubr.bf16.gmra.mxu0 %v1421
    %v1672 = vpop.f32.mrf.mxu0
    %v1673 = vadd.f32 %v1576, %v1672
    %v1674 = vpop.f32.mrf.mxu0
    %v1675 = vpop.f32.mrf.mxu0
    %v1676 = vadd.f32 %v1579, %v1675
    %v1677 = vpop.f32.mrf.mxu0
    %1678 = vmatprep.mubr.bf16.mxu0 0
    %1679 = vmatmul.mubr.bf16.gmra.mxu0 %v1424
    %v1680 = vpop.f32.mrf.mxu0
    %v1681 = vadd.f32 %v1584, %v1680
    %v1682 = vpop.f32.mrf.mxu0
    %v1683 = vpop.f32.mrf.mxu0
    %v1684 = vadd.f32 %v1587, %v1683
    %v1685 = vpop.f32.mrf.mxu0
    %1686 = vmatprep.mubr.bf16.mxu0 0
    %1687 = vmatmul.mubr.bf16.gmra.mxu0 %v1427
    %v1688 = vpop.f32.mrf.mxu0
    %v1689 = vadd.f32 %v1592, %v1688
    %v1690 = vpop.f32.mrf.mxu0
    %v1691 = vpop.f32.mrf.mxu0
    %v1692 = vadd.f32 %v1595, %v1691
    %v1693 = vpop.f32.mrf.mxu0
    %1694 = vmatprep.mubr.bf16.mxu0 0
    %1695 = vmatmul.mubr.bf16.gmra.mxu0 %v1430
    %v1696 = vpop.f32.mrf.mxu0
    %v1697 = vadd.f32 %v1600, %v1696
    %v1698 = vpop.f32.mrf.mxu0
    %v1699 = vpop.f32.mrf.mxu0
    %v1700 = vadd.f32 %v1603, %v1699
    %v1701 = vpop.f32.mrf.mxu0
    %1702 = vmatprep.mubr.bf16.mxu0 0
    %1703 = vmatmul.mubr.bf16.gmra.mxu0 %v1433
    %v1704 = vpop.f32.mrf.mxu0
    %v1705 = vadd.f32 %v1608, %v1704
    %v1706 = vpop.f32.mrf.mxu0
    %v1707 = vpop.f32.mrf.mxu0
    %v1708 = vadd.f32 %v1611, %v1707
    %v1709 = vpop.f32.mrf.mxu0
    %1710 = vmatprep.mubr.bf16.mxu0 0
    %1711 = vmatmul.mubr.bf16.gmra.mxu0 %v1436
    %v1712 = vpop.f32.mrf.mxu0
    %v1713 = vadd.f32 %v1616, %v1712
    %v1714 = vpop.f32.mrf.mxu0
    %v1715 = vpop.f32.mrf.mxu0
    %v1716 = vadd.f32 %v1619, %v1715
    %v1717 = vpop.f32.mrf.mxu0
    %1718 = vmatprep.mubr.bf16.mxu0 0
    %1719 = vmatmul.mubr.bf16.gmra.mxu0 %v1439
    %v1720 = vpop.f32.mrf.mxu0
    %v1721 = vadd.f32 %v1624, %v1720
    %v1722 = vpop.f32.mrf.mxu0
    %v1723 = vpop.f32.mrf.mxu0
    %v1724 = vadd.f32 %v1627, %v1723
    %v1725 = vpop.f32.mrf.mxu0
    %1726 = vmatprep.mubr.bf16.mxu0 0
    %1727 = vmatmul.mubr.bf16.gmra.mxu0 %v1442
    %v1728 = vpop.f32.mrf.mxu0
    %v1729 = vadd.f32 %v1632, %v1728
    %v1730 = vpop.f32.mrf.mxu0
    %v1731 = vpop.f32.mrf.mxu0
    %v1732 = vadd.f32 %v1635, %v1731
    %v1733 = vpop.f32.mrf.mxu0
    %1734 = vdwg.mxu0
    %v1735 = vadd.f32 %v822, %v1673
    %v1736 = vadd.f32 %v825, %v1676
    %v1737 = vadd.f32 %v830, %v1681
    %v1738 = vadd.f32 %v833, %v1684
    %v1739 = vadd.f32 %v838, %v1689
    %v1740 = vadd.f32 %v841, %v1692
    %v1741 = vadd.f32 %v846, %v1697
    %v1742 = vadd.f32 %v849, %v1700
    %v1743 = vadd.f32 %v854, %v1705
    %v1744 = vadd.f32 %v857, %v1708
    %v1745 = vadd.f32 %v862, %v1713
    %v1746 = vadd.f32 %v865, %v1716
    %v1747 = vadd.f32 %v870, %v1721
    %v1748 = vadd.f32 %v873, %v1724
    %v1749 = vadd.f32 %v878, %v1729
    %v1750 = vadd.f32 %v881, %v1732
    %v1751 = vld [vmem:[%s5] sm:$0x1]
    %v1753 = vlaneseq
    %v1754 = vshrl.u32 %v1753, 7
    %v1755 = vsub.s32 0, %v1754
    %v1756 = vrot.slane %v1751, %v1755
    %v1758 = vadd.f32 %v1735, %v1756
    %v1759 = vadd.f32 %v1736, %v1756
    %v1760 = vadd.f32 %v1737, %v1756
    %v1761 = vadd.f32 %v1738, %v1756
    %v1762 = vadd.f32 %v1739, %v1756
    %v1763 = vadd.f32 %v1740, %v1756
    %v1764 = vadd.f32 %v1741, %v1756
    %v1765 = vadd.f32 %v1742, %v1756
    %v1766 = vadd.f32 %v1743, %v1756
    %v1767 = vadd.f32 %v1744, %v1756
    %v1768 = vadd.f32 %v1745, %v1756
    %v1769 = vadd.f32 %v1746, %v1756
    %v1770 = vadd.f32 %v1747, %v1756
    %v1771 = vadd.f32 %v1748, %v1756
    %v1772 = vadd.f32 %v1749, %v1756
    %v1773 = vadd.f32 %v1750, %v1756
    %1774 = vst.msk [vmem:[#allocation2] sm:$0xff] %vm568, %v1758
    %1775 = vst.msk [vmem:[#allocation2 + $0x8] sm:$0xff] %vm568, %v1759
    %1776 = vst.msk [vmem:[#allocation2 + $0x10] sm:$0xff] %vm568, %v1760
    %1777 = vst.msk [vmem:[#allocation2 + $0x18] sm:$0xff] %vm568, %v1761
    %1778 = vst.msk [vmem:[#allocation2 + $0x20] sm:$0xff] %vm568, %v1762
    %1779 = vst.msk [vmem:[#allocation2 + $0x28] sm:$0xff] %vm568, %v1763
    %1780 = vst.msk [vmem:[#allocation2 + $0x30] sm:$0xff] %vm568, %v1764
    %1781 = vst.msk [vmem:[#allocation2 + $0x38] sm:$0xff] %vm568, %v1765
    %1782 = vst.msk [vmem:[#allocation2 + $0x40] sm:$0xff] %vm568, %v1766
    %1783 = vst.msk [vmem:[#allocation2 + $0x48] sm:$0xff] %vm568, %v1767
    %1784 = vst.msk [vmem:[#allocation2 + $0x50] sm:$0xff] %vm568, %v1768
    %1785 = vst.msk [vmem:[#allocation2 + $0x58] sm:$0xff] %vm568, %v1769
    %1786 = vst.msk [vmem:[#allocation2 + $0x60] sm:$0xff] %vm568, %v1770
    %1787 = vst.msk [vmem:[#allocation2 + $0x68] sm:$0xff] %vm568, %v1771
    %1788 = vst.msk [vmem:[#allocation2 + $0x70] sm:$0xff] %vm568, %v1772
    %1789 = vst.msk [vmem:[#allocation2 + $0x78] sm:$0xff] %vm568, %v1773
    // Predicated region
    $region26: #{da_forward.7} parent=1 // pred_check
      _
    $region27: #{da_forward.7} parent=1 // pred_check_branch
      %1791 = sbr.rel (0) target = $region29
    $region28: #{da_forward.7} parent=1 // pred_region
      %s1793 = ssub.s32 2048, 2048
      %1794 = vsyncadd [#allocation3], %s1793
      %s1795 = sshll.u32 [#allocation2], 4
      %s1796 = int_to_ptr.vmem [resolvable:$true] %s1795
      %1801 = dma.vmem_to_hbm [thread:$0]  %s1796, 2048, %s6, [#allocation3], 128, 128, 8
    $region29: #{da_forward.7} parent=1 // pred_fallthru
      _
    // Predicated region
    $region30: #{da_forward.7} parent=1 // pred_check
      _
    $region31: #{da_forward.7} parent=1 // pred_check_branch
      %1803 = sbr.rel (0) target = $region33
    $region32: #{da_forward.7} parent=1 // pred_region
      %1804 = dma.done [#allocation3], 2048
    $region33: #{da_forward.7} parent=1 // pred_fallthru
      _
    %1805 = vsyncpa [#allocation3], 1

</llo_original>
